<compile_context>
chip_gen: v7x
topology: tpu7x:2x2x1
jax: 0.10.0
libtpu: 0.0.40
codegen_flags: <defaults>
</compile_context>

<pallas_src>
import functools

import jax
import jax.numpy as jnp
from jax.experimental import pallas as pl
from jax.experimental.pallas import tpu as pltpu

EPS = 1e-5
NEG_SLOPE = 0.2
_VMEM_LIMIT = 32 * 1024 * 1024  # plenty of headroom on v5e/v6e/v7x


def _round_up(x, m):
    return ((x + m - 1) // m) * m


def _lrelu(x):
    return jnp.maximum(x, NEG_SLOPE * x)


# ---------------------------------------------------------------------------
# Kernels (row-streamed; BN stats accumulated into per-core resident rows)
# ---------------------------------------------------------------------------
def _stats1_kernel(x_ref, w1_ref, s_ref, ss_ref):
    """h1 = x @ W1 (f32 acc); accumulate per-channel sum / sum-sq of h1.

    Padded x rows are zero, so their h1 rows are exactly zero -> no masking needed.
    h1 itself is never written to HBM.
    """
    @pl.when(pl.program_id(1) == 0)
    def _():
        s_ref[...] = jnp.zeros_like(s_ref)
        ss_ref[...] = jnp.zeros_like(ss_ref)

    h1 = jnp.dot(x_ref[...], w1_ref[...], preferred_element_type=jnp.float32)
    s_ref[...] += jnp.sum(h1, axis=0, keepdims=True).reshape(s_ref.shape)
    ss_ref[...] += jnp.sum(h1 * h1, axis=0, keepdims=True).reshape(ss_ref.shape)


def _stats2_kernel(x_ref, w1_ref, sc1_ref, sh1_ref, w2_ref, s_ref, ss_ref):
    """Recompute h1, apply BN1+lrelu, h2 = y1 @ W2; accumulate h2 stats only.

    Padded-row pollution of the stats (constant per row) is subtracted in the wrapper.
    """
    @pl.when(pl.program_id(1) == 0)
    def _():
        s_ref[...] = jnp.zeros_like(s_ref)
        ss_ref[...] = jnp.zeros_like(ss_ref)

    h1 = jnp.dot(x_ref[...], w1_ref[...], preferred_element_type=jnp.float32)
    y1 = _lrelu(h1 * sc1_ref[...] + sh1_ref[...])
    h2 = jnp.dot(y1.astype(jnp.bfloat16), w2_ref[...],
                 preferred_element_type=jnp.float32)
    s_ref[...] += jnp.sum(h2, axis=0, keepdims=True).reshape(s_ref.shape)
    ss_ref[...] += jnp.sum(h2 * h2, axis=0, keepdims=True).reshape(ss_ref.shape)


def _stats3_kernel(x_ref, w1_ref, sc1_ref, sh1_ref, w2_ref, sc2_ref, sh2_ref,
                   w3_ref, h3_ref, s_ref, ss_ref):
    """Recompute h1->h2, apply BN2+lrelu, h3 = y2 @ W3; store h3 and its stats."""
    @pl.when(pl.program_id(1) == 0)
    def _():
        s_ref[...] = jnp.zeros_like(s_ref)
        ss_ref[...] = jnp.zeros_like(ss_ref)

    h1 = jnp.dot(x_ref[...], w1_ref[...], preferred_element_type=jnp.float32)
    y1 = _lrelu(h1 * sc1_ref[...] + sh1_ref[...])
    h2 = jnp.dot(y1.astype(jnp.bfloat16), w2_ref[...],
                 preferred_element_type=jnp.float32)
    y2 = _lrelu(h2 * sc2_ref[...] + sh2_ref[...])
    h3 = jnp.dot(y2.astype(jnp.bfloat16), w3_ref[...],
                 preferred_element_type=jnp.float32)
    s_ref[...] += jnp.sum(h3, axis=0, keepdims=True).reshape(s_ref.shape)
    ss_ref[...] += jnp.sum(h3 * h3, axis=0, keepdims=True).reshape(ss_ref.shape)
    h3_ref[...] = h3.astype(h3_ref.dtype)


def _final_kernel(h3_ref, sc3_ref, sh3_ref, w4_ref, o_ref):
    """Apply BN3 + LeakyReLU, then the 128 -> 3 projection."""
    y3 = _lrelu(h3_ref[...].astype(jnp.float32) * sc3_ref[...] + sh3_ref[...])
    # TODO(synk): (tm, 3) output uses masked lane stores; only lane-pad if profiling shows it.
    o_ref[...] = jnp.dot(y3.astype(jnp.bfloat16), w4_ref[...],
                         preferred_element_type=jnp.float32)


# ---------------------------------------------------------------------------
# Wrapper
# ---------------------------------------------------------------------------
def _scale_shift(s, ss, gamma, beta, m):
    """Fold training-mode BN (biased var) into per-channel scale/shift (f32)."""
    mean = s / m
    var = jnp.maximum(ss / m - mean * mean, 0.0)
    scale = gamma * jax.lax.rsqrt(var + EPS)
    shift = beta - mean * scale
    return scale, shift


@functools.partial(jax.jit, static_argnames=("tm",))
def region_reconstruction(x_ncw, params, *, tm=1024):
    """x_ncw: (B, C_in, N) float32 (PyTorch NCW). Returns (B, N, 3) float32."""
    B, C_in, N = x_ncw.shape
    M = B * N
    (w1t, w2t, w3t, w4t, g1, b1, g2, b2, g3, b3) = params
    of1, of2, of3 = w1t.shape[1], w2t.shape[1], w3t.shape[1]

    # (B, C, N) -> (B, N, C) -> (M, C): points-major, channels on the lane axis.
    x2d = jnp.transpose(x_ncw, (0, 2, 1)).reshape(M, C_in)

    # Row-tile size: multiple of 16 (bf16 sublane packing), capped by M.
    tm = _round_up(min(tm, _round_up(M, 16)), 16)
    Mp = _round_up(M, tm)
    nblk = Mp // tm
    if nblk > 1 and nblk % 2 == 1:        # even block count so v7x can split it over 2 TCs
        Mp += tm
        nblk += 1
    ncore = 2 if nblk > 1 else 1          # megacore split of passes 1-3 (no-op on 1-TC chips)
    nb = nblk // ncore
    pad = Mp - M
    if pad:
        x2d = jnp.pad(x2d, ((0, pad), (0, 0)))

    # bf16 matmul operands; BN math and accumulators stay f32.
    x2d = x2d.astype(jnp.bfloat16)
    w1b, w2b, w3b, w4b = (w.astype(jnp.bfloat16) for w in (w1t, w2t, w3t, w4t))

    # ---- specs --------------------------------------------------------------
    row3 = lambda cols: pl.BlockSpec((tm, cols), lambda c, i: (c * nb + i, 0))
    full3 = lambda shape: pl.BlockSpec(shape, lambda c, i: (0,) * len(shape))
    acc3 = lambda cols: pl.BlockSpec((1, 1, cols), lambda c, i: (c, 0, 0))
    row1 = lambda cols: pl.BlockSpec((tm, cols), lambda i: (i, 0))
    full1 = lambda shape: pl.BlockSpec(shape, lambda i: (0,) * len(shape))

    cp_acc = pltpu.CompilerParams(dimension_semantics=("parallel", "arbitrary"),
                                  vmem_limit_bytes=_VMEM_LIMIT)
    cp_par = pltpu.CompilerParams(dimension_semantics=("parallel",),
                                  vmem_limit_bytes=_VMEM_LIMIT)

    def acc_shape(cols):
        return jax.ShapeDtypeStruct((ncore, 1, cols), jnp.float32)

    def ce(flops, bytes_):
        return pl.CostEstimate(flops=int(flops), transcendentals=0,
                               bytes_accessed=int(bytes_))

    def reduce_acc(a):                    # (ncore, 1, C) -> (1, C)
        return jnp.sum(a, axis=0)

    # ---- pass 1: stats of h1 = x @ W1 (h1 never materialized) ---------------
    s1, ss1 = pl.pallas_call(
        _stats1_kernel,
        grid=(ncore, nb),
        in_specs=[row3(C_in), full3((C_in, of1))],
        out_specs=(acc3(of1), acc3(of1)),
        out_shape=(acc_shape(of1), acc_shape(of1)),
        compiler_params=cp_acc,
        cost_estimate=ce(2 * Mp * C_in * of1,
                         2 * Mp * C_in + 2 * C_in * of1 + 8 * ncore * of1),
    )(x2d, w1b)
    sc1, sh1 = _scale_shift(reduce_acc(s1), reduce_acc(ss1), g1, b1, M)

    # ---- pass 2: stats of h2 (recompute h1 -> BN1/lrelu -> @W2 in-kernel) ---
    s2, ss2 = pl.pallas_call(
        _stats2_kernel,
        grid=(ncore, nb),
        in_specs=[row3(C_in), full3((C_in, of1)), full3((1, of1)),
                  full3((1, of1)), full3((of1, of2))],
        out_specs=(acc3(of2), acc3(of2)),
        out_shape=(acc_shape(of2), acc_shape(of2)),
        compiler_params=cp_acc,
        cost_estimate=ce(2 * Mp * (C_in * of1 + of1 * of2) + 6 * Mp * of1,
                         2 * Mp * C_in + 2 * (C_in * of1 + of1 * of2)
                         + 8 * of1 + 8 * ncore * of2),
    )(x2d, w1b, sc1, sh1, w2b)
    s2, ss2 = reduce_acc(s2), reduce_acc(ss2)
    # Padded x rows are zero; after BN1's shift every padded row contributes the
    # same constant h2_pad = lrelu(sh1) @ W2.  Subtract it analytically (plain JAX).
    if pad:
        h2_pad = jnp.dot(_lrelu(sh1).astype(jnp.bfloat16), w2b,
                         preferred_element_type=jnp.float32)
        s2 = s2 - pad * h2_pad
        ss2 = ss2 - pad * h2_pad * h2_pad
    sc2, sh2 = _scale_shift(s2, ss2, g2, b2, M)

    # ---- pass 3: recompute h1,h2 -> BN2/lrelu -> h3 = y2 @ W3; store h3 -----
    h3, s3, ss3 = pl.pallas_call(
        _stats3_kernel,
        grid=(ncore, nb),
        in_specs=[row3(C_in), full3((C_in, of1)), full3((1, of1)),
                  full3((1, of1)), full3((of1, of2)), full3((1, of2)),
                  full3((1, of2)), full3((of2, of3))],
        out_specs=(row3(of3), acc3(of3), acc3(of3)),
        out_shape=(jax.ShapeDtypeStruct((Mp, of3), jnp.bfloat16),
                   acc_shape(of3), acc_shape(of3)),
        compiler_params=cp_acc,
        cost_estimate=ce(
            2 * Mp * (C_in * of1 + of1 * of2 + of2 * of3) + 6 * Mp * (of1 + of2),
            2 * Mp * C_in + 2 * Mp * of3
            + 2 * (C_in * of1 + of1 * of2 + of2 * of3)
            + 8 * (of1 + of2) + 8 * ncore * of3),
    )(x2d, w1b, sc1, sh1, w2b, sc2, sh2, w3b)
    s3, ss3 = reduce_acc(s3), reduce_acc(ss3)
    if pad:
        y2_pad = _lrelu(h2_pad * sc2 + sh2)
        h3_pad = jnp.dot(y2_pad.astype(jnp.bfloat16), w3b,
                         preferred_element_type=jnp.float32)
        s3 = s3 - pad * h3_pad
        ss3 = ss3 - pad * h3_pad * h3_pad
    sc3, sh3 = _scale_shift(s3, ss3, g3, b3, M)

    # ---- pass 4: BN3 + lrelu + 128 -> 3 projection (fully parallel) ---------
    out2d = pl.pallas_call(
        _final_kernel,
        grid=(nblk,),
        in_specs=[row1(of3), full1((1, of3)), full1((1, of3)), full1((of3, 3))],
        out_specs=row1(3),
        out_shape=jax.ShapeDtypeStruct((Mp, 3), jnp.float32),
        compiler_params=cp_par,
        cost_estimate=ce(2 * Mp * of3 * 3 + 6 * Mp * of3,
                         2 * Mp * of3 + 12 * Mp + 2 * of3 * 3 + 8 * of3),
    )(h3, sc3, sh3, w4b)

    return out2d[:M].reshape(B, N, 3)


# ---------------------------------------------------------------------------
# Params / reference
# ---------------------------------------------------------------------------
def init_params(key, input_size):
    """Synthetic parameters matching the PyTorch module shapes.

    Conv weights (out, in, 1) are stored transposed as (in, out) for matmul.
    BN affine params (gamma, beta) stored as (1, C) rows for lane broadcast.
    """
    of1, of2, of3 = 256, 256, 128
    ks = jax.random.split(key, 10)
    w1 = jax.random.normal(ks[0], (of1, input_size), jnp.float32) * 0.1
    w2 = jax.random.normal(ks[1], (of2, of1), jnp.float32) * 0.1
    w3 = jax.random.normal(ks[2], (of3, of2), jnp.float32) * 0.1
    w4 = jax.random.normal(ks[3], (3, of3), jnp.float32) * 0.1
    g1 = 1.0 + 0.1 * jax.random.normal(ks[4], (1, of1), jnp.float32)
    b1 = 0.1 * jax.random.normal(ks[5], (1, of1), jnp.float32)
    g2 = 1.0 + 0.1 * jax.random.normal(ks[6], (1, of2), jnp.float32)
    b2 = 0.1 * jax.random.normal(ks[7], (1, of2), jnp.float32)
    g3 = 1.0 + 0.1 * jax.random.normal(ks[8], (1, of3), jnp.float32)
    b3 = 0.1 * jax.random.normal(ks[9], (1, of3), jnp.float32)
    return (w1.T, w2.T, w3.T, w4.T, g1, b1, g2, b2, g3, b3)


def reference_forward(x_ncw, params):
    """Plain-JAX f32 reference mirroring the PyTorch forward (training-mode BN)."""
    (w1t, w2t, w3t, w4t, g1, b1, g2, b2, g3, b3) = params
    B, C_in, N = x_ncw.shape
    x2d = jnp.transpose(x_ncw, (0, 2, 1)).reshape(B * N, C_in)

    def bn_lrelu(h, g, b):
        m = h.mean(axis=0, keepdims=True)
        v = ((h - m) ** 2).mean(axis=0, keepdims=True)
        hn = (h - m) / jnp.sqrt(v + EPS) * g + b
        return jnp.where(hn > 0, hn, NEG_SLOPE * hn)

    h = bn_lrelu(x2d @ w1t, g1, b1)
    h = bn_lrelu(h @ w2t, g2, b2)
    h = bn_lrelu(h @ w3t, g3, b3)
    return (h @ w4t).reshape(B, N, 3)


if __name__ == "__main__":
    key = jax.random.PRNGKey(0)
    k_x, k_p = jax.random.split(key)

    # Small NCW input; N chosen so the row grid has padded rows and an even block
    # count (tm=128 -> Mp=512, 4 blocks -> 2-core x 2-block grid, 112 padded rows),
    # exercising the megacore grid and the analytic padding correction.
    B, C_in, N = 2, 16, 200        # M = 400 rows
    x = jax.random.normal(k_x, (B, C_in, N), jnp.float32)
    params = init_params(k_p, C_in)

    out = region_reconstruction(x, params, tm=128)
    out = jax.block_until_ready(out)

    ref = reference_forward(x, params)
    assert out.shape == (B, N, 3), out.shape
    # bf16 matmul operands / bf16-stored h3 => relaxed tolerance vs f32 reference.
    max_err = float(jnp.max(jnp.abs(out - ref)))
    assert max_err < 5e-2, f"mismatch vs reference, max abs err = {max_err}"

    print("KERNEL_OK")
</pallas_src>

<mosaic_0001>
module attributes {stable_mosaic.version = 11 : i64} {
  func.func @_stats1_kernel(%arg0: i32, %arg1: i32, %arg2: memref<128x16xbf16, #tpu.memory_space<vmem>>, %arg3: memref<16x256xbf16, #tpu.memory_space<vmem>>, %arg4: memref<1x1x256xf32, #tpu.memory_space<vmem>>, %arg5: memref<1x1x256xf32, #tpu.memory_space<vmem>>) attributes {dimension_semantics = [#tpu.dimension_semantics<parallel>, #tpu.dimension_semantics<arbitrary>], iteration_bounds = array<i64: 2, 2>, scalar_prefetch = 0 : i64, scratch_operands = 0 : i64, tpu.core_type = #tpu.core_type<tc>, window_params = [{transform_indices = @transform_0, window_bounds = array<i64: 128, 16>}, {pipeline_mode = #tpu.pipeline_mode<synchronous>, transform_indices = @transform_1, window_bounds = array<i64: 16, 256>}, {transform_indices = @transform_2, window_bounds = array<i64: 1, 1, 256>}, {transform_indices = @transform_3, window_bounds = array<i64: 1, 1, 256>}]} {
    %c0_i32 = arith.constant 0 : i32
    %0 = arith.cmpi eq, %arg1, %c0_i32 : i32
    %1 = arith.extui %0 : i1 to i32
    %c0_i32_0 = arith.constant 0 : i32
    %2 = arith.cmpi ne, %1, %c0_i32_0 : i32
    scf.if %2 {
      %cst_18 = arith.constant 0.000000e+00 : f32
      %19 = vector.broadcast %cst_18 : f32 to vector<1x1x256xf32>
      %c0_19 = arith.constant 0 : index
      %c0_20 = arith.constant 0 : index
      %c0_21 = arith.constant 0 : index
      %20 = vector.load %arg4[%c0_19, %c0_20, %c0_21] : memref<1x1x256xf32, #tpu.memory_space<vmem>>, vector<1x1x256xf32>
      tpu.vector_store %arg4[%c0_19, %c0_20, %c0_21], %19 {strides = array<i32>} : memref<1x1x256xf32, #tpu.memory_space<vmem>>, vector<1x1x256xf32>,
      %cst_22 = arith.constant 0.000000e+00 : f32
      %21 = vector.broadcast %cst_22 : f32 to vector<1x1x256xf32>
      %c0_23 = arith.constant 0 : index
      %c0_24 = arith.constant 0 : index
      %c0_25 = arith.constant 0 : index
      %22 = vector.load %arg5[%c0_23, %c0_24, %c0_25] : memref<1x1x256xf32, #tpu.memory_space<vmem>>, vector<1x1x256xf32>
      tpu.vector_store %arg5[%c0_23, %c0_24, %c0_25], %21 {strides = array<i32>} : memref<1x1x256xf32, #tpu.memory_space<vmem>>, vector<1x1x256xf32>,
    } else {
    }
    %c0 = arith.constant 0 : index
    %c0_1 = arith.constant 0 : index
    %3 = vector.load %arg2[%c0, %c0_1] : memref<128x16xbf16, #tpu.memory_space<vmem>>, vector<128x16xbf16>
    %c0_2 = arith.constant 0 : index
    %c0_3 = arith.constant 0 : index
    %4 = vector.load %arg3[%c0_2, %c0_3] : memref<16x256xbf16, #tpu.memory_space<vmem>>, vector<16x256xbf16>
    %cst = arith.constant dense<0.000000e+00> : vector<128x256xf32>
    %5 = tpu.matmul %3, %4, %cst {dimension_numbers = #tpu.dot_dimension_numbers<[1], [0], [0], [1], [0, 0, 1, 1], [], []>} : vector<128x16xbf16>, vector<16x256xbf16>, vector<128x256xf32> -> vector<128x256xf32>
    %c0_4 = arith.constant 0 : index
    %c0_5 = arith.constant 0 : index
    %c0_6 = arith.constant 0 : index
    %6 = vector.load %arg4[%c0_4, %c0_5, %c0_6] : memref<1x1x256xf32, #tpu.memory_space<vmem>>, vector<1x1x256xf32>
    %cst_7 = arith.constant dense<0.000000e+00> : vector<256xf32>
    %7 = vector.multi_reduction <add>, %5, %cst_7 [0] : vector<128x256xf32> to vector<256xf32>
    %8 = vector.shape_cast %7 : vector<256xf32> to vector<1x256xf32>
    %9 = vector.shape_cast %8 : vector<1x256xf32> to vector<1x1x256xf32>
    %10 = arith.addf %6, %9 : vector<1x1x256xf32>
    %c0_8 = arith.constant 0 : index
    %c0_9 = arith.constant 0 : index
    %c0_10 = arith.constant 0 : index
    %11 = vector.load %arg4[%c0_8, %c0_9, %c0_10] : memref<1x1x256xf32, #tpu.memory_space<vmem>>, vector<1x1x256xf32>
    tpu.vector_store %arg4[%c0_8, %c0_9, %c0_10], %10 {strides = array<i32>} : memref<1x1x256xf32, #tpu.memory_space<vmem>>, vector<1x1x256xf32>,
    %c0_11 = arith.constant 0 : index
    %c0_12 = arith.constant 0 : index
    %c0_13 = arith.constant 0 : index
    %12 = vector.load %arg5[%c0_11, %c0_12, %c0_13] : memref<1x1x256xf32, #tpu.memory_space<vmem>>, vector<1x1x256xf32>
    %13 = arith.mulf %5, %5 : vector<128x256xf32>
    %cst_14 = arith.constant dense<0.000000e+00> : vector<256xf32>
    %14 = vector.multi_reduction <add>, %13, %cst_14 [0] : vector<128x256xf32> to vector<256xf32>
    %15 = vector.shape_cast %14 : vector<256xf32> to vector<1x256xf32>
    %16 = vector.shape_cast %15 : vector<1x256xf32> to vector<1x1x256xf32>
    %17 = arith.addf %12, %16 : vector<1x1x256xf32>
    %c0_15 = arith.constant 0 : index
    %c0_16 = arith.constant 0 : index
    %c0_17 = arith.constant 0 : index
    %18 = vector.load %arg5[%c0_15, %c0_16, %c0_17] : memref<1x1x256xf32, #tpu.memory_space<vmem>>, vector<1x1x256xf32>
    tpu.vector_store %arg5[%c0_15, %c0_16, %c0_17], %17 {strides = array<i32>} : memref<1x1x256xf32, #tpu.memory_space<vmem>>, vector<1x1x256xf32>,
    return
  }
  func.func @transform_0(%arg0: i32, %arg1: i32) -> (i32, i32) {
    %c2_i32 = arith.constant 2 : i32
    %0 = arith.muli %arg0, %c2_i32 : i32
    %1 = arith.addi %0, %arg1 : i32
    %c0_i32 = arith.constant 0 : i32
    %c0_i32_0 = arith.constant 0 : i32
    return %1, %c0_i32 : i32, i32
  }
  func.func @transform_1(%arg0: i32, %arg1: i32) -> (i32, i32) {
    %c0_i32 = arith.constant 0 : i32
    %c0_i32_0 = arith.constant 0 : i32
    %c0_i32_1 = arith.constant 0 : i32
    return %c0_i32, %c0_i32_0 : i32, i32
  }
  func.func @transform_2(%arg0: i32, %arg1: i32) -> (i32, i32, i32) {
    %c0_i32 = arith.constant 0 : i32
    %c0_i32_0 = arith.constant 0 : i32
    %c0_i32_1 = arith.constant 0 : i32
    return %arg0, %c0_i32, %c0_i32_0 : i32, i32, i32
  }
  func.func @transform_3(%arg0: i32, %arg1: i32) -> (i32, i32, i32) {
    %c0_i32 = arith.constant 0 : i32
    %c0_i32_0 = arith.constant 0 : i32
    %c0_i32_1 = arith.constant 0 : i32
    return %arg0, %c0_i32, %c0_i32_0 : i32, i32, i32
  }
}

module attributes {stable_mosaic.version = 11 : i64} {
  func.func @_stats2_kernel(%arg0: i32, %arg1: i32, %arg2: memref<128x16xbf16, #tpu.memory_space<vmem>>, %arg3: memref<16x256xbf16, #tpu.memory_space<vmem>>, %arg4: memref<1x256xf32, #tpu.memory_space<vmem>>, %arg5: memref<1x256xf32, #tpu.memory_space<vmem>>, %arg6: memref<256x256xbf16, #tpu.memory_space<vmem>>, %arg7: memref<1x1x256xf32, #tpu.memory_space<vmem>>, %arg8: memref<1x1x256xf32, #tpu.memory_space<vmem>>) attributes {dimension_semantics = [#tpu.dimension_semantics<parallel>, #tpu.dimension_semantics<arbitrary>], iteration_bounds = array<i64: 2, 2>, scalar_prefetch = 0 : i64, scratch_operands = 0 : i64, tpu.core_type = #tpu.core_type<tc>, window_params = [{transform_indices = @transform_0, window_bounds = array<i64: 128, 16>}, {pipeline_mode = #tpu.pipeline_mode<synchronous>, transform_indices = @transform_1, window_bounds = array<i64: 16, 256>}, {pipeline_mode = #tpu.pipeline_mode<synchronous>, transform_indices = @transform_2, window_bounds = array<i64: 1, 256>}, {pipeline_mode = #tpu.pipeline_mode<synchronous>, transform_indices = @transform_3, window_bounds = array<i64: 1, 256>}, {pipeline_mode = #tpu.pipeline_mode<synchronous>, transform_indices = @transform_4, window_bounds = array<i64: 256, 256>}, {transform_indices = @transform_5, window_bounds = array<i64: 1, 1, 256>}, {transform_indices = @transform_6, window_bounds = array<i64: 1, 1, 256>}]} {
    %c0_i32 = arith.constant 0 : i32
    %0 = arith.cmpi eq, %arg1, %c0_i32 : i32
    %1 = arith.extui %0 : i1 to i32
    %c0_i32_0 = arith.constant 0 : i32
    %2 = arith.cmpi ne, %1, %c0_i32_0 : i32
    scf.if %2 {
      %cst_26 = arith.constant 0.000000e+00 : f32
      %31 = vector.broadcast %cst_26 : f32 to vector<1x1x256xf32>
      %c0_27 = arith.constant 0 : index
      %c0_28 = arith.constant 0 : index
      %c0_29 = arith.constant 0 : index
      %32 = vector.load %arg7[%c0_27, %c0_28, %c0_29] : memref<1x1x256xf32, #tpu.memory_space<vmem>>, vector<1x1x256xf32>
      tpu.vector_store %arg7[%c0_27, %c0_28, %c0_29], %31 {strides = array<i32>} : memref<1x1x256xf32, #tpu.memory_space<vmem>>, vector<1x1x256xf32>,
      %cst_30 = arith.constant 0.000000e+00 : f32
      %33 = vector.broadcast %cst_30 : f32 to vector<1x1x256xf32>
      %c0_31 = arith.constant 0 : index
      %c0_32 = arith.constant 0 : index
      %c0_33 = arith.constant 0 : index
      %34 = vector.load %arg8[%c0_31, %c0_32, %c0_33] : memref<1x1x256xf32, #tpu.memory_space<vmem>>, vector<1x1x256xf32>
      tpu.vector_store %arg8[%c0_31, %c0_32, %c0_33], %33 {strides = array<i32>} : memref<1x1x256xf32, #tpu.memory_space<vmem>>, vector<1x1x256xf32>,
    } else {
    }
    %c0 = arith.constant 0 : index
    %c0_1 = arith.constant 0 : index
    %3 = vector.load %arg2[%c0, %c0_1] : memref<128x16xbf16, #tpu.memory_space<vmem>>, vector<128x16xbf16>
    %c0_2 = arith.constant 0 : index
    %c0_3 = arith.constant 0 : index
    %4 = vector.load %arg3[%c0_2, %c0_3] : memref<16x256xbf16, #tpu.memory_space<vmem>>, vector<16x256xbf16>
    %cst = arith.constant dense<0.000000e+00> : vector<128x256xf32>
    %5 = tpu.matmul %3, %4, %cst {dimension_numbers = #tpu.dot_dimension_numbers<[1], [0], [0], [1], [0, 0, 1, 1], [], []>} : vector<128x16xbf16>, vector<16x256xbf16>, vector<128x256xf32> -> vector<128x256xf32>
    %c0_4 = arith.constant 0 : index
    %c0_5 = arith.constant 0 : index
    %6 = vector.load %arg4[%c0_4, %c0_5] : memref<1x256xf32, #tpu.memory_space<vmem>>, vector<1x256xf32>
    %7 = vector.broadcast %6 : vector<1x256xf32> to vector<128x256xf32>
    %8 = arith.mulf %5, %7 : vector<128x256xf32>
    %c0_6 = arith.constant 0 : index
    %c0_7 = arith.constant 0 : index
    %9 = vector.load %arg5[%c0_6, %c0_7] : memref<1x256xf32, #tpu.memory_space<vmem>>, vector<1x256xf32>
    %10 = vector.broadcast %9 : vector<1x256xf32> to vector<128x256xf32>
    %11 = arith.addf %8, %10 : vector<128x256xf32>
    %cst_8 = arith.constant 2.000000e-01 : f32
    %12 = vector.broadcast %cst_8 : f32 to vector<128x256xf32>
    %13 = arith.mulf %12, %11 : vector<128x256xf32>
    %14 = arith.maximumf %11, %13 : vector<128x256xf32>
    %15 = arith.truncf %14 : vector<128x256xf32> to vector<128x256xbf16>
    %c0_9 = arith.constant 0 : index
    %c0_10 = arith.constant 0 : index
    %16 = vector.load %arg6[%c0_9, %c0_10] : memref<256x256xbf16, #tpu.memory_space<vmem>>, vector<256x256xbf16>
    %cst_11 = arith.constant dense<0.000000e+00> : vector<128x256xf32>
    %17 = tpu.matmul %15, %16, %cst_11 {dimension_numbers = #tpu.dot_dimension_numbers<[1], [0], [0], [1], [0, 0, 1, 1], [], []>} : vector<128x256xbf16>, vector<256x256xbf16>, vector<128x256xf32> -> vector<128x256xf32>
    %c0_12 = arith.constant 0 : index
    %c0_13 = arith.constant 0 : index
    %c0_14 = arith.constant 0 : index
    %18 = vector.load %arg7[%c0_12, %c0_13, %c0_14] : memref<1x1x256xf32, #tpu.memory_space<vmem>>, vector<1x1x256xf32>
    %cst_15 = arith.constant dense<0.000000e+00> : vector<256xf32>
    %19 = vector.multi_reduction <add>, %17, %cst_15 [0] : vector<128x256xf32> to vector<256xf32>
    %20 = vector.shape_cast %19 : vector<256xf32> to vector<1x256xf32>
    %21 = vector.shape_cast %20 : vector<1x256xf32> to vector<1x1x256xf32>
    %22 = arith.addf %18, %21 : vector<1x1x256xf32>
    %c0_16 = arith.constant 0 : index
    %c0_17 = arith.constant 0 : index
    %c0_18 = arith.constant 0 : index
    %23 = vector.load %arg7[%c0_16, %c0_17, %c0_18] : memref<1x1x256xf32, #tpu.memory_space<vmem>>, vector<1x1x256xf32>
    tpu.vector_store %arg7[%c0_16, %c0_17, %c0_18], %22 {strides = array<i32>} : memref<1x1x256xf32, #tpu.memory_space<vmem>>, vector<1x1x256xf32>,
    %c0_19 = arith.constant 0 : index
    %c0_20 = arith.constant 0 : index
    %c0_21 = arith.constant 0 : index
    %24 = vector.load %arg8[%c0_19, %c0_20, %c0_21] : memref<1x1x256xf32, #tpu.memory_space<vmem>>, vector<1x1x256xf32>
    %25 = arith.mulf %17, %17 : vector<128x256xf32>
    %cst_22 = arith.constant dense<0.000000e+00> : vector<256xf32>
    %26 = vector.multi_reduction <add>, %25, %cst_22 [0] : vector<128x256xf32> to vector<256xf32>
    %27 = vector.shape_cast %26 : vector<256xf32> to vector<1x256xf32>
    %28 = vector.shape_cast %27 : vector<1x256xf32> to vector<1x1x256xf32>
    %29 = arith.addf %24, %28 : vector<1x1x256xf32>
    %c0_23 = arith.constant 0 : index
    %c0_24 = arith.constant 0 : index
    %c0_25 = arith.constant 0 : index
    %30 = vector.load %arg8[%c0_23, %c0_24, %c0_25] : memref<1x1x256xf32, #tpu.memory_space<vmem>>, vector<1x1x256xf32>
    tpu.vector_store %arg8[%c0_23, %c0_24, %c0_25], %29 {strides = array<i32>} : memref<1x1x256xf32, #tpu.memory_space<vmem>>, vector<1x1x256xf32>,
    return
  }
  func.func @transform_0(%arg0: i32, %arg1: i32) -> (i32, i32) {
    %c2_i32 = arith.constant 2 : i32
    %0 = arith.muli %arg0, %c2_i32 : i32
    %1 = arith.addi %0, %arg1 : i32
    %c0_i32 = arith.constant 0 : i32
    %c0_i32_0 = arith.constant 0 : i32
    return %1, %c0_i32 : i32, i32
  }
  func.func @transform_1(%arg0: i32, %arg1: i32) -> (i32, i32) {
    %c0_i32 = arith.constant 0 : i32
    %c0_i32_0 = arith.constant 0 : i32
    %c0_i32_1 = arith.constant 0 : i32
    return %c0_i32, %c0_i32_0 : i32, i32
  }
  func.func @transform_2(%arg0: i32, %arg1: i32) -> (i32, i32) {
    %c0_i32 = arith.constant 0 : i32
    %c0_i32_0 = arith.constant 0 : i32
    %c0_i32_1 = arith.constant 0 : i32
    return %c0_i32, %c0_i32_0 : i32, i32
  }
  func.func @transform_3(%arg0: i32, %arg1: i32) -> (i32, i32) {
    %c0_i32 = arith.constant 0 : i32
    %c0_i32_0 = arith.constant 0 : i32
    %c0_i32_1 = arith.constant 0 : i32
    return %c0_i32, %c0_i32_0 : i32, i32
  }
  func.func @transform_4(%arg0: i32, %arg1: i32) -> (i32, i32) {
    %c0_i32 = arith.constant 0 : i32
    %c0_i32_0 = arith.constant 0 : i32
    %c0_i32_1 = arith.constant 0 : i32
    return %c0_i32, %c0_i32_0 : i32, i32
  }
  func.func @transform_5(%arg0: i32, %arg1: i32) -> (i32, i32, i32) {
    %c0_i32 = arith.constant 0 : i32
    %c0_i32_0 = arith.constant 0 : i32
    %c0_i32_1 = arith.constant 0 : i32
    return %arg0, %c0_i32, %c0_i32_0 : i32, i32, i32
  }
  func.func @transform_6(%arg0: i32, %arg1: i32) -> (i32, i32, i32) {
    %c0_i32 = arith.constant 0 : i32
    %c0_i32_0 = arith.constant 0 : i32
    %c0_i32_1 = arith.constant 0 : i32
    return %arg0, %c0_i32, %c0_i32_0 : i32, i32, i32
  }
}

module attributes {stable_mosaic.version = 11 : i64} {
  func.func @_stats3_kernel(%arg0: i32, %arg1: i32, %arg2: memref<128x16xbf16, #tpu.memory_space<vmem>>, %arg3: memref<16x256xbf16, #tpu.memory_space<vmem>>, %arg4: memref<1x256xf32, #tpu.memory_space<vmem>>, %arg5: memref<1x256xf32, #tpu.memory_space<vmem>>, %arg6: memref<256x256xbf16, #tpu.memory_space<vmem>>, %arg7: memref<1x256xf32, #tpu.memory_space<vmem>>, %arg8: memref<1x256xf32, #tpu.memory_space<vmem>>, %arg9: memref<256x128xbf16, #tpu.memory_space<vmem>>, %arg10: memref<128x128xbf16, #tpu.memory_space<vmem>>, %arg11: memref<1x1x128xf32, #tpu.memory_space<vmem>>, %arg12: memref<1x1x128xf32, #tpu.memory_space<vmem>>) attributes {dimension_semantics = [#tpu.dimension_semantics<parallel>, #tpu.dimension_semantics<arbitrary>], iteration_bounds = array<i64: 2, 2>, scalar_prefetch = 0 : i64, scratch_operands = 0 : i64, tpu.core_type = #tpu.core_type<tc>, window_params = [{transform_indices = @transform_0, window_bounds = array<i64: 128, 16>}, {pipeline_mode = #tpu.pipeline_mode<synchronous>, transform_indices = @transform_1, window_bounds = array<i64: 16, 256>}, {pipeline_mode = #tpu.pipeline_mode<synchronous>, transform_indices = @transform_2, window_bounds = array<i64: 1, 256>}, {pipeline_mode = #tpu.pipeline_mode<synchronous>, transform_indices = @transform_3, window_bounds = array<i64: 1, 256>}, {pipeline_mode = #tpu.pipeline_mode<synchronous>, transform_indices = @transform_4, window_bounds = array<i64: 256, 256>}, {pipeline_mode = #tpu.pipeline_mode<synchronous>, transform_indices = @transform_5, window_bounds = array<i64: 1, 256>}, {pipeline_mode = #tpu.pipeline_mode<synchronous>, transform_indices = @transform_6, window_bounds = array<i64: 1, 256>}, {pipeline_mode = #tpu.pipeline_mode<synchronous>, transform_indices = @transform_7, window_bounds = array<i64: 256, 128>}, {transform_indices = @transform_8, window_bounds = array<i64: 128, 128>}, {transform_indices = @transform_9, window_bounds = array<i64: 1, 1, 128>}, {transform_indices = @transform_10, window_bounds = array<i64: 1, 1, 128>}]} {
    %c0_i32 = arith.constant 0 : i32
    %0 = arith.cmpi eq, %arg1, %c0_i32 : i32
    %1 = arith.extui %0 : i1 to i32
    %c0_i32_0 = arith.constant 0 : i32
    %2 = arith.cmpi ne, %1, %c0_i32_0 : i32
    scf.if %2 {
      %cst_36 = arith.constant 0.000000e+00 : f32
      %45 = vector.broadcast %cst_36 : f32 to vector<1x1x128xf32>
      %c0_37 = arith.constant 0 : index
      %c0_38 = arith.constant 0 : index
      %c0_39 = arith.constant 0 : index
      %46 = vector.load %arg11[%c0_37, %c0_38, %c0_39] : memref<1x1x128xf32, #tpu.memory_space<vmem>>, vector<1x1x128xf32>
      tpu.vector_store %arg11[%c0_37, %c0_38, %c0_39], %45 {strides = array<i32>} : memref<1x1x128xf32, #tpu.memory_space<vmem>>, vector<1x1x128xf32>,
      %cst_40 = arith.constant 0.000000e+00 : f32
      %47 = vector.broadcast %cst_40 : f32 to vector<1x1x128xf32>
      %c0_41 = arith.constant 0 : index
      %c0_42 = arith.constant 0 : index
      %c0_43 = arith.constant 0 : index
      %48 = vector.load %arg12[%c0_41, %c0_42, %c0_43] : memref<1x1x128xf32, #tpu.memory_space<vmem>>, vector<1x1x128xf32>
      tpu.vector_store %arg12[%c0_41, %c0_42, %c0_43], %47 {strides = array<i32>} : memref<1x1x128xf32, #tpu.memory_space<vmem>>, vector<1x1x128xf32>,
    } else {
    }
    %c0 = arith.constant 0 : index
    %c0_1 = arith.constant 0 : index
    %3 = vector.load %arg2[%c0, %c0_1] : memref<128x16xbf16, #tpu.memory_space<vmem>>, vector<128x16xbf16>
    %c0_2 = arith.constant 0 : index
    %c0_3 = arith.constant 0 : index
    %4 = vector.load %arg3[%c0_2, %c0_3] : memref<16x256xbf16, #tpu.memory_space<vmem>>, vector<16x256xbf16>
    %cst = arith.constant dense<0.000000e+00> : vector<128x256xf32>
    %5 = tpu.matmul %3, %4, %cst {dimension_numbers = #tpu.dot_dimension_numbers<[1], [0], [0], [1], [0, 0, 1, 1], [], []>} : vector<128x16xbf16>, vector<16x256xbf16>, vector<128x256xf32> -> vector<128x256xf32>
    %c0_4 = arith.constant 0 : index
    %c0_5 = arith.constant 0 : index
    %6 = vector.load %arg4[%c0_4, %c0_5] : memref<1x256xf32, #tpu.memory_space<vmem>>, vector<1x256xf32>
    %7 = vector.broadcast %6 : vector<1x256xf32> to vector<128x256xf32>
    %8 = arith.mulf %5, %7 : vector<128x256xf32>
    %c0_6 = arith.constant 0 : index
    %c0_7 = arith.constant 0 : index
    %9 = vector.load %arg5[%c0_6, %c0_7] : memref<1x256xf32, #tpu.memory_space<vmem>>, vector<1x256xf32>
    %10 = vector.broadcast %9 : vector<1x256xf32> to vector<128x256xf32>
    %11 = arith.addf %8, %10 : vector<128x256xf32>
    %cst_8 = arith.constant 2.000000e-01 : f32
    %12 = vector.broadcast %cst_8 : f32 to vector<128x256xf32>
    %13 = arith.mulf %12, %11 : vector<128x256xf32>
    %14 = arith.maximumf %11, %13 : vector<128x256xf32>
    %15 = arith.truncf %14 : vector<128x256xf32> to vector<128x256xbf16>
    %c0_9 = arith.constant 0 : index
    %c0_10 = arith.constant 0 : index
    %16 = vector.load %arg6[%c0_9, %c0_10] : memref<256x256xbf16, #tpu.memory_space<vmem>>, vector<256x256xbf16>
    %cst_11 = arith.constant dense<0.000000e+00> : vector<128x256xf32>
    %17 = tpu.matmul %15, %16, %cst_11 {dimension_numbers = #tpu.dot_dimension_numbers<[1], [0], [0], [1], [0, 0, 1, 1], [], []>} : vector<128x256xbf16>, vector<256x256xbf16>, vector<128x256xf32> -> vector<128x256xf32>
    %c0_12 = arith.constant 0 : index
    %c0_13 = arith.constant 0 : index
    %18 = vector.load %arg7[%c0_12, %c0_13] : memref<1x256xf32, #tpu.memory_space<vmem>>, vector<1x256xf32>
    %19 = vector.broadcast %18 : vector<1x256xf32> to vector<128x256xf32>
    %20 = arith.mulf %17, %19 : vector<128x256xf32>
    %c0_14 = arith.constant 0 : index
    %c0_15 = arith.constant 0 : index
    %21 = vector.load %arg8[%c0_14, %c0_15] : memref<1x256xf32, #tpu.memory_space<vmem>>, vector<1x256xf32>
    %22 = vector.broadcast %21 : vector<1x256xf32> to vector<128x256xf32>
    %23 = arith.addf %20, %22 : vector<128x256xf32>
    %cst_16 = arith.constant 2.000000e-01 : f32
    %24 = vector.broadcast %cst_16 : f32 to vector<128x256xf32>
    %25 = arith.mulf %24, %23 : vector<128x256xf32>
    %26 = arith.maximumf %23, %25 : vector<128x256xf32>
    %27 = arith.truncf %26 : vector<128x256xf32> to vector<128x256xbf16>
    %c0_17 = arith.constant 0 : index
    %c0_18 = arith.constant 0 : index
    %28 = vector.load %arg9[%c0_17, %c0_18] : memref<256x128xbf16, #tpu.memory_space<vmem>>, vector<256x128xbf16>
    %cst_19 = arith.constant dense<0.000000e+00> : vector<128x128xf32>
    %29 = tpu.matmul %27, %28, %cst_19 {dimension_numbers = #tpu.dot_dimension_numbers<[1], [0], [0], [1], [0, 0, 1, 1], [], []>} : vector<128x256xbf16>, vector<256x128xbf16>, vector<128x128xf32> -> vector<128x128xf32>
    %c0_20 = arith.constant 0 : index
    %c0_21 = arith.constant 0 : index
    %c0_22 = arith.constant 0 : index
    %30 = vector.load %arg11[%c0_20, %c0_21, %c0_22] : memref<1x1x128xf32, #tpu.memory_space<vmem>>, vector<1x1x128xf32>
    %cst_23 = arith.constant dense<0.000000e+00> : vector<128xf32>
    %31 = vector.multi_reduction <add>, %29, %cst_23 [0] : vector<128x128xf32> to vector<128xf32>
    %32 = vector.shape_cast %31 : vector<128xf32> to vector<1x128xf32>
    %33 = vector.shape_cast %32 : vector<1x128xf32> to vector<1x1x128xf32>
    %34 = arith.addf %30, %33 : vector<1x1x128xf32>
    %c0_24 = arith.constant 0 : index
    %c0_25 = arith.constant 0 : index
    %c0_26 = arith.constant 0 : index
    %35 = vector.load %arg11[%c0_24, %c0_25, %c0_26] : memref<1x1x128xf32, #tpu.memory_space<vmem>>, vector<1x1x128xf32>
    tpu.vector_store %arg11[%c0_24, %c0_25, %c0_26], %34 {strides = array<i32>} : memref<1x1x128xf32, #tpu.memory_space<vmem>>, vector<1x1x128xf32>,
    %c0_27 = arith.constant 0 : index
    %c0_28 = arith.constant 0 : index
    %c0_29 = arith.constant 0 : index
    %36 = vector.load %arg12[%c0_27, %c0_28, %c0_29] : memref<1x1x128xf32, #tpu.memory_space<vmem>>, vector<1x1x128xf32>
    %37 = arith.mulf %29, %29 : vector<128x128xf32>
    %cst_30 = arith.constant dense<0.000000e+00> : vector<128xf32>
    %38 = vector.multi_reduction <add>, %37, %cst_30 [0] : vector<128x128xf32> to vector<128xf32>
    %39 = vector.shape_cast %38 : vector<128xf32> to vector<1x128xf32>
    %40 = vector.shape_cast %39 : vector<1x128xf32> to vector<1x1x128xf32>
    %41 = arith.addf %36, %40 : vector<1x1x128xf32>
    %c0_31 = arith.constant 0 : index
    %c0_32 = arith.constant 0 : index
    %c0_33 = arith.constant 0 : index
    %42 = vector.load %arg12[%c0_31, %c0_32, %c0_33] : memref<1x1x128xf32, #tpu.memory_space<vmem>>, vector<1x1x128xf32>
    tpu.vector_store %arg12[%c0_31, %c0_32, %c0_33], %41 {strides = array<i32>} : memref<1x1x128xf32, #tpu.memory_space<vmem>>, vector<1x1x128xf32>,
    %43 = arith.truncf %29 : vector<128x128xf32> to vector<128x128xbf16>
    %c0_34 = arith.constant 0 : index
    %c0_35 = arith.constant 0 : index
    %44 = vector.load %arg10[%c0_34, %c0_35] : memref<128x128xbf16, #tpu.memory_space<vmem>>, vector<128x128xbf16>
    tpu.vector_store %arg10[%c0_34, %c0_35], %43 {strides = array<i32>} : memref<128x128xbf16, #tpu.memory_space<vmem>>, vector<128x128xbf16>,
    return
  }
  func.func @transform_0(%arg0: i32, %arg1: i32) -> (i32, i32) {
    %c2_i32 = arith.constant 2 : i32
    %0 = arith.muli %arg0, %c2_i32 : i32
    %1 = arith.addi %0, %arg1 : i32
    %c0_i32 = arith.constant 0 : i32
    %c0_i32_0 = arith.constant 0 : i32
    return %1, %c0_i32 : i32, i32
  }
  func.func @transform_1(%arg0: i32, %arg1: i32) -> (i32, i32) {
    %c0_i32 = arith.constant 0 : i32
    %c0_i32_0 = arith.constant 0 : i32
    %c0_i32_1 = arith.constant 0 : i32
    return %c0_i32, %c0_i32_0 : i32, i32
  }
  func.func @transform_2(%arg0: i32, %arg1: i32) -> (i32, i32) {
    %c0_i32 = arith.constant 0 : i32
    %c0_i32_0 = arith.constant 0 : i32
    %c0_i32_1 = arith.constant 0 : i32
    return %c0_i32, %c0_i32_0 : i32, i32
  }
  func.func @transform_3(%arg0: i32, %arg1: i32) -> (i32, i32) {
    %c0_i32 = arith.constant 0 : i32
    %c0_i32_0 = arith.constant 0 : i32
    %c0_i32_1 = arith.constant 0 : i32
    return %c0_i32, %c0_i32_0 : i32, i32
  }
  func.func @transform_4(%arg0: i32, %arg1: i32) -> (i32, i32) {
    %c0_i32 = arith.constant 0 : i32
    %c0_i32_0 = arith.constant 0 : i32
    %c0_i32_1 = arith.constant 0 : i32
    return %c0_i32, %c0_i32_0 : i32, i32
  }
  func.func @transform_5(%arg0: i32, %arg1: i32) -> (i32, i32) {
    %c0_i32 = arith.constant 0 : i32
    %c0_i32_0 = arith.constant 0 : i32
    %c0_i32_1 = arith.constant 0 : i32
    return %c0_i32, %c0_i32_0 : i32, i32
  }
  func.func @transform_6(%arg0: i32, %arg1: i32) -> (i32, i32) {
    %c0_i32 = arith.constant 0 : i32
    %c0_i32_0 = arith.constant 0 : i32
    %c0_i32_1 = arith.constant 0 : i32
    return %c0_i32, %c0_i32_0 : i32, i32
  }
  func.func @transform_7(%arg0: i32, %arg1: i32) -> (i32, i32) {
    %c0_i32 = arith.constant 0 : i32
    %c0_i32_0 = arith.constant 0 : i32
    %c0_i32_1 = arith.constant 0 : i32
    return %c0_i32, %c0_i32_0 : i32, i32
  }
  func.func @transform_8(%arg0: i32, %arg1: i32) -> (i32, i32) {
    %c2_i32 = arith.constant 2 : i32
    %0 = arith.muli %arg0, %c2_i32 : i32
    %1 = arith.addi %0, %arg1 : i32
    %c0_i32 = arith.constant 0 : i32
    %c0_i32_0 = arith.constant 0 : i32
    return %1, %c0_i32 : i32, i32
  }
  func.func @transform_9(%arg0: i32, %arg1: i32) -> (i32, i32, i32) {
    %c0_i32 = arith.constant 0 : i32
    %c0_i32_0 = arith.constant 0 : i32
    %c0_i32_1 = arith.constant 0 : i32
    return %arg0, %c0_i32, %c0_i32_0 : i32, i32, i32
  }
  func.func @transform_10(%arg0: i32, %arg1: i32) -> (i32, i32, i32) {
    %c0_i32 = arith.constant 0 : i32
    %c0_i32_0 = arith.constant 0 : i32
    %c0_i32_1 = arith.constant 0 : i32
    return %arg0, %c0_i32, %c0_i32_0 : i32, i32, i32
  }
}

module attributes {stable_mosaic.version = 11 : i64} {
  func.func @_final_kernel(%arg0: i32, %arg1: memref<128x128xbf16, #tpu.memory_space<vmem>>, %arg2: memref<1x128xf32, #tpu.memory_space<vmem>>, %arg3: memref<1x128xf32, #tpu.memory_space<vmem>>, %arg4: memref<128x3xbf16, #tpu.memory_space<vmem>>, %arg5: memref<128x3xf32, #tpu.memory_space<vmem>>) attributes {dimension_semantics = [#tpu.dimension_semantics<parallel>], iteration_bounds = array<i64: 4>, scalar_prefetch = 0 : i64, scratch_operands = 0 : i64, tpu.core_type = #tpu.core_type<tc>, window_params = [{transform_indices = @transform_0, window_bounds = array<i64: 128, 128>}, {pipeline_mode = #tpu.pipeline_mode<synchronous>, transform_indices = @transform_1, window_bounds = array<i64: 1, 128>}, {pipeline_mode = #tpu.pipeline_mode<synchronous>, transform_indices = @transform_2, window_bounds = array<i64: 1, 128>}, {pipeline_mode = #tpu.pipeline_mode<synchronous>, transform_indices = @transform_3, window_bounds = array<i64: 128, 3>}, {transform_indices = @transform_4, window_bounds = array<i64: 128, 3>}]} {
    %c0 = arith.constant 0 : index
    %c0_0 = arith.constant 0 : index
    %0 = vector.load %arg1[%c0, %c0_0] : memref<128x128xbf16, #tpu.memory_space<vmem>>, vector<128x128xbf16>
    %1 = arith.extf %0 : vector<128x128xbf16> to vector<128x128xf32>
    %c0_1 = arith.constant 0 : index
    %c0_2 = arith.constant 0 : index
    %2 = vector.load %arg2[%c0_1, %c0_2] : memref<1x128xf32, #tpu.memory_space<vmem>>, vector<1x128xf32>
    %3 = vector.broadcast %2 : vector<1x128xf32> to vector<128x128xf32>
    %4 = arith.mulf %1, %3 : vector<128x128xf32>
    %c0_3 = arith.constant 0 : index
    %c0_4 = arith.constant 0 : index
    %5 = vector.load %arg3[%c0_3, %c0_4] : memref<1x128xf32, #tpu.memory_space<vmem>>, vector<1x128xf32>
    %6 = vector.broadcast %5 : vector<1x128xf32> to vector<128x128xf32>
    %7 = arith.addf %4, %6 : vector<128x128xf32>
    %cst = arith.constant 2.000000e-01 : f32
    %8 = vector.broadcast %cst : f32 to vector<128x128xf32>
    %9 = arith.mulf %8, %7 : vector<128x128xf32>
    %10 = arith.maximumf %7, %9 : vector<128x128xf32>
    %11 = arith.truncf %10 : vector<128x128xf32> to vector<128x128xbf16>
    %c0_5 = arith.constant 0 : index
    %c0_6 = arith.constant 0 : index
    %12 = vector.load %arg4[%c0_5, %c0_6] : memref<128x3xbf16, #tpu.memory_space<vmem>>, vector<128x3xbf16>
    %cst_7 = arith.constant dense<0.000000e+00> : vector<128x3xf32>
    %13 = tpu.matmul %11, %12, %cst_7 {dimension_numbers = #tpu.dot_dimension_numbers<[1], [0], [0], [1], [0, 0, 1, 1], [], []>} : vector<128x128xbf16>, vector<128x3xbf16>, vector<128x3xf32> -> vector<128x3xf32>
    %c0_8 = arith.constant 0 : index
    %c0_9 = arith.constant 0 : index
    %14 = vector.load %arg5[%c0_8, %c0_9] : memref<128x3xf32, #tpu.memory_space<vmem>>, vector<128x3xf32>
    tpu.vector_store %arg5[%c0_8, %c0_9], %13 {strides = array<i32>} : memref<128x3xf32, #tpu.memory_space<vmem>>, vector<128x3xf32>,
    return
  }
  func.func @transform_0(%arg0: i32) -> (i32, i32) {
    %c0_i32 = arith.constant 0 : i32
    %c0_i32_0 = arith.constant 0 : i32
    return %arg0, %c0_i32 : i32, i32
  }
  func.func @transform_1(%arg0: i32) -> (i32, i32) {
    %c0_i32 = arith.constant 0 : i32
    %c0_i32_0 = arith.constant 0 : i32
    %c0_i32_1 = arith.constant 0 : i32
    return %c0_i32, %c0_i32_0 : i32, i32
  }
  func.func @transform_2(%arg0: i32) -> (i32, i32) {
    %c0_i32 = arith.constant 0 : i32
    %c0_i32_0 = arith.constant 0 : i32
    %c0_i32_1 = arith.constant 0 : i32
    return %c0_i32, %c0_i32_0 : i32, i32
  }
  func.func @transform_3(%arg0: i32) -> (i32, i32) {
    %c0_i32 = arith.constant 0 : i32
    %c0_i32_0 = arith.constant 0 : i32
    %c0_i32_1 = arith.constant 0 : i32
    return %c0_i32, %c0_i32_0 : i32, i32
  }
  func.func @transform_4(%arg0: i32) -> (i32, i32) {
    %c0_i32 = arith.constant 0 : i32
    %c0_i32_0 = arith.constant 0 : i32
    return %arg0, %c0_i32 : i32, i32
  }
}

</mosaic_0001>

<llo_original>
// kernel: region_reconstruction.4
$region0: #{region_reconstruction.4}
  #allocation0 [shape = 'u32[]', space=smem, size = 0x4, offset = 0x4, fixed_abs, tag = 'smem constant byte address 0x4 - core index']
  #allocation1 [shape = 'u32[144,128]{1,0:T(1,128)}', space=vmem, size = 0x12000, scoped, tag = 'internal scratch']
  %s0 = inlined_call_operand.vmem [shape: bf16[512,16], index: 0, kind: input, shape index: {}]
  %s1 = inlined_call_operand.vmem [shape: bf16[16,256], index: 1, kind: input, shape index: {}]
  %s2 = inlined_call_operand.vmem [shape: f32[2,1,256], index: 2, kind: output, shape index: {0}]
  %s3 = inlined_call_operand.vmem [shape: f32[2,1,256], index: 3, kind: output, shape index: {1}]
  %4 = xla_tuple %s2, %s3
  %s5 = sld [smem:[#allocation0]]
  $region53: #{region_reconstruction.4} parent=0
    _
  %s7 = ssub.s32 1, %s5
  %s8 = scalar_select 0, %s7, %s5
  loop: start=0, step=1, limit=6
  $region2: #{region_reconstruction.4} parent=0 // loop_pre_header
    _
  $region3: #{region_reconstruction.4} parent=0 // loop_header
    %s10 = sphi 0, %s14
    %p11 = scmp.ge.s32.totalorder %s10, 6
    %s17 = sphi 0, %s29
    %s18 = sphi 0, %s25
    %s19 = sphi 0, %s17
    %s20 = sphi 0, %s18
    %s21 = sphi 0, %s19
    %s22 = sphi 0, %s20
    %s36 = sphi 0, %s38
    %s39 = sphi 0, %s36
    %s40 = sphi 0, %s39
    %s56 = sphi 0, %s40
    %s60 = sphi 0, %s60
    %s62 = sphi 0, %s60
    %s63 = sphi 0, %s62
    %s77 = sphi 0, %s63
    %s83 = sphi 0, %s85
    %s86 = sphi 0, %s83
    %s87 = sphi 0, %s86
    %s103 = sphi 0, %s87
    %s109 = sphi 0, %s111
    %s112 = sphi 0, %s109
    %s113 = sphi 0, %s112
    %s129 = sphi 0, %s113
  $region4: #{region_reconstruction.4} parent=0 // loop_header_branch
    %13 = sbr.rel (%p11) target = $region8
  $region5: #{region_reconstruction.4} parent=0 // loop_body
    %s15 = ssub.s32 %s10, 1
    %s16 = ssub.s32 %s10, 2
    %s23 = sadd.s32 1, %s18
    %p24 = scmp.ge.s32.totalorder %s23, 2
    %s25 = scalar_select %p24, 0, %s23
    %s26 = sadd.s32 1, %s17
    %s27 = scalar_select %p24, %s26, %s17
    %p28 = scmp.ge.s32.totalorder %s27, 2
    %s29 = scalar_select %p28, 0, %s27
    %s30 = smul.u32 %s17, 2
    %s31 = sadd.s32 %s30, %s18
    %s32 = smul.u32 %s29, 2
    %s33 = sadd.s32 %s32, %s25
    %s34 = ssub.s32 %s31, %s33
    %p35 = scmp.eq.s32.totalorder %s34, 0
    %s37 = sadd.s32 %s36, 1
    %s38 = scalar_select %p35, %s36, %s37
    %p41 = pneg %p35
    %p42 = scmp.eq.s32.totalorder %s10, 3
    %p43 = por %p41, %p42
    %p44 = scmp.ne.s32.totalorder %s36, %s39
    %p45 = scmp.eq.s32.totalorder %s10, 0
    %p46 = por %p44, %p45
    %p47 = scmp.ne.s32.totalorder %s36, %s39
    %p48 = scmp.eq.s32.totalorder %s15, 3
    %p49 = por %p47, %p48
    %p50 = scmp.ne.s32.totalorder %s39, %s40
    %p51 = scmp.eq.s32.totalorder %s15, 0
    %p52 = por %p50, %p51
    %p53 = scmp.ne.s32.totalorder %s39, %s40
    %p54 = scmp.eq.s32.totalorder %s16, 3
    %p55 = por %p53, %p54
    %p57 = scmp.ne.s32.totalorder %s40, %s56
    %p58 = scmp.eq.s32.totalorder %s16, 0
    %p59 = por %p57, %p58
    %s61 = sadd.s32 %s60, 1
    %p64 = scmp.eq.s32.totalorder %s10, 3
    %p65 = scmp.ne.s32.totalorder %s60, %s62
    %p66 = scmp.eq.s32.totalorder %s10, 0
    %p67 = por %p65, %p66
    %p68 = scmp.ne.s32.totalorder %s60, %s62
    %p69 = scmp.eq.s32.totalorder %s15, 3
    %p70 = por %p68, %p69
    %p71 = scmp.ne.s32.totalorder %s62, %s63
    %p72 = scmp.eq.s32.totalorder %s15, 0
    %p73 = por %p71, %p72
    %p74 = scmp.ne.s32.totalorder %s62, %s63
    %p75 = scmp.eq.s32.totalorder %s16, 3
    %p76 = por %p74, %p75
    %p78 = scmp.ne.s32.totalorder %s63, %s77
    %p79 = scmp.eq.s32.totalorder %s16, 0
    %p80 = por %p78, %p79
    %s81 = ssub.s32 %s17, %s29
    %p82 = scmp.eq.s32.totalorder %s81, 0
    %s84 = sadd.s32 %s83, 1
    %s85 = scalar_select %p82, %s83, %s84
    %p88 = pneg %p82
    %p89 = scmp.eq.s32.totalorder %s10, 3
    %p90 = por %p88, %p89
    %p91 = scmp.ne.s32.totalorder %s83, %s86
    %p92 = scmp.eq.s32.totalorder %s10, 0
    %p93 = por %p91, %p92
    %p94 = scmp.ne.s32.totalorder %s83, %s86
    %p95 = scmp.eq.s32.totalorder %s15, 3
    %p96 = por %p94, %p95
    %p97 = scmp.ne.s32.totalorder %s86, %s87
    %p98 = scmp.eq.s32.totalorder %s15, 0
    %p99 = por %p97, %p98
    %p100 = scmp.ne.s32.totalorder %s86, %s87
    %p101 = scmp.eq.s32.totalorder %s16, 3
    %p102 = por %p100, %p101
    %p104 = scmp.ne.s32.totalorder %s87, %s103
    %p105 = scmp.eq.s32.totalorder %s16, 0
    %p106 = por %p104, %p105
    %s107 = ssub.s32 %s17, %s29
    %p108 = scmp.eq.s32.totalorder %s107, 0
    %s110 = sadd.s32 %s109, 1
    %s111 = scalar_select %p108, %s109, %s110
    %p114 = pneg %p108
    %p115 = scmp.eq.s32.totalorder %s10, 3
    %p116 = por %p114, %p115
    %p117 = scmp.ne.s32.totalorder %s109, %s112
    %p118 = scmp.eq.s32.totalorder %s10, 0
    %p119 = por %p117, %p118
    %p120 = scmp.ne.s32.totalorder %s109, %s112
    %p121 = scmp.eq.s32.totalorder %s15, 3
    %p122 = por %p120, %p121
    %p123 = scmp.ne.s32.totalorder %s112, %s113
    %p124 = scmp.eq.s32.totalorder %s15, 0
    %p125 = por %p123, %p124
    %p126 = scmp.ne.s32.totalorder %s112, %s113
    %p127 = scmp.eq.s32.totalorder %s16, 3
    %p128 = por %p126, %p127
    %p130 = scmp.ne.s32.totalorder %s113, %s129
    %p131 = scmp.eq.s32.totalorder %s16, 0
    %p132 = por %p130, %p131
    %p133 = scmp.le.s32.totalorder 1, %s10
    %p134 = scmp.lt.s32.totalorder %s10, 5
    %p135 = pnand %p133, %p134
    %p136 = pneg %p135
    // Predicated region
    $region9: #{region_reconstruction.4} parent=5 // pred_check
      _
    $region10: #{region_reconstruction.4} parent=5 // pred_check_branch
      %138 = sbr.rel (%p135) target = $region12
    $region11: #{region_reconstruction.4} parent=5 // pred_region
      %s139 = ssub.s32 %s10, 1
      // Predicated region
      $region13: #{region_reconstruction.4} parent=11 // pred_check
        %p140 = pneg %p73
      $region14: #{region_reconstruction.4} parent=11 // pred_check_branch
        %142 = sbr.rel (%p140) target = $region16
      $region15: #{region_reconstruction.4} parent=11 // pred_region
        _
      $region16: #{region_reconstruction.4} parent=11 // pred_fallthru
        _
    $region12: #{region_reconstruction.4} parent=5 // pred_fallthru
      _
    %p143 = scmp.lt.s32.totalorder %s10, 4
    // Predicated region
    $region17: #{region_reconstruction.4} parent=5 // pred_check
      %p144 = pneg %p143
    $region18: #{region_reconstruction.4} parent=5 // pred_check_branch
      %146 = sbr.rel (%p144) target = $region20
    $region19: #{region_reconstruction.4} parent=5 // pred_region
      // Predicated region
      $region21: #{region_reconstruction.4} parent=19 // pred_check
        %p147 = pneg %p46
      $region22: #{region_reconstruction.4} parent=19 // pred_check_branch
        %149 = sbr.rel (%p147) target = $region24
      $region23: #{region_reconstruction.4} parent=19 // pred_region
        %s150 = smul.u32 %s17, 2
        %s151 = sadd.s32 %s150, %s18
        %s152 = smul.u32 16, %s151
        %p153 = scmp.lt.s32.totalorder %s152, 63
        %s154 = scalar_select %p153, %s152, 63
        %s155 = smul.addr %s154, 4
        %s156 = scalar_lea.vmem %s0, %s155
        %s157 = smul.u32 %s17, 2
        %s158 = sadd.s32 %s157, %s18
        %s159 = smul.u32 16, %s158
      $region24: #{region_reconstruction.4} parent=19 // pred_fallthru
        _
    $region20: #{region_reconstruction.4} parent=5 // pred_fallthru
      _
    %p160 = scmp.le.s32.totalorder 1, %s10
    %p161 = scmp.lt.s32.totalorder %s10, 5
    %p162 = pnand %p160, %p161
    %p163 = pneg %p162
    // Predicated region
    $region25: #{region_reconstruction.4} parent=5 // pred_check
      _
    $region26: #{region_reconstruction.4} parent=5 // pred_check_branch
      %165 = sbr.rel (%p162) target = $region28
    $region27: #{region_reconstruction.4} parent=5 // pred_region
      %s166 = ssub.s32 %s10, 1
      %s167 = smul.u32 %s19, 2
      %s168 = sadd.s32 %s167, %s20
      %s169 = smul.u32 16, %s168
      %p170 = scmp.lt.s32.totalorder %s169, 63
      %s171 = scalar_select %p170, %s169, 63
      %s172 = smul.addr %s171, 4
      %s173 = scalar_lea.vmem %s0, %s172
      %p174 = pneg %p52
      %p175 = pneg %p49
      %p176 = pneg %p73
      %p177 = pneg %p70
      %p178 = pneg %p99
      %p179 = pneg %p96
      %p180 = scmp.lt.s32.totalorder %s19, 1
      %s181 = scalar_select %p180, %s19, 1
      %s182 = smul.addr %s181, 2
      %s183 = scalar_lea.vmem %s2, %s182
      %p184 = pneg %p125
      %p185 = pneg %p122
      %p186 = scmp.lt.s32.totalorder %s19, 1
      %s187 = scalar_select %p186, %s19, 1
      %s188 = smul.addr %s187, 2
      %s189 = scalar_lea.vmem %s3, %s188
      %s190 = smul.u32 %s19, 2
      %s191 = sadd.s32 %s190, %s20
      %s192 = smul.u32 16, %s191
      %p193 = scmp.lt.s32.totalorder %s192, 63
      %s194 = scalar_select %p193, %s192, 63
      %s195 = smul.addr %s194, 4
      %s196 = scalar_lea.vmem %s0, %s195
      %s197 = smul.u32 %s19, 2
      %s198 = sadd.s32 %s197, %s20
      %s199 = smul.u32 16, %s198
      %p200 = scmp.lt.s32.totalorder %s19, 1
      %s201 = scalar_select %p200, %s19, 1
      %s202 = smul.addr %s201, 2
      %s203 = scalar_lea.vmem %s2, %s202
      %p204 = scmp.lt.s32.totalorder %s19, 1
      %s205 = scalar_select %p204, %s19, 1
      %s206 = smul.addr %s205, 2
      %s207 = scalar_lea.vmem %s3, %s206
      %p209 = scmp.eq.s32.totalorder %s20, 0
      // Predicated region
      $region29: #{region_reconstruction.4} parent=27 // pred_check
        %p210 = pneg %p209
      $region30: #{region_reconstruction.4} parent=27 // pred_check_branch
        %212 = sbr.rel (%p210) target = $region32
      $region31: #{region_reconstruction.4} parent=27 // pred_region
        %v213 = vlaneseq
        %vm214 = vcmp.ge.s32.totalorder %v213, 0
        %vm215 = vcmp.lt.s32.totalorder %v213, 256
        %vm216 = vmand %vm214, %vm215
        %217 = vst.msk [vmem:[%s203] sm:$0x3] %vm216, 0.0
        %218 = vst.msk [vmem:[%s207] sm:$0x3] %vm216, 0.0
      $region32: #{region_reconstruction.4} parent=27 // pred_fallthru
        _
      %v219 = vld [vmem:[%s196] sm:$0xf]
      %v220 = vld [vmem:[%s196 + $0x4] sm:$0xf]
      %v221 = vld [vmem:[%s196 + $0x8] sm:$0xf]
      %v222 = vld [vmem:[%s196 + $0xc] sm:$0xf]
      %v223 = vld [vmem:[%s196 + $0x10] sm:$0xf]
      %v224 = vld [vmem:[%s196 + $0x14] sm:$0xf]
      %v225 = vld [vmem:[%s196 + $0x18] sm:$0xf]
      %v226 = vld [vmem:[%s196 + $0x1c] sm:$0xf]
      %v227 = vld [vmem:[%s196 + $0x20] sm:$0xf]
      %v228 = vld [vmem:[%s196 + $0x24] sm:$0xf]
      %v229 = vld [vmem:[%s196 + $0x28] sm:$0xf]
      %v230 = vld [vmem:[%s196 + $0x2c] sm:$0xf]
      %v231 = vld [vmem:[%s196 + $0x30] sm:$0xf]
      %v232 = vld [vmem:[%s196 + $0x34] sm:$0xf]
      %v233 = vld [vmem:[%s196 + $0x38] sm:$0xf]
      %v234 = vld [vmem:[%s196 + $0x3c] sm:$0xf]
      %v235 = vld [vmem:[%s1] sm:$0xff]
      %v236 = vld [vmem:[%s1 + $0x8] sm:$0xff]
      %v253 = vunpack.c.l.b16 %v219
      %v254 = vunpack.c.l.b16 %v220
      %v255 = vunpack.c.l.b16 %v221
      %v256 = vunpack.c.l.b16 %v222
      %v257 = vunpack.c.l.b16 %v223
      %v258 = vunpack.c.l.b16 %v224
      %v259 = vunpack.c.l.b16 %v225
      %v260 = vunpack.c.l.b16 %v226
      %v261 = vunpack.c.l.b16 %v227
      %v262 = vunpack.c.l.b16 %v228
      %v263 = vunpack.c.l.b16 %v229
      %v264 = vunpack.c.l.b16 %v230
      %v265 = vunpack.c.l.b16 %v231
      %v266 = vunpack.c.l.b16 %v232
      %v267 = vunpack.c.l.b16 %v233
      %v268 = vunpack.c.l.b16 %v234
      %v269 = vpack.c.b16 %v254, %v253
      %v270 = vpack.c.b16 %v256, %v255
      %v271 = vpack.c.b16 %v258, %v257
      %v272 = vpack.c.b16 %v260, %v259
      %v273 = vpack.c.b16 %v262, %v261
      %v274 = vpack.c.b16 %v264, %v263
      %v275 = vpack.c.b16 %v266, %v265
      %v276 = vpack.c.b16 %v268, %v267
      %v279 = vunpack.c.l.b16 %v235
      %v280 = vunpack.c.h.b16 %v235
      %v281 = vunpack.c.l.b16 %v236
      %v282 = vunpack.c.h.b16 %v236
      %v283 = vpack.c.b16 %v281, %v279
      %v284 = vpack.c.b16 %v282, %v280
      %vm287 = vcmask 130048
      %v289 = vsel %vm287, %v269, 0
      %v292 = vsel %vm287, %v270, 0
      %v295 = vsel %vm287, %v271, 0
      %v298 = vsel %vm287, %v272, 0
      %v301 = vsel %vm287, %v273, 0
      %v304 = vsel %vm287, %v274, 0
      %v307 = vsel %vm287, %v275, 0
      %v310 = vsel %vm287, %v276, 0
      %312 = vmatprep.subr.bf16.mxu0 %v284
      %313 = vmatpush1.bf16.msra.mxu0 %v283
      %314 = vmatprep.subr.bf16.mxu0 0
      %315 = vmatpush1.bf16.msra.mxu0 0
      %316 = vmatprep.subr.bf16.mxu0 0
      %317 = vmatpush1.bf16.msra.mxu0 0
      %318 = vmatprep.subr.bf16.mxu0 0
      %319 = vmatpush1.bf16.msra.mxu0 0
      %320 = vmatprep.subr.bf16.mxu0 0
      %321 = vmatpush1.bf16.msra.mxu0 0
      %322 = vmatprep.subr.bf16.mxu0 0
      %323 = vmatpush1.bf16.msra.mxu0 0
      %324 = vmatprep.subr.bf16.mxu0 0
      %325 = vmatpush1.bf16.msra.mxu0 0
      %326 = vmatprep.subr.bf16.mxu0 0
      %327 = vmatpush1.bf16.msra.mxu0 0
      %328 = vmatprep.subr.bf16.mxu0 0
      %329 = vmatpush1.bf16.msra.mxu0 0
      %330 = vmatprep.subr.bf16.mxu0 0
      %331 = vmatpush1.bf16.msra.mxu0 0
      %332 = vmatprep.subr.bf16.mxu0 0
      %333 = vmatpush1.bf16.msra.mxu0 0
      %334 = vmatprep.subr.bf16.mxu0 0
      %335 = vmatpush1.bf16.msra.mxu0 0
      %336 = vmatprep.subr.bf16.mxu0 0
      %337 = vmatpush1.bf16.msra.mxu0 0
      %338 = vmatprep.subr.bf16.mxu0 0
      %339 = vmatpush1.bf16.msra.mxu0 0
      %340 = vmatprep.subr.bf16.mxu0 0
      %341 = vmatpush1.bf16.msra.mxu0 0
      %342 = vmatprep.subr.bf16.mxu0 0
      %343 = vmatpush1.bf16.msra.mxu0 0
      %344 = vmatprep.mubr.bf16.mxu0 0
      %345 = vmatmul.mubr.bf16.gmra.mrb[0].mxu0 %v289
      %v346 = vpop.f32.mrb[0].mxu0
      %v347 = vadd.f32 0.0, %v346
      %v348 = vpop.f32.mrb[0].mxu0
      %v349 = vadd.f32 0.0, %v348
      %v350 = vpop.f32.mrb[0].mxu0
      %v351 = vadd.f32 0.0, %v350
      %v352 = vpop.f32.mrb[0].mxu0
      %v353 = vadd.f32 0.0, %v352
      %354 = vmatprep.mubr.bf16.mxu0 0
      %355 = vmatmul.mubr.bf16.gmra.mrb[0].mxu0 %v292
      %v356 = vpop.f32.mrb[0].mxu0
      %v357 = vadd.f32 0.0, %v356
      %v358 = vpop.f32.mrb[0].mxu0
      %v359 = vadd.f32 0.0, %v358
      %v360 = vpop.f32.mrb[0].mxu0
      %v361 = vadd.f32 0.0, %v360
      %v362 = vpop.f32.mrb[0].mxu0
      %v363 = vadd.f32 0.0, %v362
      %364 = vmatprep.mubr.bf16.mxu0 0
      %365 = vmatmul.mubr.bf16.gmra.mrb[0].mxu0 %v295
      %v366 = vpop.f32.mrb[0].mxu0
      %v367 = vadd.f32 0.0, %v366
      %v368 = vpop.f32.mrb[0].mxu0
      %v369 = vadd.f32 0.0, %v368
      %v370 = vpop.f32.mrb[0].mxu0
      %v371 = vadd.f32 0.0, %v370
      %v372 = vpop.f32.mrb[0].mxu0
      %v373 = vadd.f32 0.0, %v372
      %374 = vmatprep.mubr.bf16.mxu0 0
      %375 = vmatmul.mubr.bf16.gmra.mrb[0].mxu0 %v298
      %v376 = vpop.f32.mrb[0].mxu0
      %v377 = vadd.f32 0.0, %v376
      %v378 = vpop.f32.mrb[0].mxu0
      %v379 = vadd.f32 0.0, %v378
      %v380 = vpop.f32.mrb[0].mxu0
      %v381 = vadd.f32 0.0, %v380
      %v382 = vpop.f32.mrb[0].mxu0
      %v383 = vadd.f32 0.0, %v382
      %384 = vmatprep.mubr.bf16.mxu0 0
      %385 = vmatmul.mubr.bf16.gmra.mrb[0].mxu0 %v301
      %v386 = vpop.f32.mrb[0].mxu0
      %v387 = vadd.f32 0.0, %v386
      %v388 = vpop.f32.mrb[0].mxu0
      %v389 = vadd.f32 0.0, %v388
      %v390 = vpop.f32.mrb[0].mxu0
      %v391 = vadd.f32 0.0, %v390
      %v392 = vpop.f32.mrb[0].mxu0
      %v393 = vadd.f32 0.0, %v392
      %394 = vmatprep.mubr.bf16.mxu0 0
      %395 = vmatmul.mubr.bf16.gmra.mrb[0].mxu0 %v304
      %v396 = vpop.f32.mrb[0].mxu0
      %v397 = vadd.f32 0.0, %v396
      %v398 = vpop.f32.mrb[0].mxu0
      %v399 = vadd.f32 0.0, %v398
      %v400 = vpop.f32.mrb[0].mxu0
      %v401 = vadd.f32 0.0, %v400
      %v402 = vpop.f32.mrb[0].mxu0
      %v403 = vadd.f32 0.0, %v402
      %404 = vmatprep.mubr.bf16.mxu0 0
      %405 = vmatmul.mubr.bf16.gmra.mrb[0].mxu0 %v307
      %v406 = vpop.f32.mrb[0].mxu0
      %v407 = vadd.f32 0.0, %v406
      %v408 = vpop.f32.mrb[0].mxu0
      %v409 = vadd.f32 0.0, %v408
      %v410 = vpop.f32.mrb[0].mxu0
      %v411 = vadd.f32 0.0, %v410
      %v412 = vpop.f32.mrb[0].mxu0
      %v413 = vadd.f32 0.0, %v412
      %414 = vmatprep.mubr.bf16.mxu0 0
      %415 = vmatmul.mubr.bf16.gmra.mrb[0].mxu0 %v310
      %v416 = vpop.f32.mrb[0].mxu0
      %v417 = vadd.f32 0.0, %v416
      %v418 = vpop.f32.mrb[0].mxu0
      %v419 = vadd.f32 0.0, %v418
      %v420 = vpop.f32.mrb[0].mxu0
      %v421 = vadd.f32 0.0, %v420
      %v422 = vpop.f32.mrb[0].mxu0
      %v423 = vadd.f32 0.0, %v422
      %424 = vdwg.mxu0
      %v425 = vld [vmem:[%s203] sm:$0x3]
      %v426 = vadd.f32 %v347, %v351
      %v427 = vadd.f32 %v426, %v357
      %v428 = vadd.f32 %v427, %v361
      %v429 = vadd.f32 %v428, %v367
      %v430 = vadd.f32 %v429, %v371
      %v431 = vadd.f32 %v430, %v377
      %v432 = vadd.f32 %v431, %v381
      %v433 = vadd.f32 %v432, %v387
      %v434 = vadd.f32 %v433, %v391
      %v435 = vadd.f32 %v434, %v397
      %v436 = vadd.f32 %v435, %v401
      %v437 = vadd.f32 %v436, %v407
      %v438 = vadd.f32 %v437, %v411
      %v439 = vadd.f32 %v438, %v417
      %v440 = vadd.f32 %v439, %v421
      %v441 = vrot.slane %v440, 4
      %v442 = vadd.f32 %v440, %v441
      %v443 = vrot.slane %v442, 2
      %v444 = vadd.f32 %v442, %v443
      %v445 = vrot.slane %v444, 1
      %v446 = vadd.f32 %v444, %v445
      %v447 = vadd.f32 %v349, %v353
      %v448 = vadd.f32 %v447, %v359
      %v449 = vadd.f32 %v448, %v363
      %v450 = vadd.f32 %v449, %v369
      %v451 = vadd.f32 %v450, %v373
      %v452 = vadd.f32 %v451, %v379
      %v453 = vadd.f32 %v452, %v383
      %v454 = vadd.f32 %v453, %v389
      %v455 = vadd.f32 %v454, %v393
      %v456 = vadd.f32 %v455, %v399
      %v457 = vadd.f32 %v456, %v403
      %v458 = vadd.f32 %v457, %v409
      %v459 = vadd.f32 %v458, %v413
      %v460 = vadd.f32 %v459, %v419
      %v461 = vadd.f32 %v460, %v423
      %v462 = vrot.slane %v461, 4
      %v463 = vadd.f32 %v461, %v462
      %v464 = vrot.slane %v463, 2
      %v465 = vadd.f32 %v463, %v464
      %v466 = vrot.slane %v465, 1
      %v467 = vadd.f32 %v465, %v466
      %v470 = vcombine.low %v446, %v467
      %v472 = vunpack.c.l.s4 1966171168
      %v473 = vunpack.c.0.s8 %v472
      %v474 = vlaneseq
      %v475 = vshrl.u32 %v474, 7
      %v476 = vsub.s32 %v473, %v475
      %v477 = vrot.slane %v470, %v476
      %v479 = vunpack.c.l.s4 1966171168
      %v480 = vunpack.c.0.s8 %v479
      %v481 = vlaneseq
      %v482 = vshrl.u32 %v481, 7
      %v483 = vsub.s32 %v480, %v482
      %v484 = vrot.slane %v477, %v483
      %v486 = vadd.f32 %v425, %v484
      %v487 = vlaneseq
      %vm488 = vcmp.ge.s32.totalorder %v487, 0
      %vm489 = vcmp.lt.s32.totalorder %v487, 256
      %vm490 = vmand %vm488, %vm489
      %491 = vst.msk [vmem:[%s203] sm:$0x3] %vm490, %v486
      %v492 = vld [vmem:[%s207] sm:$0x3]
      %v493 = vmul.f32 %v347, %v347
      %v494 = vmul.f32 %v349, %v349
      %v495 = vmul.f32 %v351, %v351
      %v496 = vmul.f32 %v353, %v353
      %v497 = vmul.f32 %v357, %v357
      %v498 = vmul.f32 %v359, %v359
      %v499 = vmul.f32 %v361, %v361
      %v500 = vmul.f32 %v363, %v363
      %v501 = vmul.f32 %v367, %v367
      %v502 = vmul.f32 %v369, %v369
      %v503 = vmul.f32 %v371, %v371
      %v504 = vmul.f32 %v373, %v373
      %v505 = vmul.f32 %v377, %v377
      %v506 = vmul.f32 %v379, %v379
      %v507 = vmul.f32 %v381, %v381
      %v508 = vmul.f32 %v383, %v383
      %v509 = vmul.f32 %v387, %v387
      %v510 = vmul.f32 %v389, %v389
      %v511 = vmul.f32 %v391, %v391
      %v512 = vmul.f32 %v393, %v393
      %v513 = vmul.f32 %v397, %v397
      %v514 = vmul.f32 %v399, %v399
      %v515 = vmul.f32 %v401, %v401
      %v516 = vmul.f32 %v403, %v403
      %v517 = vmul.f32 %v407, %v407
      %v518 = vmul.f32 %v409, %v409
      %v519 = vmul.f32 %v411, %v411
      %v520 = vmul.f32 %v413, %v413
      %v521 = vmul.f32 %v417, %v417
      %v522 = vmul.f32 %v419, %v419
      %v523 = vmul.f32 %v421, %v421
      %v524 = vmul.f32 %v423, %v423
      %v525 = vadd.f32 %v493, %v495
      %v526 = vadd.f32 %v525, %v497
      %v527 = vadd.f32 %v526, %v499
      %v528 = vadd.f32 %v527, %v501
      %v529 = vadd.f32 %v528, %v503
      %v530 = vadd.f32 %v529, %v505
      %v531 = vadd.f32 %v530, %v507
      %v532 = vadd.f32 %v531, %v509
      %v533 = vadd.f32 %v532, %v511
      %v534 = vadd.f32 %v533, %v513
      %v535 = vadd.f32 %v534, %v515
      %v536 = vadd.f32 %v535, %v517
      %v537 = vadd.f32 %v536, %v519
      %v538 = vadd.f32 %v537, %v521
      %v539 = vadd.f32 %v538, %v523
      %v540 = vrot.slane %v539, 4
      %v541 = vadd.f32 %v539, %v540
      %v542 = vrot.slane %v541, 2
      %v543 = vadd.f32 %v541, %v542
      %v544 = vrot.slane %v543, 1
      %v545 = vadd.f32 %v543, %v544
      %v546 = vadd.f32 %v494, %v496
      %v547 = vadd.f32 %v546, %v498
      %v548 = vadd.f32 %v547, %v500
      %v549 = vadd.f32 %v548, %v502
      %v550 = vadd.f32 %v549, %v504
      %v551 = vadd.f32 %v550, %v506
      %v552 = vadd.f32 %v551, %v508
      %v553 = vadd.f32 %v552, %v510
      %v554 = vadd.f32 %v553, %v512
      %v555 = vadd.f32 %v554, %v514
      %v556 = vadd.f32 %v555, %v516
      %v557 = vadd.f32 %v556, %v518
      %v558 = vadd.f32 %v557, %v520
      %v559 = vadd.f32 %v558, %v522
      %v560 = vadd.f32 %v559, %v524
      %v561 = vrot.slane %v560, 4
      %v562 = vadd.f32 %v560, %v561
      %v563 = vrot.slane %v562, 2
      %v564 = vadd.f32 %v562, %v563
      %v565 = vrot.slane %v564, 1
      %v566 = vadd.f32 %v564, %v565
      %v569 = vcombine.low %v545, %v566
      %v571 = vunpack.c.l.s4 1966171168
      %v572 = vunpack.c.0.s8 %v571
      %v573 = vlaneseq
      %v574 = vshrl.u32 %v573, 7
      %v575 = vsub.s32 %v572, %v574
      %v576 = vrot.slane %v569, %v575
      %v578 = vunpack.c.l.s4 1966171168
      %v579 = vunpack.c.0.s8 %v578
      %v580 = vlaneseq
      %v581 = vshrl.u32 %v580, 7
      %v582 = vsub.s32 %v579, %v581
      %v583 = vrot.slane %v576, %v582
      %v585 = vadd.f32 %v492, %v583
      %586 = vst.msk [vmem:[%s207] sm:$0x3] %vm490, %v585
      %p587 = scmp.lt.s32.totalorder %s19, 1
      %s588 = scalar_select %p587, %s19, 1
      %s589 = smul.addr %s588, 2
      %s590 = scalar_lea.vmem %s2, %s589
      %p591 = scmp.lt.s32.totalorder %s19, 1
      %s592 = scalar_select %p591, %s19, 1
      %s593 = smul.addr %s592, 2
      %s594 = scalar_lea.vmem %s3, %s593
      // Predicated region
      $region33: #{region_reconstruction.4} parent=27 // pred_check
        %p595 = pneg %p96
      $region34: #{region_reconstruction.4} parent=27 // pred_check_branch
        %597 = sbr.rel (%p595) target = $region36
      $region35: #{region_reconstruction.4} parent=27 // pred_region
        _
      $region36: #{region_reconstruction.4} parent=27 // pred_fallthru
        _
      // Predicated region
      $region37: #{region_reconstruction.4} parent=27 // pred_check
        %p598 = pneg %p122
      $region38: #{region_reconstruction.4} parent=27 // pred_check_branch
        %600 = sbr.rel (%p598) target = $region40
      $region39: #{region_reconstruction.4} parent=27 // pred_region
        _
      $region40: #{region_reconstruction.4} parent=27 // pred_fallthru
        _
    $region28: #{region_reconstruction.4} parent=5 // pred_fallthru
      _
    %p601 = scmp.le.s32.totalorder 2, %s10
    // Predicated region
    $region41: #{region_reconstruction.4} parent=5 // pred_check
      %p602 = pneg %p601
    $region42: #{region_reconstruction.4} parent=5 // pred_check_branch
      %604 = sbr.rel (%p602) target = $region44
    $region43: #{region_reconstruction.4} parent=5 // pred_region
      %s605 = ssub.s32 %s10, 2
      // Predicated region
      $region45: #{region_reconstruction.4} parent=43 // pred_check
        %p606 = pneg %p102
      $region46: #{region_reconstruction.4} parent=43 // pred_check_branch
        %608 = sbr.rel (%p606) target = $region48
      $region47: #{region_reconstruction.4} parent=43 // pred_region
        %p609 = scmp.lt.s32.totalorder %s21, 1
        %s610 = scalar_select %p609, %s21, 1
        %s611 = smul.addr %s610, 2
        %s612 = scalar_lea.vmem %s2, %s611
      $region48: #{region_reconstruction.4} parent=43 // pred_fallthru
        _
      // Predicated region
      $region49: #{region_reconstruction.4} parent=43 // pred_check
        %p613 = pneg %p128
      $region50: #{region_reconstruction.4} parent=43 // pred_check_branch
        %615 = sbr.rel (%p613) target = $region52
      $region51: #{region_reconstruction.4} parent=43 // pred_region
        %p616 = scmp.lt.s32.totalorder %s21, 1
        %s617 = scalar_select %p616, %s21, 1
        %s618 = smul.addr %s617, 2
        %s619 = scalar_lea.vmem %s3, %s618
      $region52: #{region_reconstruction.4} parent=43 // pred_fallthru
        _
    $region44: #{region_reconstruction.4} parent=5 // pred_fallthru
      _
  $region6: #{region_reconstruction.4} parent=0 // loop_footer
    %s14 = sadd.s32 1, %s10
  $region7: #{region_reconstruction.4} parent=0 // loop_footer_branch
    %9 = sbr.rel target = $region3
  $region8: #{region_reconstruction.4} parent=0 // loop_exit
    _

// kernel: region_reconstruction.5
$region0: #{region_reconstruction.5}
  #allocation0 [shape = 'u32[]', space=smem, size = 0x4, offset = 0x4, fixed_abs, tag = 'smem constant byte address 0x4 - core index']
  #allocation1 [shape = 'u32[144,128]{1,0:T(1,128)}', space=vmem, size = 0x12000, scoped, tag = 'internal scratch']
  %s0 = inlined_call_operand.vmem [shape: bf16[512,16], index: 0, kind: input, shape index: {}]
  %s1 = inlined_call_operand.vmem [shape: bf16[16,256], index: 1, kind: input, shape index: {}]
  %s2 = inlined_call_operand.vmem [shape: f32[1,256], index: 2, kind: input, shape index: {}]
  %s3 = inlined_call_operand.vmem [shape: f32[1,256], index: 3, kind: input, shape index: {}]
  %s4 = inlined_call_operand.vmem [shape: bf16[256,256], index: 4, kind: input, shape index: {}]
  %s5 = inlined_call_operand.vmem [shape: f32[2,1,256], index: 5, kind: output, shape index: {0}]
  %s6 = inlined_call_operand.vmem [shape: f32[2,1,256], index: 6, kind: output, shape index: {1}]
  %7 = xla_tuple %s5, %s6
  %s8 = sld [smem:[#allocation0]]
  $region65: #{region_reconstruction.5} parent=0
    _
  %s10 = ssub.s32 1, %s8
  %s11 = scalar_select 0, %s10, %s8
  loop: start=0, step=1, limit=6
  $region2: #{region_reconstruction.5} parent=0 // loop_pre_header
    _
  $region3: #{region_reconstruction.5} parent=0 // loop_header
    %s13 = sphi 0, %s17
    %p14 = scmp.ge.s32.totalorder %s13, 6
    %s20 = sphi 0, %s32
    %s21 = sphi 0, %s28
    %s22 = sphi 0, %s20
    %s23 = sphi 0, %s21
    %s24 = sphi 0, %s22
    %s25 = sphi 0, %s23
    %s39 = sphi 0, %s41
    %s42 = sphi 0, %s39
    %s43 = sphi 0, %s42
    %s59 = sphi 0, %s43
    %s63 = sphi 0, %s63
    %s65 = sphi 0, %s63
    %s66 = sphi 0, %s65
    %s80 = sphi 0, %s66
    %s84 = sphi 0, %s84
    %s86 = sphi 0, %s84
    %s87 = sphi 0, %s86
    %s101 = sphi 0, %s87
    %s105 = sphi 0, %s105
    %s107 = sphi 0, %s105
    %s108 = sphi 0, %s107
    %s122 = sphi 0, %s108
    %s126 = sphi 0, %s126
    %s128 = sphi 0, %s126
    %s129 = sphi 0, %s128
    %s143 = sphi 0, %s129
    %s149 = sphi 0, %s151
    %s152 = sphi 0, %s149
    %s153 = sphi 0, %s152
    %s169 = sphi 0, %s153
    %s175 = sphi 0, %s177
    %s178 = sphi 0, %s175
    %s179 = sphi 0, %s178
    %s195 = sphi 0, %s179
  $region4: #{region_reconstruction.5} parent=0 // loop_header_branch
    %16 = sbr.rel (%p14) target = $region8
  $region5: #{region_reconstruction.5} parent=0 // loop_body
    %s18 = ssub.s32 %s13, 1
    %s19 = ssub.s32 %s13, 2
    %s26 = sadd.s32 1, %s21
    %p27 = scmp.ge.s32.totalorder %s26, 2
    %s28 = scalar_select %p27, 0, %s26
    %s29 = sadd.s32 1, %s20
    %s30 = scalar_select %p27, %s29, %s20
    %p31 = scmp.ge.s32.totalorder %s30, 2
    %s32 = scalar_select %p31, 0, %s30
    %s33 = smul.u32 %s20, 2
    %s34 = sadd.s32 %s33, %s21
    %s35 = smul.u32 %s32, 2
    %s36 = sadd.s32 %s35, %s28
    %s37 = ssub.s32 %s34, %s36
    %p38 = scmp.eq.s32.totalorder %s37, 0
    %s40 = sadd.s32 %s39, 1
    %s41 = scalar_select %p38, %s39, %s40
    %p44 = pneg %p38
    %p45 = scmp.eq.s32.totalorder %s13, 3
    %p46 = por %p44, %p45
    %p47 = scmp.ne.s32.totalorder %s39, %s42
    %p48 = scmp.eq.s32.totalorder %s13, 0
    %p49 = por %p47, %p48
    %p50 = scmp.ne.s32.totalorder %s39, %s42
    %p51 = scmp.eq.s32.totalorder %s18, 3
    %p52 = por %p50, %p51
    %p53 = scmp.ne.s32.totalorder %s42, %s43
    %p54 = scmp.eq.s32.totalorder %s18, 0
    %p55 = por %p53, %p54
    %p56 = scmp.ne.s32.totalorder %s42, %s43
    %p57 = scmp.eq.s32.totalorder %s19, 3
    %p58 = por %p56, %p57
    %p60 = scmp.ne.s32.totalorder %s43, %s59
    %p61 = scmp.eq.s32.totalorder %s19, 0
    %p62 = por %p60, %p61
    %s64 = sadd.s32 %s63, 1
    %p67 = scmp.eq.s32.totalorder %s13, 3
    %p68 = scmp.ne.s32.totalorder %s63, %s65
    %p69 = scmp.eq.s32.totalorder %s13, 0
    %p70 = por %p68, %p69
    %p71 = scmp.ne.s32.totalorder %s63, %s65
    %p72 = scmp.eq.s32.totalorder %s18, 3
    %p73 = por %p71, %p72
    %p74 = scmp.ne.s32.totalorder %s65, %s66
    %p75 = scmp.eq.s32.totalorder %s18, 0
    %p76 = por %p74, %p75
    %p77 = scmp.ne.s32.totalorder %s65, %s66
    %p78 = scmp.eq.s32.totalorder %s19, 3
    %p79 = por %p77, %p78
    %p81 = scmp.ne.s32.totalorder %s66, %s80
    %p82 = scmp.eq.s32.totalorder %s19, 0
    %p83 = por %p81, %p82
    %s85 = sadd.s32 %s84, 1
    %p88 = scmp.eq.s32.totalorder %s13, 3
    %p89 = scmp.ne.s32.totalorder %s84, %s86
    %p90 = scmp.eq.s32.totalorder %s13, 0
    %p91 = por %p89, %p90
    %p92 = scmp.ne.s32.totalorder %s84, %s86
    %p93 = scmp.eq.s32.totalorder %s18, 3
    %p94 = por %p92, %p93
    %p95 = scmp.ne.s32.totalorder %s86, %s87
    %p96 = scmp.eq.s32.totalorder %s18, 0
    %p97 = por %p95, %p96
    %p98 = scmp.ne.s32.totalorder %s86, %s87
    %p99 = scmp.eq.s32.totalorder %s19, 3
    %p100 = por %p98, %p99
    %p102 = scmp.ne.s32.totalorder %s87, %s101
    %p103 = scmp.eq.s32.totalorder %s19, 0
    %p104 = por %p102, %p103
    %s106 = sadd.s32 %s105, 1
    %p109 = scmp.eq.s32.totalorder %s13, 3
    %p110 = scmp.ne.s32.totalorder %s105, %s107
    %p111 = scmp.eq.s32.totalorder %s13, 0
    %p112 = por %p110, %p111
    %p113 = scmp.ne.s32.totalorder %s105, %s107
    %p114 = scmp.eq.s32.totalorder %s18, 3
    %p115 = por %p113, %p114
    %p116 = scmp.ne.s32.totalorder %s107, %s108
    %p117 = scmp.eq.s32.totalorder %s18, 0
    %p118 = por %p116, %p117
    %p119 = scmp.ne.s32.totalorder %s107, %s108
    %p120 = scmp.eq.s32.totalorder %s19, 3
    %p121 = por %p119, %p120
    %p123 = scmp.ne.s32.totalorder %s108, %s122
    %p124 = scmp.eq.s32.totalorder %s19, 0
    %p125 = por %p123, %p124
    %s127 = sadd.s32 %s126, 1
    %p130 = scmp.eq.s32.totalorder %s13, 3
    %p131 = scmp.ne.s32.totalorder %s126, %s128
    %p132 = scmp.eq.s32.totalorder %s13, 0
    %p133 = por %p131, %p132
    %p134 = scmp.ne.s32.totalorder %s126, %s128
    %p135 = scmp.eq.s32.totalorder %s18, 3
    %p136 = por %p134, %p135
    %p137 = scmp.ne.s32.totalorder %s128, %s129
    %p138 = scmp.eq.s32.totalorder %s18, 0
    %p139 = por %p137, %p138
    %p140 = scmp.ne.s32.totalorder %s128, %s129
    %p141 = scmp.eq.s32.totalorder %s19, 3
    %p142 = por %p140, %p141
    %p144 = scmp.ne.s32.totalorder %s129, %s143
    %p145 = scmp.eq.s32.totalorder %s19, 0
    %p146 = por %p144, %p145
    %s147 = ssub.s32 %s20, %s32
    %p148 = scmp.eq.s32.totalorder %s147, 0
    %s150 = sadd.s32 %s149, 1
    %s151 = scalar_select %p148, %s149, %s150
    %p154 = pneg %p148
    %p155 = scmp.eq.s32.totalorder %s13, 3
    %p156 = por %p154, %p155
    %p157 = scmp.ne.s32.totalorder %s149, %s152
    %p158 = scmp.eq.s32.totalorder %s13, 0
    %p159 = por %p157, %p158
    %p160 = scmp.ne.s32.totalorder %s149, %s152
    %p161 = scmp.eq.s32.totalorder %s18, 3
    %p162 = por %p160, %p161
    %p163 = scmp.ne.s32.totalorder %s152, %s153
    %p164 = scmp.eq.s32.totalorder %s18, 0
    %p165 = por %p163, %p164
    %p166 = scmp.ne.s32.totalorder %s152, %s153
    %p167 = scmp.eq.s32.totalorder %s19, 3
    %p168 = por %p166, %p167
    %p170 = scmp.ne.s32.totalorder %s153, %s169
    %p171 = scmp.eq.s32.totalorder %s19, 0
    %p172 = por %p170, %p171
    %s173 = ssub.s32 %s20, %s32
    %p174 = scmp.eq.s32.totalorder %s173, 0
    %s176 = sadd.s32 %s175, 1
    %s177 = scalar_select %p174, %s175, %s176
    %p180 = pneg %p174
    %p181 = scmp.eq.s32.totalorder %s13, 3
    %p182 = por %p180, %p181
    %p183 = scmp.ne.s32.totalorder %s175, %s178
    %p184 = scmp.eq.s32.totalorder %s13, 0
    %p185 = por %p183, %p184
    %p186 = scmp.ne.s32.totalorder %s175, %s178
    %p187 = scmp.eq.s32.totalorder %s18, 3
    %p188 = por %p186, %p187
    %p189 = scmp.ne.s32.totalorder %s178, %s179
    %p190 = scmp.eq.s32.totalorder %s18, 0
    %p191 = por %p189, %p190
    %p192 = scmp.ne.s32.totalorder %s178, %s179
    %p193 = scmp.eq.s32.totalorder %s19, 3
    %p194 = por %p192, %p193
    %p196 = scmp.ne.s32.totalorder %s179, %s195
    %p197 = scmp.eq.s32.totalorder %s19, 0
    %p198 = por %p196, %p197
    %p199 = scmp.le.s32.totalorder 1, %s13
    %p200 = scmp.lt.s32.totalorder %s13, 5
    %p201 = pnand %p199, %p200
    %p202 = pneg %p201
    // Predicated region
    $region9: #{region_reconstruction.5} parent=5 // pred_check
      _
    $region10: #{region_reconstruction.5} parent=5 // pred_check_branch
      %204 = sbr.rel (%p201) target = $region12
    $region11: #{region_reconstruction.5} parent=5 // pred_region
      %s205 = ssub.s32 %s13, 1
      // Predicated region
      $region13: #{region_reconstruction.5} parent=11 // pred_check
        %p206 = pneg %p76
      $region14: #{region_reconstruction.5} parent=11 // pred_check_branch
        %208 = sbr.rel (%p206) target = $region16
      $region15: #{region_reconstruction.5} parent=11 // pred_region
        _
      $region16: #{region_reconstruction.5} parent=11 // pred_fallthru
        _
      // Predicated region
      $region17: #{region_reconstruction.5} parent=11 // pred_check
        %p209 = pneg %p97
      $region18: #{region_reconstruction.5} parent=11 // pred_check_branch
        %211 = sbr.rel (%p209) target = $region20
      $region19: #{region_reconstruction.5} parent=11 // pred_region
        _
      $region20: #{region_reconstruction.5} parent=11 // pred_fallthru
        _
      // Predicated region
      $region21: #{region_reconstruction.5} parent=11 // pred_check
        %p212 = pneg %p118
      $region22: #{region_reconstruction.5} parent=11 // pred_check_branch
        %214 = sbr.rel (%p212) target = $region24
      $region23: #{region_reconstruction.5} parent=11 // pred_region
        _
      $region24: #{region_reconstruction.5} parent=11 // pred_fallthru
        _
      // Predicated region
      $region25: #{region_reconstruction.5} parent=11 // pred_check
        %p215 = pneg %p139
      $region26: #{region_reconstruction.5} parent=11 // pred_check_branch
        %217 = sbr.rel (%p215) target = $region28
      $region27: #{region_reconstruction.5} parent=11 // pred_region
        _
      $region28: #{region_reconstruction.5} parent=11 // pred_fallthru
        _
    $region12: #{region_reconstruction.5} parent=5 // pred_fallthru
      _
    %p218 = scmp.lt.s32.totalorder %s13, 4
    // Predicated region
    $region29: #{region_reconstruction.5} parent=5 // pred_check
      %p219 = pneg %p218
    $region30: #{region_reconstruction.5} parent=5 // pred_check_branch
      %221 = sbr.rel (%p219) target = $region32
    $region31: #{region_reconstruction.5} parent=5 // pred_region
      // Predicated region
      $region33: #{region_reconstruction.5} parent=31 // pred_check
        %p222 = pneg %p49
      $region34: #{region_reconstruction.5} parent=31 // pred_check_branch
        %224 = sbr.rel (%p222) target = $region36
      $region35: #{region_reconstruction.5} parent=31 // pred_region
        %s225 = smul.u32 %s20, 2
        %s226 = sadd.s32 %s225, %s21
        %s227 = smul.u32 16, %s226
        %p228 = scmp.lt.s32.totalorder %s227, 63
        %s229 = scalar_select %p228, %s227, 63
        %s230 = smul.addr %s229, 4
        %s231 = scalar_lea.vmem %s0, %s230
        %s232 = smul.u32 %s20, 2
        %s233 = sadd.s32 %s232, %s21
        %s234 = smul.u32 16, %s233
      $region36: #{region_reconstruction.5} parent=31 // pred_fallthru
        _
    $region32: #{region_reconstruction.5} parent=5 // pred_fallthru
      _
    %p235 = scmp.le.s32.totalorder 1, %s13
    %p236 = scmp.lt.s32.totalorder %s13, 5
    %p237 = pnand %p235, %p236
    %p238 = pneg %p237
    // Predicated region
    $region37: #{region_reconstruction.5} parent=5 // pred_check
      _
    $region38: #{region_reconstruction.5} parent=5 // pred_check_branch
      %240 = sbr.rel (%p237) target = $region40
    $region39: #{region_reconstruction.5} parent=5 // pred_region
      %s241 = ssub.s32 %s13, 1
      %s242 = smul.u32 %s22, 2
      %s243 = sadd.s32 %s242, %s23
      %s244 = smul.u32 16, %s243
      %p245 = scmp.lt.s32.totalorder %s244, 63
      %s246 = scalar_select %p245, %s244, 63
      %s247 = smul.addr %s246, 4
      %s248 = scalar_lea.vmem %s0, %s247
      %p249 = pneg %p55
      %p250 = pneg %p52
      %p251 = pneg %p76
      %p252 = pneg %p73
      %p253 = pneg %p97
      %p254 = pneg %p94
      %p255 = pneg %p118
      %p256 = pneg %p115
      %p257 = pneg %p139
      %p258 = pneg %p136
      %p259 = pneg %p165
      %p260 = pneg %p162
      %p261 = scmp.lt.s32.totalorder %s22, 1
      %s262 = scalar_select %p261, %s22, 1
      %s263 = smul.addr %s262, 2
      %s264 = scalar_lea.vmem %s5, %s263
      %p265 = pneg %p191
      %p266 = pneg %p188
      %p267 = scmp.lt.s32.totalorder %s22, 1
      %s268 = scalar_select %p267, %s22, 1
      %s269 = smul.addr %s268, 2
      %s270 = scalar_lea.vmem %s6, %s269
      %s271 = smul.u32 %s22, 2
      %s272 = sadd.s32 %s271, %s23
      %s273 = smul.u32 16, %s272
      %p274 = scmp.lt.s32.totalorder %s273, 63
      %s275 = scalar_select %p274, %s273, 63
      %s276 = smul.addr %s275, 4
      %s277 = scalar_lea.vmem %s0, %s276
      %s278 = smul.u32 %s22, 2
      %s279 = sadd.s32 %s278, %s23
      %s280 = smul.u32 16, %s279
      %p281 = scmp.lt.s32.totalorder %s22, 1
      %s282 = scalar_select %p281, %s22, 1
      %s283 = smul.addr %s282, 2
      %s284 = scalar_lea.vmem %s5, %s283
      %p285 = scmp.lt.s32.totalorder %s22, 1
      %s286 = scalar_select %p285, %s22, 1
      %s287 = smul.addr %s286, 2
      %s288 = scalar_lea.vmem %s6, %s287
      %p290 = scmp.eq.s32.totalorder %s23, 0
      // Predicated region
      $region41: #{region_reconstruction.5} parent=39 // pred_check
        %p291 = pneg %p290
      $region42: #{region_reconstruction.5} parent=39 // pred_check_branch
        %293 = sbr.rel (%p291) target = $region44
      $region43: #{region_reconstruction.5} parent=39 // pred_region
        %v294 = vlaneseq
        %vm295 = vcmp.ge.s32.totalorder %v294, 0
        %vm296 = vcmp.lt.s32.totalorder %v294, 256
        %vm297 = vmand %vm295, %vm296
        %298 = vst.msk [vmem:[%s284] sm:$0x3] %vm297, 0.0
        %299 = vst.msk [vmem:[%s288] sm:$0x3] %vm297, 0.0
      $region44: #{region_reconstruction.5} parent=39 // pred_fallthru
        _
      %v300 = vld [vmem:[%s277] sm:$0xf]
      %v301 = vld [vmem:[%s277 + $0x4] sm:$0xf]
      %v302 = vld [vmem:[%s277 + $0x8] sm:$0xf]
      %v303 = vld [vmem:[%s277 + $0xc] sm:$0xf]
      %v304 = vld [vmem:[%s277 + $0x10] sm:$0xf]
      %v305 = vld [vmem:[%s277 + $0x14] sm:$0xf]
      %v306 = vld [vmem:[%s277 + $0x18] sm:$0xf]
      %v307 = vld [vmem:[%s277 + $0x1c] sm:$0xf]
      %v308 = vld [vmem:[%s277 + $0x20] sm:$0xf]
      %v309 = vld [vmem:[%s277 + $0x24] sm:$0xf]
      %v310 = vld [vmem:[%s277 + $0x28] sm:$0xf]
      %v311 = vld [vmem:[%s277 + $0x2c] sm:$0xf]
      %v312 = vld [vmem:[%s277 + $0x30] sm:$0xf]
      %v313 = vld [vmem:[%s277 + $0x34] sm:$0xf]
      %v314 = vld [vmem:[%s277 + $0x38] sm:$0xf]
      %v315 = vld [vmem:[%s277 + $0x3c] sm:$0xf]
      %v316 = vld [vmem:[%s1] sm:$0xff]
      %v317 = vld [vmem:[%s1 + $0x8] sm:$0xff]
      %v334 = vunpack.c.l.b16 %v300
      %v335 = vunpack.c.l.b16 %v301
      %v336 = vunpack.c.l.b16 %v302
      %v337 = vunpack.c.l.b16 %v303
      %v338 = vunpack.c.l.b16 %v304
      %v339 = vunpack.c.l.b16 %v305
      %v340 = vunpack.c.l.b16 %v306
      %v341 = vunpack.c.l.b16 %v307
      %v342 = vunpack.c.l.b16 %v308
      %v343 = vunpack.c.l.b16 %v309
      %v344 = vunpack.c.l.b16 %v310
      %v345 = vunpack.c.l.b16 %v311
      %v346 = vunpack.c.l.b16 %v312
      %v347 = vunpack.c.l.b16 %v313
      %v348 = vunpack.c.l.b16 %v314
      %v349 = vunpack.c.l.b16 %v315
      %v350 = vpack.c.b16 %v335, %v334
      %v351 = vpack.c.b16 %v337, %v336
      %v352 = vpack.c.b16 %v339, %v338
      %v353 = vpack.c.b16 %v341, %v340
      %v354 = vpack.c.b16 %v343, %v342
      %v355 = vpack.c.b16 %v345, %v344
      %v356 = vpack.c.b16 %v347, %v346
      %v357 = vpack.c.b16 %v349, %v348
      %v360 = vunpack.c.l.b16 %v316
      %v361 = vunpack.c.h.b16 %v316
      %v362 = vunpack.c.l.b16 %v317
      %v363 = vunpack.c.h.b16 %v317
      %v364 = vpack.c.b16 %v362, %v360
      %v365 = vpack.c.b16 %v363, %v361
      %vm368 = vcmask 130048
      %v370 = vsel %vm368, %v350, 0
      %v373 = vsel %vm368, %v351, 0
      %v376 = vsel %vm368, %v352, 0
      %v379 = vsel %vm368, %v353, 0
      %v382 = vsel %vm368, %v354, 0
      %v385 = vsel %vm368, %v355, 0
      %v388 = vsel %vm368, %v356, 0
      %v391 = vsel %vm368, %v357, 0
      %393 = vmatprep.subr.bf16.mxu0 %v365
      %394 = vmatpush1.bf16.msra.mxu0 %v364
      %395 = vmatprep.subr.bf16.mxu0 0
      %396 = vmatpush1.bf16.msra.mxu0 0
      %397 = vmatprep.subr.bf16.mxu0 0
      %398 = vmatpush1.bf16.msra.mxu0 0
      %399 = vmatprep.subr.bf16.mxu0 0
      %400 = vmatpush1.bf16.msra.mxu0 0
      %401 = vmatprep.subr.bf16.mxu0 0
      %402 = vmatpush1.bf16.msra.mxu0 0
      %403 = vmatprep.subr.bf16.mxu0 0
      %404 = vmatpush1.bf16.msra.mxu0 0
      %405 = vmatprep.subr.bf16.mxu0 0
      %406 = vmatpush1.bf16.msra.mxu0 0
      %407 = vmatprep.subr.bf16.mxu0 0
      %408 = vmatpush1.bf16.msra.mxu0 0
      %409 = vmatprep.subr.bf16.mxu0 0
      %410 = vmatpush1.bf16.msra.mxu0 0
      %411 = vmatprep.subr.bf16.mxu0 0
      %412 = vmatpush1.bf16.msra.mxu0 0
      %413 = vmatprep.subr.bf16.mxu0 0
      %414 = vmatpush1.bf16.msra.mxu0 0
      %415 = vmatprep.subr.bf16.mxu0 0
      %416 = vmatpush1.bf16.msra.mxu0 0
      %417 = vmatprep.subr.bf16.mxu0 0
      %418 = vmatpush1.bf16.msra.mxu0 0
      %419 = vmatprep.subr.bf16.mxu0 0
      %420 = vmatpush1.bf16.msra.mxu0 0
      %421 = vmatprep.subr.bf16.mxu0 0
      %422 = vmatpush1.bf16.msra.mxu0 0
      %423 = vmatprep.subr.bf16.mxu0 0
      %424 = vmatpush1.bf16.msra.mxu0 0
      %425 = vmatprep.mubr.bf16.mxu0 0
      %426 = vmatmul.mubr.bf16.gmra.mrb[0].mxu0 %v370
      %v427 = vpop.f32.mrb[0].mxu0
      %v428 = vadd.f32 0.0, %v427
      %v429 = vpop.f32.mrb[0].mxu0
      %v430 = vadd.f32 0.0, %v429
      %v431 = vpop.f32.mrb[0].mxu0
      %v432 = vadd.f32 0.0, %v431
      %v433 = vpop.f32.mrb[0].mxu0
      %v434 = vadd.f32 0.0, %v433
      %435 = vmatprep.mubr.bf16.mxu0 0
      %436 = vmatmul.mubr.bf16.gmra.mrb[0].mxu0 %v373
      %v437 = vpop.f32.mrb[0].mxu0
      %v438 = vadd.f32 0.0, %v437
      %v439 = vpop.f32.mrb[0].mxu0
      %v440 = vadd.f32 0.0, %v439
      %v441 = vpop.f32.mrb[0].mxu0
      %v442 = vadd.f32 0.0, %v441
      %v443 = vpop.f32.mrb[0].mxu0
      %v444 = vadd.f32 0.0, %v443
      %445 = vmatprep.mubr.bf16.mxu0 0
      %446 = vmatmul.mubr.bf16.gmra.mrb[0].mxu0 %v376
      %v447 = vpop.f32.mrb[0].mxu0
      %v448 = vadd.f32 0.0, %v447
      %v449 = vpop.f32.mrb[0].mxu0
      %v450 = vadd.f32 0.0, %v449
      %v451 = vpop.f32.mrb[0].mxu0
      %v452 = vadd.f32 0.0, %v451
      %v453 = vpop.f32.mrb[0].mxu0
      %v454 = vadd.f32 0.0, %v453
      %455 = vmatprep.mubr.bf16.mxu0 0
      %456 = vmatmul.mubr.bf16.gmra.mrb[0].mxu0 %v379
      %v457 = vpop.f32.mrb[0].mxu0
      %v458 = vadd.f32 0.0, %v457
      %v459 = vpop.f32.mrb[0].mxu0
      %v460 = vadd.f32 0.0, %v459
      %v461 = vpop.f32.mrb[0].mxu0
      %v462 = vadd.f32 0.0, %v461
      %v463 = vpop.f32.mrb[0].mxu0
      %v464 = vadd.f32 0.0, %v463
      %465 = vmatprep.mubr.bf16.mxu0 0
      %466 = vmatmul.mubr.bf16.gmra.mrb[0].mxu0 %v382
      %v467 = vpop.f32.mrb[0].mxu0
      %v468 = vadd.f32 0.0, %v467
      %v469 = vpop.f32.mrb[0].mxu0
      %v470 = vadd.f32 0.0, %v469
      %v471 = vpop.f32.mrb[0].mxu0
      %v472 = vadd.f32 0.0, %v471
      %v473 = vpop.f32.mrb[0].mxu0
      %v474 = vadd.f32 0.0, %v473
      %475 = vmatprep.mubr.bf16.mxu0 0
      %476 = vmatmul.mubr.bf16.gmra.mrb[0].mxu0 %v385
      %v477 = vpop.f32.mrb[0].mxu0
      %v478 = vadd.f32 0.0, %v477
      %v479 = vpop.f32.mrb[0].mxu0
      %v480 = vadd.f32 0.0, %v479
      %v481 = vpop.f32.mrb[0].mxu0
      %v482 = vadd.f32 0.0, %v481
      %v483 = vpop.f32.mrb[0].mxu0
      %v484 = vadd.f32 0.0, %v483
      %485 = vmatprep.mubr.bf16.mxu0 0
      %486 = vmatmul.mubr.bf16.gmra.mrb[0].mxu0 %v388
      %v487 = vpop.f32.mrb[0].mxu0
      %v488 = vadd.f32 0.0, %v487
      %v489 = vpop.f32.mrb[0].mxu0
      %v490 = vadd.f32 0.0, %v489
      %v491 = vpop.f32.mrb[0].mxu0
      %v492 = vadd.f32 0.0, %v491
      %v493 = vpop.f32.mrb[0].mxu0
      %v494 = vadd.f32 0.0, %v493
      %495 = vmatprep.mubr.bf16.mxu0 0
      %496 = vmatmul.mubr.bf16.gmra.mrb[0].mxu0 %v391
      %v497 = vpop.f32.mrb[0].mxu0
      %v498 = vadd.f32 0.0, %v497
      %v499 = vpop.f32.mrb[0].mxu0
      %v500 = vadd.f32 0.0, %v499
      %v501 = vpop.f32.mrb[0].mxu0
      %v502 = vadd.f32 0.0, %v501
      %v503 = vpop.f32.mrb[0].mxu0
      %v504 = vadd.f32 0.0, %v503
      %505 = vdwg.mxu0
      %v506 = vld [vmem:[%s2] sm:$0x3]
      %v508 = vlaneseq
      %v509 = vshrl.u32 %v508, 7
      %v510 = vsub.s32 0, %v509
      %v511 = vrot.slane %v506, %v510
      %v512 = vlaneseq
      %v513 = vshrl.u32 %v512, 7
      %v514 = vsub.s32 1, %v513
      %v515 = vrot.slane %v506, %v514
      %v518 = vmul.f32 %v428, %v511
      %v519 = vmul.f32 %v430, %v515
      %v520 = vmul.f32 %v432, %v511
      %v521 = vmul.f32 %v434, %v515
      %v522 = vmul.f32 %v438, %v511
      %v523 = vmul.f32 %v440, %v515
      %v524 = vmul.f32 %v442, %v511
      %v525 = vmul.f32 %v444, %v515
      %v526 = vmul.f32 %v448, %v511
      %v527 = vmul.f32 %v450, %v515
      %v528 = vmul.f32 %v452, %v511
      %v529 = vmul.f32 %v454, %v515
      %v530 = vmul.f32 %v458, %v511
      %v531 = vmul.f32 %v460, %v515
      %v532 = vmul.f32 %v462, %v511
      %v533 = vmul.f32 %v464, %v515
      %v534 = vmul.f32 %v468, %v511
      %v535 = vmul.f32 %v470, %v515
      %v536 = vmul.f32 %v472, %v511
      %v537 = vmul.f32 %v474, %v515
      %v538 = vmul.f32 %v478, %v511
      %v539 = vmul.f32 %v480, %v515
      %v540 = vmul.f32 %v482, %v511
      %v541 = vmul.f32 %v484, %v515
      %v542 = vmul.f32 %v488, %v511
      %v543 = vmul.f32 %v490, %v515
      %v544 = vmul.f32 %v492, %v511
      %v545 = vmul.f32 %v494, %v515
      %v546 = vmul.f32 %v498, %v511
      %v547 = vmul.f32 %v500, %v515
      %v548 = vmul.f32 %v502, %v511
      %v549 = vmul.f32 %v504, %v515
      %v550 = vld [vmem:[%s3] sm:$0x3]
      %v552 = vlaneseq
      %v553 = vshrl.u32 %v552, 7
      %v554 = vsub.s32 0, %v553
      %v555 = vrot.slane %v550, %v554
      %v556 = vlaneseq
      %v557 = vshrl.u32 %v556, 7
      %v558 = vsub.s32 1, %v557
      %v559 = vrot.slane %v550, %v558
      %v562 = vadd.f32 %v518, %v555
      %v563 = vadd.f32 %v519, %v559
      %v564 = vadd.f32 %v520, %v555
      %v565 = vadd.f32 %v521, %v559
      %v566 = vadd.f32 %v522, %v555
      %v567 = vadd.f32 %v523, %v559
      %v568 = vadd.f32 %v524, %v555
      %v569 = vadd.f32 %v525, %v559
      %v570 = vadd.f32 %v526, %v555
      %v571 = vadd.f32 %v527, %v559
      %v572 = vadd.f32 %v528, %v555
      %v573 = vadd.f32 %v529, %v559
      %v574 = vadd.f32 %v530, %v555
      %v575 = vadd.f32 %v531, %v559
      %v576 = vadd.f32 %v532, %v555
      %v577 = vadd.f32 %v533, %v559
      %v578 = vadd.f32 %v534, %v555
      %v579 = vadd.f32 %v535, %v559
      %v580 = vadd.f32 %v536, %v555
      %v581 = vadd.f32 %v537, %v559
      %v582 = vadd.f32 %v538, %v555
      %v583 = vadd.f32 %v539, %v559
      %v584 = vadd.f32 %v540, %v555
      %v585 = vadd.f32 %v541, %v559
      %v586 = vadd.f32 %v542, %v555
      %v587 = vadd.f32 %v543, %v559
      %v588 = vadd.f32 %v544, %v555
      %v589 = vadd.f32 %v545, %v559
      %v590 = vadd.f32 %v546, %v555
      %v591 = vadd.f32 %v547, %v559
      %v592 = vadd.f32 %v548, %v555
      %v593 = vadd.f32 %v549, %v559
      %v594 = vmul.f32 %v562, 0.2
      %v595 = vmul.f32 %v563, 0.2
      %v596 = vmul.f32 %v564, 0.2
      %v597 = vmul.f32 %v565, 0.2
      %v598 = vmul.f32 %v566, 0.2
      %v599 = vmul.f32 %v567, 0.2
      %v600 = vmul.f32 %v568, 0.2
      %v601 = vmul.f32 %v569, 0.2
      %v602 = vmul.f32 %v570, 0.2
      %v603 = vmul.f32 %v571, 0.2
      %v604 = vmul.f32 %v572, 0.2
      %v605 = vmul.f32 %v573, 0.2
      %v606 = vmul.f32 %v574, 0.2
      %v607 = vmul.f32 %v575, 0.2
      %v608 = vmul.f32 %v576, 0.2
      %v609 = vmul.f32 %v577, 0.2
      %v610 = vmul.f32 %v578, 0.2
      %v611 = vmul.f32 %v579, 0.2
      %v612 = vmul.f32 %v580, 0.2
      %v613 = vmul.f32 %v581, 0.2
      %v614 = vmul.f32 %v582, 0.2
      %v615 = vmul.f32 %v583, 0.2
      %v616 = vmul.f32 %v584, 0.2
      %v617 = vmul.f32 %v585, 0.2
      %v618 = vmul.f32 %v586, 0.2
      %v619 = vmul.f32 %v587, 0.2
      %v620 = vmul.f32 %v588, 0.2
      %v621 = vmul.f32 %v589, 0.2
      %v622 = vmul.f32 %v590, 0.2
      %v623 = vmul.f32 %v591, 0.2
      %v624 = vmul.f32 %v592, 0.2
      %v625 = vmul.f32 %v593, 0.2
      %v626 = vmax.f32 %v562, %v594
      %v627 = vmax.f32 %v563, %v595
      %v628 = vmax.f32 %v564, %v596
      %v629 = vmax.f32 %v565, %v597
      %v630 = vmax.f32 %v566, %v598
      %v631 = vmax.f32 %v567, %v599
      %v632 = vmax.f32 %v568, %v600
      %v633 = vmax.f32 %v569, %v601
      %v634 = vmax.f32 %v570, %v602
      %v635 = vmax.f32 %v571, %v603
      %v636 = vmax.f32 %v572, %v604
      %v637 = vmax.f32 %v573, %v605
      %v638 = vmax.f32 %v574, %v606
      %v639 = vmax.f32 %v575, %v607
      %v640 = vmax.f32 %v576, %v608
      %v641 = vmax.f32 %v577, %v609
      %v642 = vmax.f32 %v578, %v610
      %v643 = vmax.f32 %v579, %v611
      %v644 = vmax.f32 %v580, %v612
      %v645 = vmax.f32 %v581, %v613
      %v646 = vmax.f32 %v582, %v614
      %v647 = vmax.f32 %v583, %v615
      %v648 = vmax.f32 %v584, %v616
      %v649 = vmax.f32 %v585, %v617
      %v650 = vmax.f32 %v586, %v618
      %v651 = vmax.f32 %v587, %v619
      %v652 = vmax.f32 %v588, %v620
      %v653 = vmax.f32 %v589, %v621
      %v654 = vmax.f32 %v590, %v622
      %v655 = vmax.f32 %v591, %v623
      %v656 = vmax.f32 %v592, %v624
      %v657 = vmax.f32 %v593, %v625
      %v658 = vpack.c.bf16 %v628, %v626
      %v659 = vpack.c.bf16 %v629, %v627
      %v660 = vpack.c.bf16 %v632, %v630
      %v661 = vpack.c.bf16 %v633, %v631
      %v662 = vpack.c.bf16 %v636, %v634
      %v663 = vpack.c.bf16 %v637, %v635
      %v664 = vpack.c.bf16 %v640, %v638
      %v665 = vpack.c.bf16 %v641, %v639
      %v666 = vpack.c.bf16 %v644, %v642
      %v667 = vpack.c.bf16 %v645, %v643
      %v668 = vpack.c.bf16 %v648, %v646
      %v669 = vpack.c.bf16 %v649, %v647
      %v670 = vpack.c.bf16 %v652, %v650
      %v671 = vpack.c.bf16 %v653, %v651
      %v672 = vpack.c.bf16 %v656, %v654
      %v673 = vpack.c.bf16 %v657, %v655
      %v674 = vld [vmem:[%s4] sm:$0xff]
      %v675 = vld [vmem:[%s4 + $0x8] sm:$0xff]
      %v676 = vld [vmem:[%s4 + $0x10] sm:$0xff]
      %v677 = vld [vmem:[%s4 + $0x18] sm:$0xff]
      %v678 = vld [vmem:[%s4 + $0x20] sm:$0xff]
      %v679 = vld [vmem:[%s4 + $0x28] sm:$0xff]
      %v680 = vld [vmem:[%s4 + $0x30] sm:$0xff]
      %v681 = vld [vmem:[%s4 + $0x38] sm:$0xff]
      %v682 = vld [vmem:[%s4 + $0x40] sm:$0xff]
      %v683 = vld [vmem:[%s4 + $0x48] sm:$0xff]
      %v684 = vld [vmem:[%s4 + $0x50] sm:$0xff]
      %v685 = vld [vmem:[%s4 + $0x58] sm:$0xff]
      %v686 = vld [vmem:[%s4 + $0x60] sm:$0xff]
      %v687 = vld [vmem:[%s4 + $0x68] sm:$0xff]
      %v688 = vld [vmem:[%s4 + $0x70] sm:$0xff]
      %v689 = vld [vmem:[%s4 + $0x78] sm:$0xff]
      %v690 = vld [vmem:[%s4 + $0x80] sm:$0xff]
      %v691 = vld [vmem:[%s4 + $0x88] sm:$0xff]
      %v692 = vld [vmem:[%s4 + $0x90] sm:$0xff]
      %v693 = vld [vmem:[%s4 + $0x98] sm:$0xff]
      %v694 = vld [vmem:[%s4 + $0xa0] sm:$0xff]
      %v695 = vld [vmem:[%s4 + $0xa8] sm:$0xff]
      %v696 = vld [vmem:[%s4 + $0xb0] sm:$0xff]
      %v697 = vld [vmem:[%s4 + $0xb8] sm:$0xff]
      %v698 = vld [vmem:[%s4 + $0xc0] sm:$0xff]
      %v699 = vld [vmem:[%s4 + $0xc8] sm:$0xff]
      %v700 = vld [vmem:[%s4 + $0xd0] sm:$0xff]
      %v701 = vld [vmem:[%s4 + $0xd8] sm:$0xff]
      %v702 = vld [vmem:[%s4 + $0xe0] sm:$0xff]
      %v703 = vld [vmem:[%s4 + $0xe8] sm:$0xff]
      %v704 = vld [vmem:[%s4 + $0xf0] sm:$0xff]
      %v705 = vld [vmem:[%s4 + $0xf8] sm:$0xff]
      %v738 = vunpack.c.l.b16 %v674
      %v739 = vunpack.c.h.b16 %v674
      %v740 = vunpack.c.l.b16 %v675
      %v741 = vunpack.c.h.b16 %v675
      %v742 = vunpack.c.l.b16 %v676
      %v743 = vunpack.c.h.b16 %v676
      %v744 = vunpack.c.l.b16 %v677
      %v745 = vunpack.c.h.b16 %v677
      %v746 = vunpack.c.l.b16 %v678
      %v747 = vunpack.c.h.b16 %v678
      %v748 = vunpack.c.l.b16 %v679
      %v749 = vunpack.c.h.b16 %v679
      %v750 = vunpack.c.l.b16 %v680
      %v751 = vunpack.c.h.b16 %v680
      %v752 = vunpack.c.l.b16 %v681
      %v753 = vunpack.c.h.b16 %v681
      %v754 = vunpack.c.l.b16 %v682
      %v755 = vunpack.c.h.b16 %v682
      %v756 = vunpack.c.l.b16 %v683
      %v757 = vunpack.c.h.b16 %v683
      %v758 = vunpack.c.l.b16 %v684
      %v759 = vunpack.c.h.b16 %v684
      %v760 = vunpack.c.l.b16 %v685
      %v761 = vunpack.c.h.b16 %v685
      %v762 = vunpack.c.l.b16 %v686
      %v763 = vunpack.c.h.b16 %v686
      %v764 = vunpack.c.l.b16 %v687
      %v765 = vunpack.c.h.b16 %v687
      %v766 = vunpack.c.l.b16 %v688
      %v767 = vunpack.c.h.b16 %v688
      %v768 = vunpack.c.l.b16 %v689
      %v769 = vunpack.c.h.b16 %v689
      %v770 = vunpack.c.l.b16 %v690
      %v771 = vunpack.c.h.b16 %v690
      %v772 = vunpack.c.l.b16 %v691
      %v773 = vunpack.c.h.b16 %v691
      %v774 = vunpack.c.l.b16 %v692
      %v775 = vunpack.c.h.b16 %v692
      %v776 = vunpack.c.l.b16 %v693
      %v777 = vunpack.c.h.b16 %v693
      %v778 = vunpack.c.l.b16 %v694
      %v779 = vunpack.c.h.b16 %v694
      %v780 = vunpack.c.l.b16 %v695
      %v781 = vunpack.c.h.b16 %v695
      %v782 = vunpack.c.l.b16 %v696
      %v783 = vunpack.c.h.b16 %v696
      %v784 = vunpack.c.l.b16 %v697
      %v785 = vunpack.c.h.b16 %v697
      %v786 = vunpack.c.l.b16 %v698
      %v787 = vunpack.c.h.b16 %v698
      %v788 = vunpack.c.l.b16 %v699
      %v789 = vunpack.c.h.b16 %v699
      %v790 = vunpack.c.l.b16 %v700
      %v791 = vunpack.c.h.b16 %v700
      %v792 = vunpack.c.l.b16 %v701
      %v793 = vunpack.c.h.b16 %v701
      %v794 = vunpack.c.l.b16 %v702
      %v795 = vunpack.c.h.b16 %v702
      %v796 = vunpack.c.l.b16 %v703
      %v797 = vunpack.c.h.b16 %v703
      %v798 = vunpack.c.l.b16 %v704
      %v799 = vunpack.c.h.b16 %v704
      %v800 = vunpack.c.l.b16 %v705
      %v801 = vunpack.c.h.b16 %v705
      %v802 = vpack.c.b16 %v740, %v738
      %v803 = vpack.c.b16 %v741, %v739
      %v804 = vpack.c.b16 %v744, %v742
      %v805 = vpack.c.b16 %v745, %v743
      %v806 = vpack.c.b16 %v748, %v746
      %v807 = vpack.c.b16 %v749, %v747
      %v808 = vpack.c.b16 %v752, %v750
      %v809 = vpack.c.b16 %v753, %v751
      %v810 = vpack.c.b16 %v756, %v754
      %v811 = vpack.c.b16 %v757, %v755
      %v812 = vpack.c.b16 %v760, %v758
      %v813 = vpack.c.b16 %v761, %v759
      %v814 = vpack.c.b16 %v764, %v762
      %v815 = vpack.c.b16 %v765, %v763
      %v816 = vpack.c.b16 %v768, %v766
      %v817 = vpack.c.b16 %v769, %v767
      %v818 = vpack.c.b16 %v772, %v770
      %v819 = vpack.c.b16 %v773, %v771
      %v820 = vpack.c.b16 %v776, %v774
      %v821 = vpack.c.b16 %v777, %v775
      %v822 = vpack.c.b16 %v780, %v778
      %v823 = vpack.c.b16 %v781, %v779
      %v824 = vpack.c.b16 %v784, %v782
      %v825 = vpack.c.b16 %v785, %v783
      %v826 = vpack.c.b16 %v788, %v786
      %v827 = vpack.c.b16 %v789, %v787
      %v828 = vpack.c.b16 %v792, %v790
      %v829 = vpack.c.b16 %v793, %v791
      %v830 = vpack.c.b16 %v796, %v794
      %v831 = vpack.c.b16 %v797, %v795
      %v832 = vpack.c.b16 %v800, %v798
      %v833 = vpack.c.b16 %v801, %v799
      %866 = vmatprep.subr.bf16.mxu0 %v803
      %867 = vmatpush1.bf16.msra.mxu0 %v802
      %868 = vmatprep.subr.bf16.mxu0 %v805
      %869 = vmatpush1.bf16.msra.mxu0 %v804
      %870 = vmatprep.subr.bf16.mxu0 %v807
      %871 = vmatpush1.bf16.msra.mxu0 %v806
      %872 = vmatprep.subr.bf16.mxu0 %v809
      %873 = vmatpush1.bf16.msra.mxu0 %v808
      %874 = vmatprep.subr.bf16.mxu0 %v811
      %875 = vmatpush1.bf16.msra.mxu0 %v810
      %876 = vmatprep.subr.bf16.mxu0 %v813
      %877 = vmatpush1.bf16.msra.mxu0 %v812
      %878 = vmatprep.subr.bf16.mxu0 %v815
      %879 = vmatpush1.bf16.msra.mxu0 %v814
      %880 = vmatprep.subr.bf16.mxu0 %v817
      %881 = vmatpush1.bf16.msra.mxu0 %v816
      %882 = vmatprep.subr.bf16.mxu0 %v819
      %883 = vmatpush1.bf16.msra.mxu0 %v818
      %884 = vmatprep.subr.bf16.mxu0 %v821
      %885 = vmatpush1.bf16.msra.mxu0 %v820
      %886 = vmatprep.subr.bf16.mxu0 %v823
      %887 = vmatpush1.bf16.msra.mxu0 %v822
      %888 = vmatprep.subr.bf16.mxu0 %v825
      %889 = vmatpush1.bf16.msra.mxu0 %v824
      %890 = vmatprep.subr.bf16.mxu0 %v827
      %891 = vmatpush1.bf16.msra.mxu0 %v826
      %892 = vmatprep.subr.bf16.mxu0 %v829
      %893 = vmatpush1.bf16.msra.mxu0 %v828
      %894 = vmatprep.subr.bf16.mxu0 %v831
      %895 = vmatpush1.bf16.msra.mxu0 %v830
      %896 = vmatprep.subr.bf16.mxu0 %v833
      %897 = vmatpush1.bf16.msra.mxu0 %v832
      %898 = vmatprep.mubr.bf16.mxu0 %v659
      %899 = vmatmul.mubr.bf16.gmra.mrb[0].mxu0 %v658
      %v900 = vpop.f32.mrb[0].mxu0
      %v901 = vadd.f32 0.0, %v900
      %v902 = vpop.f32.mrb[0].mxu0
      %v903 = vadd.f32 0.0, %v902
      %v904 = vpop.f32.mrb[0].mxu0
      %v905 = vadd.f32 0.0, %v904
      %v906 = vpop.f32.mrb[0].mxu0
      %v907 = vadd.f32 0.0, %v906
      %908 = vmatprep.mubr.bf16.mxu0 %v661
      %909 = vmatmul.mubr.bf16.gmra.mrb[0].mxu0 %v660
      %v910 = vpop.f32.mrb[0].mxu0
      %v911 = vadd.f32 0.0, %v910
      %v912 = vpop.f32.mrb[0].mxu0
      %v913 = vadd.f32 0.0, %v912
      %v914 = vpop.f32.mrb[0].mxu0
      %v915 = vadd.f32 0.0, %v914
      %v916 = vpop.f32.mrb[0].mxu0
      %v917 = vadd.f32 0.0, %v916
      %918 = vmatprep.mubr.bf16.mxu0 %v663
      %919 = vmatmul.mubr.bf16.gmra.mrb[0].mxu0 %v662
      %v920 = vpop.f32.mrb[0].mxu0
      %v921 = vadd.f32 0.0, %v920
      %v922 = vpop.f32.mrb[0].mxu0
      %v923 = vadd.f32 0.0, %v922
      %v924 = vpop.f32.mrb[0].mxu0
      %v925 = vadd.f32 0.0, %v924
      %v926 = vpop.f32.mrb[0].mxu0
      %v927 = vadd.f32 0.0, %v926
      %928 = vmatprep.mubr.bf16.mxu0 %v665
      %929 = vmatmul.mubr.bf16.gmra.mrb[0].mxu0 %v664
      %v930 = vpop.f32.mrb[0].mxu0
      %v931 = vadd.f32 0.0, %v930
      %v932 = vpop.f32.mrb[0].mxu0
      %v933 = vadd.f32 0.0, %v932
      %v934 = vpop.f32.mrb[0].mxu0
      %v935 = vadd.f32 0.0, %v934
      %v936 = vpop.f32.mrb[0].mxu0
      %v937 = vadd.f32 0.0, %v936
      %938 = vmatprep.mubr.bf16.mxu0 %v667
      %939 = vmatmul.mubr.bf16.gmra.mrb[0].mxu0 %v666
      %v940 = vpop.f32.mrb[0].mxu0
      %v941 = vadd.f32 0.0, %v940
      %v942 = vpop.f32.mrb[0].mxu0
      %v943 = vadd.f32 0.0, %v942
      %v944 = vpop.f32.mrb[0].mxu0
      %v945 = vadd.f32 0.0, %v944
      %v946 = vpop.f32.mrb[0].mxu0
      %v947 = vadd.f32 0.0, %v946
      %948 = vmatprep.mubr.bf16.mxu0 %v669
      %949 = vmatmul.mubr.bf16.gmra.mrb[0].mxu0 %v668
      %v950 = vpop.f32.mrb[0].mxu0
      %v951 = vadd.f32 0.0, %v950
      %v952 = vpop.f32.mrb[0].mxu0
      %v953 = vadd.f32 0.0, %v952
      %v954 = vpop.f32.mrb[0].mxu0
      %v955 = vadd.f32 0.0, %v954
      %v956 = vpop.f32.mrb[0].mxu0
      %v957 = vadd.f32 0.0, %v956
      %958 = vmatprep.mubr.bf16.mxu0 %v671
      %959 = vmatmul.mubr.bf16.gmra.mrb[0].mxu0 %v670
      %v960 = vpop.f32.mrb[0].mxu0
      %v961 = vadd.f32 0.0, %v960
      %v962 = vpop.f32.mrb[0].mxu0
      %v963 = vadd.f32 0.0, %v962
      %v964 = vpop.f32.mrb[0].mxu0
      %v965 = vadd.f32 0.0, %v964
      %v966 = vpop.f32.mrb[0].mxu0
      %v967 = vadd.f32 0.0, %v966
      %968 = vmatprep.mubr.bf16.mxu0 %v673
      %969 = vmatmul.mubr.bf16.gmra.mrb[0].mxu0 %v672
      %v970 = vpop.f32.mrb[0].mxu0
      %v971 = vadd.f32 0.0, %v970
      %v972 = vpop.f32.mrb[0].mxu0
      %v973 = vadd.f32 0.0, %v972
      %v974 = vpop.f32.mrb[0].mxu0
      %v975 = vadd.f32 0.0, %v974
      %v976 = vpop.f32.mrb[0].mxu0
      %v977 = vadd.f32 0.0, %v976
      %978 = vdwg.mxu0
      %v979 = vld [vmem:[%s284] sm:$0x3]
      %v980 = vadd.f32 %v901, %v905
      %v981 = vadd.f32 %v980, %v911
      %v982 = vadd.f32 %v981, %v915
      %v983 = vadd.f32 %v982, %v921
      %v984 = vadd.f32 %v983, %v925
      %v985 = vadd.f32 %v984, %v931
      %v986 = vadd.f32 %v985, %v935
      %v987 = vadd.f32 %v986, %v941
      %v988 = vadd.f32 %v987, %v945
      %v989 = vadd.f32 %v988, %v951
      %v990 = vadd.f32 %v989, %v955
      %v991 = vadd.f32 %v990, %v961
      %v992 = vadd.f32 %v991, %v965
      %v993 = vadd.f32 %v992, %v971
      %v994 = vadd.f32 %v993, %v975
      %v995 = vrot.slane %v994, 4
      %v996 = vadd.f32 %v994, %v995
      %v997 = vrot.slane %v996, 2
      %v998 = vadd.f32 %v996, %v997
      %v999 = vrot.slane %v998, 1
      %v1000 = vadd.f32 %v998, %v999
      %v1001 = vadd.f32 %v903, %v907
      %v1002 = vadd.f32 %v1001, %v913
      %v1003 = vadd.f32 %v1002, %v917
      %v1004 = vadd.f32 %v1003, %v923
      %v1005 = vadd.f32 %v1004, %v927
      %v1006 = vadd.f32 %v1005, %v933
      %v1007 = vadd.f32 %v1006, %v937
      %v1008 = vadd.f32 %v1007, %v943
      %v1009 = vadd.f32 %v1008, %v947
      %v1010 = vadd.f32 %v1009, %v953
      %v1011 = vadd.f32 %v1010, %v957
      %v1012 = vadd.f32 %v1011, %v963
      %v1013 = vadd.f32 %v1012, %v967
      %v1014 = vadd.f32 %v1013, %v973
      %v1015 = vadd.f32 %v1014, %v977
      %v1016 = vrot.slane %v1015, 4
      %v1017 = vadd.f32 %v1015, %v1016
      %v1018 = vrot.slane %v1017, 2
      %v1019 = vadd.f32 %v1017, %v1018
      %v1020 = vrot.slane %v1019, 1
      %v1021 = vadd.f32 %v1019, %v1020
      %v1024 = vcombine.low %v1000, %v1021
      %v1026 = vunpack.c.l.s4 1966171168
      %v1027 = vunpack.c.0.s8 %v1026
      %v1028 = vlaneseq
      %v1029 = vshrl.u32 %v1028, 7
      %v1030 = vsub.s32 %v1027, %v1029
      %v1031 = vrot.slane %v1024, %v1030
      %v1033 = vunpack.c.l.s4 1966171168
      %v1034 = vunpack.c.0.s8 %v1033
      %v1035 = vlaneseq
      %v1036 = vshrl.u32 %v1035, 7
      %v1037 = vsub.s32 %v1034, %v1036
      %v1038 = vrot.slane %v1031, %v1037
      %v1040 = vadd.f32 %v979, %v1038
      %v1041 = vlaneseq
      %vm1042 = vcmp.ge.s32.totalorder %v1041, 0
      %vm1043 = vcmp.lt.s32.totalorder %v1041, 256
      %vm1044 = vmand %vm1042, %vm1043
      %1045 = vst.msk [vmem:[%s284] sm:$0x3] %vm1044, %v1040
      %v1046 = vld [vmem:[%s288] sm:$0x3]
      %v1047 = vmul.f32 %v901, %v901
      %v1048 = vmul.f32 %v903, %v903
      %v1049 = vmul.f32 %v905, %v905
      %v1050 = vmul.f32 %v907, %v907
      %v1051 = vmul.f32 %v911, %v911
      %v1052 = vmul.f32 %v913, %v913
      %v1053 = vmul.f32 %v915, %v915
      %v1054 = vmul.f32 %v917, %v917
      %v1055 = vmul.f32 %v921, %v921
      %v1056 = vmul.f32 %v923, %v923
      %v1057 = vmul.f32 %v925, %v925
      %v1058 = vmul.f32 %v927, %v927
      %v1059 = vmul.f32 %v931, %v931
      %v1060 = vmul.f32 %v933, %v933
      %v1061 = vmul.f32 %v935, %v935
      %v1062 = vmul.f32 %v937, %v937
      %v1063 = vmul.f32 %v941, %v941
      %v1064 = vmul.f32 %v943, %v943
      %v1065 = vmul.f32 %v945, %v945
      %v1066 = vmul.f32 %v947, %v947
      %v1067 = vmul.f32 %v951, %v951
      %v1068 = vmul.f32 %v953, %v953
      %v1069 = vmul.f32 %v955, %v955
      %v1070 = vmul.f32 %v957, %v957
      %v1071 = vmul.f32 %v961, %v961
      %v1072 = vmul.f32 %v963, %v963
      %v1073 = vmul.f32 %v965, %v965
      %v1074 = vmul.f32 %v967, %v967
      %v1075 = vmul.f32 %v971, %v971
      %v1076 = vmul.f32 %v973, %v973
      %v1077 = vmul.f32 %v975, %v975
      %v1078 = vmul.f32 %v977, %v977
      %v1079 = vadd.f32 %v1047, %v1049
      %v1080 = vadd.f32 %v1079, %v1051
      %v1081 = vadd.f32 %v1080, %v1053
      %v1082 = vadd.f32 %v1081, %v1055
      %v1083 = vadd.f32 %v1082, %v1057
      %v1084 = vadd.f32 %v1083, %v1059
      %v1085 = vadd.f32 %v1084, %v1061
      %v1086 = vadd.f32 %v1085, %v1063
      %v1087 = vadd.f32 %v1086, %v1065
      %v1088 = vadd.f32 %v1087, %v1067
      %v1089 = vadd.f32 %v1088, %v1069
      %v1090 = vadd.f32 %v1089, %v1071
      %v1091 = vadd.f32 %v1090, %v1073
      %v1092 = vadd.f32 %v1091, %v1075
      %v1093 = vadd.f32 %v1092, %v1077
      %v1094 = vrot.slane %v1093, 4
      %v1095 = vadd.f32 %v1093, %v1094
      %v1096 = vrot.slane %v1095, 2
      %v1097 = vadd.f32 %v1095, %v1096
      %v1098 = vrot.slane %v1097, 1
      %v1099 = vadd.f32 %v1097, %v1098
      %v1100 = vadd.f32 %v1048, %v1050
      %v1101 = vadd.f32 %v1100, %v1052
      %v1102 = vadd.f32 %v1101, %v1054
      %v1103 = vadd.f32 %v1102, %v1056
      %v1104 = vadd.f32 %v1103, %v1058
      %v1105 = vadd.f32 %v1104, %v1060
      %v1106 = vadd.f32 %v1105, %v1062
      %v1107 = vadd.f32 %v1106, %v1064
      %v1108 = vadd.f32 %v1107, %v1066
      %v1109 = vadd.f32 %v1108, %v1068
      %v1110 = vadd.f32 %v1109, %v1070
      %v1111 = vadd.f32 %v1110, %v1072
      %v1112 = vadd.f32 %v1111, %v1074
      %v1113 = vadd.f32 %v1112, %v1076
      %v1114 = vadd.f32 %v1113, %v1078
      %v1115 = vrot.slane %v1114, 4
      %v1116 = vadd.f32 %v1114, %v1115
      %v1117 = vrot.slane %v1116, 2
      %v1118 = vadd.f32 %v1116, %v1117
      %v1119 = vrot.slane %v1118, 1
      %v1120 = vadd.f32 %v1118, %v1119
      %v1123 = vcombine.low %v1099, %v1120
      %v1125 = vunpack.c.l.s4 1966171168
      %v1126 = vunpack.c.0.s8 %v1125
      %v1127 = vlaneseq
      %v1128 = vshrl.u32 %v1127, 7
      %v1129 = vsub.s32 %v1126, %v1128
      %v1130 = vrot.slane %v1123, %v1129
      %v1132 = vunpack.c.l.s4 1966171168
      %v1133 = vunpack.c.0.s8 %v1132
      %v1134 = vlaneseq
      %v1135 = vshrl.u32 %v1134, 7
      %v1136 = vsub.s32 %v1133, %v1135
      %v1137 = vrot.slane %v1130, %v1136
      %v1139 = vadd.f32 %v1046, %v1137
      %1140 = vst.msk [vmem:[%s288] sm:$0x3] %vm1044, %v1139
      %p1141 = scmp.lt.s32.totalorder %s22, 1
      %s1142 = scalar_select %p1141, %s22, 1
      %s1143 = smul.addr %s1142, 2
      %s1144 = scalar_lea.vmem %s5, %s1143
      %p1145 = scmp.lt.s32.totalorder %s22, 1
      %s1146 = scalar_select %p1145, %s22, 1
      %s1147 = smul.addr %s1146, 2
      %s1148 = scalar_lea.vmem %s6, %s1147
      // Predicated region
      $region45: #{region_reconstruction.5} parent=39 // pred_check
        %p1149 = pneg %p162
      $region46: #{region_reconstruction.5} parent=39 // pred_check_branch
        %1151 = sbr.rel (%p1149) target = $region48
      $region47: #{region_reconstruction.5} parent=39 // pred_region
        _
      $region48: #{region_reconstruction.5} parent=39 // pred_fallthru
        _
      // Predicated region
      $region49: #{region_reconstruction.5} parent=39 // pred_check
        %p1152 = pneg %p188
      $region50: #{region_reconstruction.5} parent=39 // pred_check_branch
        %1154 = sbr.rel (%p1152) target = $region52
      $region51: #{region_reconstruction.5} parent=39 // pred_region
        _
      $region52: #{region_reconstruction.5} parent=39 // pred_fallthru
        _
    $region40: #{region_reconstruction.5} parent=5 // pred_fallthru
      _
    %p1155 = scmp.le.s32.totalorder 2, %s13
    // Predicated region
    $region53: #{region_reconstruction.5} parent=5 // pred_check
      %p1156 = pneg %p1155
    $region54: #{region_reconstruction.5} parent=5 // pred_check_branch
      %1158 = sbr.rel (%p1156) target = $region56
    $region55: #{region_reconstruction.5} parent=5 // pred_region
      %s1159 = ssub.s32 %s13, 2
      // Predicated region
      $region57: #{region_reconstruction.5} parent=55 // pred_check
        %p1160 = pneg %p168
      $region58: #{region_reconstruction.5} parent=55 // pred_check_branch
        %1162 = sbr.rel (%p1160) target = $region60
      $region59: #{region_reconstruction.5} parent=55 // pred_region
        %p1163 = scmp.lt.s32.totalorder %s24, 1
        %s1164 = scalar_select %p1163, %s24, 1
        %s1165 = smul.addr %s1164, 2
        %s1166 = scalar_lea.vmem %s5, %s1165
      $region60: #{region_reconstruction.5} parent=55 // pred_fallthru
        _
      // Predicated region
      $region61: #{region_reconstruction.5} parent=55 // pred_check
        %p1167 = pneg %p194
      $region62: #{region_reconstruction.5} parent=55 // pred_check_branch
        %1169 = sbr.rel (%p1167) target = $region64
      $region63: #{region_reconstruction.5} parent=55 // pred_region
        %p1170 = scmp.lt.s32.totalorder %s24, 1
        %s1171 = scalar_select %p1170, %s24, 1
        %s1172 = smul.addr %s1171, 2
        %s1173 = scalar_lea.vmem %s6, %s1172
      $region64: #{region_reconstruction.5} parent=55 // pred_fallthru
        _
    $region56: #{region_reconstruction.5} parent=5 // pred_fallthru
      _
  $region6: #{region_reconstruction.5} parent=0 // loop_footer
    %s17 = sadd.s32 1, %s13
  $region7: #{region_reconstruction.5} parent=0 // loop_footer_branch
    %12 = sbr.rel target = $region3
  $region8: #{region_reconstruction.5} parent=0 // loop_exit
    _

// kernel: region_reconstruction.7
$region0: #{region_reconstruction.7}
  #allocation0 [shape = 'u32[]', space=smem, size = 0x4, offset = 0x4, fixed_abs, tag = 'smem constant byte address 0x4 - core index']
  #allocation1 [shape = 'u32[144,128]{1,0:T(1,128)}', space=vmem, size = 0x12000, scoped, tag = 'internal scratch']
  %s0 = inlined_call_operand.vmem [shape: bf16[512,128], index: 0, kind: input, shape index: {}]
  %s1 = inlined_call_operand.vmem [shape: f32[1,128], index: 1, kind: input, shape index: {}]
  %s2 = inlined_call_operand.vmem [shape: f32[1,128], index: 2, kind: input, shape index: {}]
  %s3 = inlined_call_operand.vmem [shape: bf16[128,3], index: 3, kind: input, shape index: {}]
  %s4 = inlined_call_operand.vmem [shape: f32[512,3], index: 4, kind: output, shape index: {}]
  %s5 = sld [smem:[#allocation0]]
  $region49: #{region_reconstruction.7} parent=0
    _
  %s7 = ssub.s32 1, %s5
  %s8 = scalar_select 0, %s7, %s5
  loop: start=0, step=1, limit=6
  $region2: #{region_reconstruction.7} parent=0 // loop_pre_header
    _
  $region3: #{region_reconstruction.7} parent=0 // loop_header
    %s10 = sphi 0, %s14
    %p11 = scmp.ge.s32.totalorder %s10, 6
    %s20 = sphi 0, %s22
    %s23 = sphi 0, %s20
    %s24 = sphi 0, %s23
    %s40 = sphi 0, %s24
    %s44 = sphi 0, %s44
    %s46 = sphi 0, %s44
    %s47 = sphi 0, %s46
    %s61 = sphi 0, %s47
    %s65 = sphi 0, %s65
    %s67 = sphi 0, %s65
    %s68 = sphi 0, %s67
    %s82 = sphi 0, %s68
    %s86 = sphi 0, %s86
    %s88 = sphi 0, %s86
    %s89 = sphi 0, %s88
    %s103 = sphi 0, %s89
    %s109 = sphi 0, %s111
    %s112 = sphi 0, %s109
    %s113 = sphi 0, %s112
    %s129 = sphi 0, %s113
  $region4: #{region_reconstruction.7} parent=0 // loop_header_branch
    %13 = sbr.rel (%p11) target = $region8
  $region5: #{region_reconstruction.7} parent=0 // loop_body
    %s15 = ssub.s32 %s10, 1
    %s16 = ssub.s32 %s10, 2
    %s17 = sadd.s32 %s10, 1
    %s18 = ssub.s32 %s10, %s17
    %p19 = scmp.eq.s32.totalorder %s18, 0
    %s21 = sadd.s32 %s20, 1
    %s22 = scalar_select %p19, %s20, %s21
    %p25 = pneg %p19
    %p26 = scmp.eq.s32.totalorder %s10, 3
    %p27 = por %p25, %p26
    %p28 = scmp.ne.s32.totalorder %s20, %s23
    %p29 = scmp.eq.s32.totalorder %s10, 0
    %p30 = por %p28, %p29
    %p31 = scmp.ne.s32.totalorder %s20, %s23
    %p32 = scmp.eq.s32.totalorder %s15, 3
    %p33 = por %p31, %p32
    %p34 = scmp.ne.s32.totalorder %s23, %s24
    %p35 = scmp.eq.s32.totalorder %s15, 0
    %p36 = por %p34, %p35
    %p37 = scmp.ne.s32.totalorder %s23, %s24
    %p38 = scmp.eq.s32.totalorder %s16, 3
    %p39 = por %p37, %p38
    %p41 = scmp.ne.s32.totalorder %s24, %s40
    %p42 = scmp.eq.s32.totalorder %s16, 0
    %p43 = por %p41, %p42
    %s45 = sadd.s32 %s44, 1
    %p48 = scmp.eq.s32.totalorder %s10, 3
    %p49 = scmp.ne.s32.totalorder %s44, %s46
    %p50 = scmp.eq.s32.totalorder %s10, 0
    %p51 = por %p49, %p50
    %p52 = scmp.ne.s32.totalorder %s44, %s46
    %p53 = scmp.eq.s32.totalorder %s15, 3
    %p54 = por %p52, %p53
    %p55 = scmp.ne.s32.totalorder %s46, %s47
    %p56 = scmp.eq.s32.totalorder %s15, 0
    %p57 = por %p55, %p56
    %p58 = scmp.ne.s32.totalorder %s46, %s47
    %p59 = scmp.eq.s32.totalorder %s16, 3
    %p60 = por %p58, %p59
    %p62 = scmp.ne.s32.totalorder %s47, %s61
    %p63 = scmp.eq.s32.totalorder %s16, 0
    %p64 = por %p62, %p63
    %s66 = sadd.s32 %s65, 1
    %p69 = scmp.eq.s32.totalorder %s10, 3
    %p70 = scmp.ne.s32.totalorder %s65, %s67
    %p71 = scmp.eq.s32.totalorder %s10, 0
    %p72 = por %p70, %p71
    %p73 = scmp.ne.s32.totalorder %s65, %s67
    %p74 = scmp.eq.s32.totalorder %s15, 3
    %p75 = por %p73, %p74
    %p76 = scmp.ne.s32.totalorder %s67, %s68
    %p77 = scmp.eq.s32.totalorder %s15, 0
    %p78 = por %p76, %p77
    %p79 = scmp.ne.s32.totalorder %s67, %s68
    %p80 = scmp.eq.s32.totalorder %s16, 3
    %p81 = por %p79, %p80
    %p83 = scmp.ne.s32.totalorder %s68, %s82
    %p84 = scmp.eq.s32.totalorder %s16, 0
    %p85 = por %p83, %p84
    %s87 = sadd.s32 %s86, 1
    %p90 = scmp.eq.s32.totalorder %s10, 3
    %p91 = scmp.ne.s32.totalorder %s86, %s88
    %p92 = scmp.eq.s32.totalorder %s10, 0
    %p93 = por %p91, %p92
    %p94 = scmp.ne.s32.totalorder %s86, %s88
    %p95 = scmp.eq.s32.totalorder %s15, 3
    %p96 = por %p94, %p95
    %p97 = scmp.ne.s32.totalorder %s88, %s89
    %p98 = scmp.eq.s32.totalorder %s15, 0
    %p99 = por %p97, %p98
    %p100 = scmp.ne.s32.totalorder %s88, %s89
    %p101 = scmp.eq.s32.totalorder %s16, 3
    %p102 = por %p100, %p101
    %p104 = scmp.ne.s32.totalorder %s89, %s103
    %p105 = scmp.eq.s32.totalorder %s16, 0
    %p106 = por %p104, %p105
    %s107 = ssub.s32 %s10, %s17
    %p108 = scmp.eq.s32.totalorder %s107, 0
    %s110 = sadd.s32 %s109, 1
    %s111 = scalar_select %p108, %s109, %s110
    %p114 = pneg %p108
    %p115 = scmp.eq.s32.totalorder %s10, 3
    %p116 = por %p114, %p115
    %p117 = scmp.ne.s32.totalorder %s109, %s112
    %p118 = scmp.eq.s32.totalorder %s10, 0
    %p119 = por %p117, %p118
    %p120 = scmp.ne.s32.totalorder %s109, %s112
    %p121 = scmp.eq.s32.totalorder %s15, 3
    %p122 = por %p120, %p121
    %p123 = scmp.ne.s32.totalorder %s112, %s113
    %p124 = scmp.eq.s32.totalorder %s15, 0
    %p125 = por %p123, %p124
    %p126 = scmp.ne.s32.totalorder %s112, %s113
    %p127 = scmp.eq.s32.totalorder %s16, 3
    %p128 = por %p126, %p127
    %p130 = scmp.ne.s32.totalorder %s113, %s129
    %p131 = scmp.eq.s32.totalorder %s16, 0
    %p132 = por %p130, %p131
    %p133 = scmp.le.s32.totalorder 1, %s10
    %p134 = scmp.lt.s32.totalorder %s10, 5
    %p135 = pnand %p133, %p134
    %p136 = pneg %p135
    // Predicated region
    $region9: #{region_reconstruction.7} parent=5 // pred_check
      _
    $region10: #{region_reconstruction.7} parent=5 // pred_check_branch
      %138 = sbr.rel (%p135) target = $region12
    $region11: #{region_reconstruction.7} parent=5 // pred_region
      %s139 = ssub.s32 %s10, 1
      // Predicated region
      $region13: #{region_reconstruction.7} parent=11 // pred_check
        %p140 = pneg %p57
      $region14: #{region_reconstruction.7} parent=11 // pred_check_branch
        %142 = sbr.rel (%p140) target = $region16
      $region15: #{region_reconstruction.7} parent=11 // pred_region
        _
      $region16: #{region_reconstruction.7} parent=11 // pred_fallthru
        _
      // Predicated region
      $region17: #{region_reconstruction.7} parent=11 // pred_check
        %p143 = pneg %p78
      $region18: #{region_reconstruction.7} parent=11 // pred_check_branch
        %145 = sbr.rel (%p143) target = $region20
      $region19: #{region_reconstruction.7} parent=11 // pred_region
        _
      $region20: #{region_reconstruction.7} parent=11 // pred_fallthru
        _
      // Predicated region
      $region21: #{region_reconstruction.7} parent=11 // pred_check
        %p146 = pneg %p99
      $region22: #{region_reconstruction.7} parent=11 // pred_check_branch
        %148 = sbr.rel (%p146) target = $region24
      $region23: #{region_reconstruction.7} parent=11 // pred_region
        _
      $region24: #{region_reconstruction.7} parent=11 // pred_fallthru
        _
    $region12: #{region_reconstruction.7} parent=5 // pred_fallthru
      _
    %p149 = scmp.lt.s32.totalorder %s10, 4
    // Predicated region
    $region25: #{region_reconstruction.7} parent=5 // pred_check
      %p150 = pneg %p149
    $region26: #{region_reconstruction.7} parent=5 // pred_check_branch
      %152 = sbr.rel (%p150) target = $region28
    $region27: #{region_reconstruction.7} parent=5 // pred_region
      // Predicated region
      $region29: #{region_reconstruction.7} parent=27 // pred_check
        %p153 = pneg %p30
      $region30: #{region_reconstruction.7} parent=27 // pred_check_branch
        %155 = sbr.rel (%p153) target = $region32
      $region31: #{region_reconstruction.7} parent=27 // pred_region
        %s156 = smul.u32 16, %s10
        %p157 = scmp.lt.s32.totalorder %s156, 63
        %s158 = scalar_select %p157, %s156, 63
        %s159 = smul.addr %s158, 4
        %s160 = scalar_lea.vmem %s0, %s159
        %s161 = smul.u32 16, %s10
      $region32: #{region_reconstruction.7} parent=27 // pred_fallthru
        _
    $region28: #{region_reconstruction.7} parent=5 // pred_fallthru
      _
    %p162 = scmp.le.s32.totalorder 1, %s10
    %p163 = scmp.lt.s32.totalorder %s10, 5
    %p164 = pnand %p162, %p163
    %p165 = pneg %p164
    // Predicated region
    $region33: #{region_reconstruction.7} parent=5 // pred_check
      _
    $region34: #{region_reconstruction.7} parent=5 // pred_check_branch
      %167 = sbr.rel (%p164) target = $region36
    $region35: #{region_reconstruction.7} parent=5 // pred_region
      %s168 = ssub.s32 %s10, 1
      %s169 = smul.u32 16, %s15
      %p170 = scmp.lt.s32.totalorder %s169, 63
      %s171 = scalar_select %p170, %s169, 63
      %s172 = smul.addr %s171, 4
      %s173 = scalar_lea.vmem %s0, %s172
      %p174 = pneg %p36
      %p175 = pneg %p33
      %p176 = pneg %p57
      %p177 = pneg %p54
      %p178 = pneg %p78
      %p179 = pneg %p75
      %p180 = pneg %p99
      %p181 = pneg %p96
      %p182 = pneg %p125
      %p183 = pneg %p122
      %s184 = smul.u32 16, %s15
      %p185 = scmp.lt.s32.totalorder %s184, 63
      %s186 = scalar_select %p185, %s184, 63
      %s187 = smul.addr %s186, 8
      %s188 = scalar_lea.vmem %s4, %s187
      %s189 = smul.u32 16, %s15
      %p190 = scmp.lt.s32.totalorder %s189, 63
      %s191 = scalar_select %p190, %s189, 63
      %s192 = smul.addr %s191, 4
      %s193 = scalar_lea.vmem %s0, %s192
      %s194 = smul.u32 16, %s15
      %s195 = smul.u32 16, %s15
      %p196 = scmp.lt.s32.totalorder %s195, 63
      %s197 = scalar_select %p196, %s195, 63
      %s198 = smul.addr %s197, 8
      %s199 = scalar_lea.vmem %s4, %s198
      %s200 = smul.u32 16, %s15
      %v202 = vld [vmem:[%s193] sm:$0xf]
      %v203 = vld [vmem:[%s193 + $0x4] sm:$0xf]
      %v204 = vld [vmem:[%s193 + $0x8] sm:$0xf]
      %v205 = vld [vmem:[%s193 + $0xc] sm:$0xf]
      %v206 = vld [vmem:[%s193 + $0x10] sm:$0xf]
      %v207 = vld [vmem:[%s193 + $0x14] sm:$0xf]
      %v208 = vld [vmem:[%s193 + $0x18] sm:$0xf]
      %v209 = vld [vmem:[%s193 + $0x1c] sm:$0xf]
      %v210 = vld [vmem:[%s193 + $0x20] sm:$0xf]
      %v211 = vld [vmem:[%s193 + $0x24] sm:$0xf]
      %v212 = vld [vmem:[%s193 + $0x28] sm:$0xf]
      %v213 = vld [vmem:[%s193 + $0x2c] sm:$0xf]
      %v214 = vld [vmem:[%s193 + $0x30] sm:$0xf]
      %v215 = vld [vmem:[%s193 + $0x34] sm:$0xf]
      %v216 = vld [vmem:[%s193 + $0x38] sm:$0xf]
      %v217 = vld [vmem:[%s193 + $0x3c] sm:$0xf]
      %v218 = vunpack.c.l.bf16 %v202
      %v219 = vunpack.c.l.bf16 %v203
      %v220 = vunpack.c.l.bf16 %v204
      %v221 = vunpack.c.l.bf16 %v205
      %v222 = vunpack.c.l.bf16 %v206
      %v223 = vunpack.c.l.bf16 %v207
      %v224 = vunpack.c.l.bf16 %v208
      %v225 = vunpack.c.l.bf16 %v209
      %v226 = vunpack.c.l.bf16 %v210
      %v227 = vunpack.c.l.bf16 %v211
      %v228 = vunpack.c.l.bf16 %v212
      %v229 = vunpack.c.l.bf16 %v213
      %v230 = vunpack.c.l.bf16 %v214
      %v231 = vunpack.c.l.bf16 %v215
      %v232 = vunpack.c.l.bf16 %v216
      %v233 = vunpack.c.l.bf16 %v217
      %v234 = vld [vmem:[%s1] sm:$0x1]
      %v236 = vlaneseq
      %v237 = vshrl.u32 %v236, 7
      %v238 = vsub.s32 0, %v237
      %v239 = vrot.slane %v234, %v238
      %v241 = vmul.f32 %v218, %v239
      %v242 = vmul.f32 %v219, %v239
      %v243 = vmul.f32 %v220, %v239
      %v244 = vmul.f32 %v221, %v239
      %v245 = vmul.f32 %v222, %v239
      %v246 = vmul.f32 %v223, %v239
      %v247 = vmul.f32 %v224, %v239
      %v248 = vmul.f32 %v225, %v239
      %v249 = vmul.f32 %v226, %v239
      %v250 = vmul.f32 %v227, %v239
      %v251 = vmul.f32 %v228, %v239
      %v252 = vmul.f32 %v229, %v239
      %v253 = vmul.f32 %v230, %v239
      %v254 = vmul.f32 %v231, %v239
      %v255 = vmul.f32 %v232, %v239
      %v256 = vmul.f32 %v233, %v239
      %v257 = vld [vmem:[%s2] sm:$0x1]
      %v259 = vlaneseq
      %v260 = vshrl.u32 %v259, 7
      %v261 = vsub.s32 0, %v260
      %v262 = vrot.slane %v257, %v261
      %v264 = vadd.f32 %v241, %v262
      %v265 = vadd.f32 %v242, %v262
      %v266 = vadd.f32 %v243, %v262
      %v267 = vadd.f32 %v244, %v262
      %v268 = vadd.f32 %v245, %v262
      %v269 = vadd.f32 %v246, %v262
      %v270 = vadd.f32 %v247, %v262
      %v271 = vadd.f32 %v248, %v262
      %v272 = vadd.f32 %v249, %v262
      %v273 = vadd.f32 %v250, %v262
      %v274 = vadd.f32 %v251, %v262
      %v275 = vadd.f32 %v252, %v262
      %v276 = vadd.f32 %v253, %v262
      %v277 = vadd.f32 %v254, %v262
      %v278 = vadd.f32 %v255, %v262
      %v279 = vadd.f32 %v256, %v262
      %v280 = vmul.f32 %v264, 0.2
      %v281 = vmul.f32 %v265, 0.2
      %v282 = vmul.f32 %v266, 0.2
      %v283 = vmul.f32 %v267, 0.2
      %v284 = vmul.f32 %v268, 0.2
      %v285 = vmul.f32 %v269, 0.2
      %v286 = vmul.f32 %v270, 0.2
      %v287 = vmul.f32 %v271, 0.2
      %v288 = vmul.f32 %v272, 0.2
      %v289 = vmul.f32 %v273, 0.2
      %v290 = vmul.f32 %v274, 0.2
      %v291 = vmul.f32 %v275, 0.2
      %v292 = vmul.f32 %v276, 0.2
      %v293 = vmul.f32 %v277, 0.2
      %v294 = vmul.f32 %v278, 0.2
      %v295 = vmul.f32 %v279, 0.2
      %v296 = vmax.f32 %v264, %v280
      %v297 = vmax.f32 %v265, %v281
      %v298 = vmax.f32 %v266, %v282
      %v299 = vmax.f32 %v267, %v283
      %v300 = vmax.f32 %v268, %v284
      %v301 = vmax.f32 %v269, %v285
      %v302 = vmax.f32 %v270, %v286
      %v303 = vmax.f32 %v271, %v287
      %v304 = vmax.f32 %v272, %v288
      %v305 = vmax.f32 %v273, %v289
      %v306 = vmax.f32 %v274, %v290
      %v307 = vmax.f32 %v275, %v291
      %v308 = vmax.f32 %v276, %v292
      %v309 = vmax.f32 %v277, %v293
      %v310 = vmax.f32 %v278, %v294
      %v311 = vmax.f32 %v279, %v295
      %v312 = vpack.c.bf16 %v297, %v296
      %v313 = vpack.c.bf16 %v299, %v298
      %v314 = vpack.c.bf16 %v301, %v300
      %v315 = vpack.c.bf16 %v303, %v302
      %v316 = vpack.c.bf16 %v305, %v304
      %v317 = vpack.c.bf16 %v307, %v306
      %v318 = vpack.c.bf16 %v309, %v308
      %v319 = vpack.c.bf16 %v311, %v310
      %v320 = vld [vmem:[%s3] sm:$0xf]
      %v321 = vld [vmem:[%s3 + $0x4] sm:$0xf]
      %v322 = vld [vmem:[%s3 + $0x8] sm:$0xf]
      %v323 = vld [vmem:[%s3 + $0xc] sm:$0xf]
      %v324 = vld [vmem:[%s3 + $0x10] sm:$0xf]
      %v325 = vld [vmem:[%s3 + $0x14] sm:$0xf]
      %v326 = vld [vmem:[%s3 + $0x18] sm:$0xf]
      %v327 = vld [vmem:[%s3 + $0x1c] sm:$0xf]
      %v328 = vld [vmem:[%s3 + $0x20] sm:$0xf]
      %v329 = vld [vmem:[%s3 + $0x24] sm:$0xf]
      %v330 = vld [vmem:[%s3 + $0x28] sm:$0xf]
      %v331 = vld [vmem:[%s3 + $0x2c] sm:$0xf]
      %v332 = vld [vmem:[%s3 + $0x30] sm:$0xf]
      %v333 = vld [vmem:[%s3 + $0x34] sm:$0xf]
      %v334 = vld [vmem:[%s3 + $0x38] sm:$0xf]
      %v335 = vld [vmem:[%s3 + $0x3c] sm:$0xf]
      %v352 = vunpack.c.l.b16 %v320
      %v353 = vunpack.c.l.b16 %v321
      %v354 = vunpack.c.l.b16 %v322
      %v355 = vunpack.c.l.b16 %v323
      %v356 = vunpack.c.l.b16 %v324
      %v357 = vunpack.c.l.b16 %v325
      %v358 = vunpack.c.l.b16 %v326
      %v359 = vunpack.c.l.b16 %v327
      %v360 = vunpack.c.l.b16 %v328
      %v361 = vunpack.c.l.b16 %v329
      %v362 = vunpack.c.l.b16 %v330
      %v363 = vunpack.c.l.b16 %v331
      %v364 = vunpack.c.l.b16 %v332
      %v365 = vunpack.c.l.b16 %v333
      %v366 = vunpack.c.l.b16 %v334
      %v367 = vunpack.c.l.b16 %v335
      %v368 = vpack.c.b16 %v353, %v352
      %v369 = vpack.c.b16 %v355, %v354
      %v370 = vpack.c.b16 %v357, %v356
      %v371 = vpack.c.b16 %v359, %v358
      %v372 = vpack.c.b16 %v361, %v360
      %v373 = vpack.c.b16 %v363, %v362
      %v374 = vpack.c.b16 %v365, %v364
      %v375 = vpack.c.b16 %v367, %v366
      %384 = vmatprep.subr.bf16.mxu0 0
      %385 = vmatpush1.bf16.msra.mxu0 %v368
      %386 = vmatprep.subr.bf16.mxu0 0
      %387 = vmatpush1.bf16.msra.mxu0 %v369
      %388 = vmatprep.subr.bf16.mxu0 0
      %389 = vmatpush1.bf16.msra.mxu0 %v370
      %390 = vmatprep.subr.bf16.mxu0 0
      %391 = vmatpush1.bf16.msra.mxu0 %v371
      %392 = vmatprep.subr.bf16.mxu0 0
      %393 = vmatpush1.bf16.msra.mxu0 %v372
      %394 = vmatprep.subr.bf16.mxu0 0
      %395 = vmatpush1.bf16.msra.mxu0 %v373
      %396 = vmatprep.subr.bf16.mxu0 0
      %397 = vmatpush1.bf16.msra.mxu0 %v374
      %398 = vmatprep.subr.bf16.mxu0 0
      %399 = vmatpush1.bf16.msra.mxu0 %v375
      %400 = vmatprep.subr.bf16.mxu0 0
      %401 = vmatpush1.bf16.msra.mxu0 0
      %402 = vmatprep.subr.bf16.mxu0 0
      %403 = vmatpush1.bf16.msra.mxu0 0
      %404 = vmatprep.subr.bf16.mxu0 0
      %405 = vmatpush1.bf16.msra.mxu0 0
      %406 = vmatprep.subr.bf16.mxu0 0
      %407 = vmatpush1.bf16.msra.mxu0 0
      %408 = vmatprep.subr.bf16.mxu0 0
      %409 = vmatpush1.bf16.msra.mxu0 0
      %410 = vmatprep.subr.bf16.mxu0 0
      %411 = vmatpush1.bf16.msra.mxu0 0
      %412 = vmatprep.subr.bf16.mxu0 0
      %413 = vmatpush1.bf16.msra.mxu0 0
      %414 = vmatprep.subr.bf16.mxu0 0
      %415 = vmatpush1.bf16.msra.mxu0 0
      %416 = vmatprep.mubr.bf16.mxu0 0
      %417 = vmatmul.mubr.bf16.gmra.mrb[0].mxu0 %v312
      %v418 = vpop.f32.mrb[0].mxu0
      %v419 = vadd.f32 0.0, %v418
      %v420 = vpop.f32.mrb[0].mxu0
      %v421 = vpop.f32.mrb[0].mxu0
      %v422 = vadd.f32 0.0, %v421
      %v423 = vpop.f32.mrb[0].mxu0
      %424 = vmatprep.mubr.bf16.mxu0 0
      %425 = vmatmul.mubr.bf16.gmra.mrb[0].mxu0 %v313
      %v426 = vpop.f32.mrb[0].mxu0
      %v427 = vadd.f32 0.0, %v426
      %v428 = vpop.f32.mrb[0].mxu0
      %v429 = vpop.f32.mrb[0].mxu0
      %v430 = vadd.f32 0.0, %v429
      %v431 = vpop.f32.mrb[0].mxu0
      %432 = vmatprep.mubr.bf16.mxu0 0
      %433 = vmatmul.mubr.bf16.gmra.mrb[0].mxu0 %v314
      %v434 = vpop.f32.mrb[0].mxu0
      %v435 = vadd.f32 0.0, %v434
      %v436 = vpop.f32.mrb[0].mxu0
      %v437 = vpop.f32.mrb[0].mxu0
      %v438 = vadd.f32 0.0, %v437
      %v439 = vpop.f32.mrb[0].mxu0
      %440 = vmatprep.mubr.bf16.mxu0 0
      %441 = vmatmul.mubr.bf16.gmra.mrb[0].mxu0 %v315
      %v442 = vpop.f32.mrb[0].mxu0
      %v443 = vadd.f32 0.0, %v442
      %v444 = vpop.f32.mrb[0].mxu0
      %v445 = vpop.f32.mrb[0].mxu0
      %v446 = vadd.f32 0.0, %v445
      %v447 = vpop.f32.mrb[0].mxu0
      %448 = vmatprep.mubr.bf16.mxu0 0
      %449 = vmatmul.mubr.bf16.gmra.mrb[0].mxu0 %v316
      %v450 = vpop.f32.mrb[0].mxu0
      %v451 = vadd.f32 0.0, %v450
      %v452 = vpop.f32.mrb[0].mxu0
      %v453 = vpop.f32.mrb[0].mxu0
      %v454 = vadd.f32 0.0, %v453
      %v455 = vpop.f32.mrb[0].mxu0
      %456 = vmatprep.mubr.bf16.mxu0 0
      %457 = vmatmul.mubr.bf16.gmra.mrb[0].mxu0 %v317
      %v458 = vpop.f32.mrb[0].mxu0
      %v459 = vadd.f32 0.0, %v458
      %v460 = vpop.f32.mrb[0].mxu0
      %v461 = vpop.f32.mrb[0].mxu0
      %v462 = vadd.f32 0.0, %v461
      %v463 = vpop.f32.mrb[0].mxu0
      %464 = vmatprep.mubr.bf16.mxu0 0
      %465 = vmatmul.mubr.bf16.gmra.mrb[0].mxu0 %v318
      %v466 = vpop.f32.mrb[0].mxu0
      %v467 = vadd.f32 0.0, %v466
      %v468 = vpop.f32.mrb[0].mxu0
      %v469 = vpop.f32.mrb[0].mxu0
      %v470 = vadd.f32 0.0, %v469
      %v471 = vpop.f32.mrb[0].mxu0
      %472 = vmatprep.mubr.bf16.mxu0 0
      %473 = vmatmul.mubr.bf16.gmra.mrb[0].mxu0 %v319
      %v474 = vpop.f32.mrb[0].mxu0
      %v475 = vadd.f32 0.0, %v474
      %v476 = vpop.f32.mrb[0].mxu0
      %v477 = vpop.f32.mrb[0].mxu0
      %v478 = vadd.f32 0.0, %v477
      %v479 = vpop.f32.mrb[0].mxu0
      %480 = vdwg.mxu0
      %vm481 = vcmask 23552
      %482 = vst.msk [vmem:[%s199] sm:$0xff] %vm481, %v419
      %483 = vst.msk [vmem:[%s199 + $0x8] sm:$0xff] %vm481, %v422
      %484 = vst.msk [vmem:[%s199 + $0x10] sm:$0xff] %vm481, %v427
      %485 = vst.msk [vmem:[%s199 + $0x18] sm:$0xff] %vm481, %v430
      %486 = vst.msk [vmem:[%s199 + $0x20] sm:$0xff] %vm481, %v435
      %487 = vst.msk [vmem:[%s199 + $0x28] sm:$0xff] %vm481, %v438
      %488 = vst.msk [vmem:[%s199 + $0x30] sm:$0xff] %vm481, %v443
      %489 = vst.msk [vmem:[%s199 + $0x38] sm:$0xff] %vm481, %v446
      %490 = vst.msk [vmem:[%s199 + $0x40] sm:$0xff] %vm481, %v451
      %491 = vst.msk [vmem:[%s199 + $0x48] sm:$0xff] %vm481, %v454
      %492 = vst.msk [vmem:[%s199 + $0x50] sm:$0xff] %vm481, %v459
      %493 = vst.msk [vmem:[%s199 + $0x58] sm:$0xff] %vm481, %v462
      %494 = vst.msk [vmem:[%s199 + $0x60] sm:$0xff] %vm481, %v467
      %495 = vst.msk [vmem:[%s199 + $0x68] sm:$0xff] %vm481, %v470
      %496 = vst.msk [vmem:[%s199 + $0x70] sm:$0xff] %vm481, %v475
      %497 = vst.msk [vmem:[%s199 + $0x78] sm:$0xff] %vm481, %v478
      %s498 = smul.u32 16, %s15
      %p499 = scmp.lt.s32.totalorder %s498, 63
      %s500 = scalar_select %p499, %s498, 63
      %s501 = smul.addr %s500, 8
      %s502 = scalar_lea.vmem %s4, %s501
      // Predicated region
      $region37: #{region_reconstruction.7} parent=35 // pred_check
        %p503 = pneg %p122
      $region38: #{region_reconstruction.7} parent=35 // pred_check_branch
        %505 = sbr.rel (%p503) target = $region40
      $region39: #{region_reconstruction.7} parent=35 // pred_region
        %s506 = smul.u32 16, %s15
      $region40: #{region_reconstruction.7} parent=35 // pred_fallthru
        _
    $region36: #{region_reconstruction.7} parent=5 // pred_fallthru
      _
    %p507 = scmp.le.s32.totalorder 2, %s10
    // Predicated region
    $region41: #{region_reconstruction.7} parent=5 // pred_check
      %p508 = pneg %p507
    $region42: #{region_reconstruction.7} parent=5 // pred_check_branch
      %510 = sbr.rel (%p508) target = $region44
    $region43: #{region_reconstruction.7} parent=5 // pred_region
      %s511 = ssub.s32 %s10, 2
      // Predicated region
      $region45: #{region_reconstruction.7} parent=43 // pred_check
        %p512 = pneg %p128
      $region46: #{region_reconstruction.7} parent=43 // pred_check_branch
        %514 = sbr.rel (%p512) target = $region48
      $region47: #{region_reconstruction.7} parent=43 // pred_region
        %s515 = smul.u32 16, %s16
        %p516 = scmp.lt.s32.totalorder %s515, 63
        %s517 = scalar_select %p516, %s515, 63
        %s518 = smul.addr %s517, 8
        %s519 = scalar_lea.vmem %s4, %s518
      $region48: #{region_reconstruction.7} parent=43 // pred_fallthru
        _
    $region44: #{region_reconstruction.7} parent=5 // pred_fallthru
      _
  $region6: #{region_reconstruction.7} parent=0 // loop_footer
    %s14 = sadd.s32 1, %s10
  $region7: #{region_reconstruction.7} parent=0 // loop_footer_branch
    %9 = sbr.rel target = $region3
  $region8: #{region_reconstruction.7} parent=0 // loop_exit
    _

// kernel: region_reconstruction.6
$region0: #{region_reconstruction.6}
  #allocation0 [shape = 'u32[]', space=smem, size = 0x4, offset = 0x4, fixed_abs, tag = 'smem constant byte address 0x4 - core index']
  #allocation1 [shape = 'u32[144,128]{1,0:T(1,128)}', space=vmem, size = 0x12000, scoped, tag = 'internal scratch']
  %s0 = inlined_call_operand.vmem [shape: bf16[512,16], index: 0, kind: input, shape index: {}]
  %s1 = inlined_call_operand.vmem [shape: bf16[16,256], index: 1, kind: input, shape index: {}]
  %s2 = inlined_call_operand.vmem [shape: f32[1,256], index: 2, kind: input, shape index: {}]
  %s3 = inlined_call_operand.vmem [shape: f32[1,256], index: 3, kind: input, shape index: {}]
  %s4 = inlined_call_operand.vmem [shape: bf16[256,256], index: 4, kind: input, shape index: {}]
  %s5 = inlined_call_operand.vmem [shape: f32[1,256], index: 5, kind: input, shape index: {}]
  %s6 = inlined_call_operand.vmem [shape: f32[1,256], index: 6, kind: input, shape index: {}]
  %s7 = inlined_call_operand.vmem [shape: bf16[256,128], index: 7, kind: input, shape index: {}]
  %s8 = inlined_call_operand.vmem [shape: bf16[512,128], index: 8, kind: output, shape index: {0}]
  %s9 = inlined_call_operand.vmem [shape: f32[2,1,128], index: 9, kind: output, shape index: {1}]
  %s10 = inlined_call_operand.vmem [shape: f32[2,1,128], index: 10, kind: output, shape index: {2}]
  %11 = xla_tuple %s8, %s9, %s10
  %s12 = sld [smem:[#allocation0]]
  $region85: #{region_reconstruction.6} parent=0
    _
  %s14 = ssub.s32 1, %s12
  %s15 = scalar_select 0, %s14, %s12
  loop: start=0, step=1, limit=6
  $region2: #{region_reconstruction.6} parent=0 // loop_pre_header
    _
  $region3: #{region_reconstruction.6} parent=0 // loop_header
    %s17 = sphi 0, %s21
    %p18 = scmp.ge.s32.totalorder %s17, 6
    %s24 = sphi 0, %s36
    %s25 = sphi 0, %s32
    %s26 = sphi 0, %s24
    %s27 = sphi 0, %s25
    %s28 = sphi 0, %s26
    %s29 = sphi 0, %s27
    %s43 = sphi 0, %s45
    %s46 = sphi 0, %s43
    %s47 = sphi 0, %s46
    %s63 = sphi 0, %s47
    %s67 = sphi 0, %s67
    %s69 = sphi 0, %s67
    %s70 = sphi 0, %s69
    %s84 = sphi 0, %s70
    %s88 = sphi 0, %s88
    %s90 = sphi 0, %s88
    %s91 = sphi 0, %s90
    %s105 = sphi 0, %s91
    %s109 = sphi 0, %s109
    %s111 = sphi 0, %s109
    %s112 = sphi 0, %s111
    %s126 = sphi 0, %s112
    %s130 = sphi 0, %s130
    %s132 = sphi 0, %s130
    %s133 = sphi 0, %s132
    %s147 = sphi 0, %s133
    %s151 = sphi 0, %s151
    %s153 = sphi 0, %s151
    %s154 = sphi 0, %s153
    %s168 = sphi 0, %s154
    %s172 = sphi 0, %s172
    %s174 = sphi 0, %s172
    %s175 = sphi 0, %s174
    %s189 = sphi 0, %s175
    %s193 = sphi 0, %s193
    %s195 = sphi 0, %s193
    %s196 = sphi 0, %s195
    %s210 = sphi 0, %s196
    %s220 = sphi 0, %s222
    %s223 = sphi 0, %s220
    %s224 = sphi 0, %s223
    %s240 = sphi 0, %s224
    %s246 = sphi 0, %s248
    %s249 = sphi 0, %s246
    %s250 = sphi 0, %s249
    %s266 = sphi 0, %s250
    %s272 = sphi 0, %s274
    %s275 = sphi 0, %s272
    %s276 = sphi 0, %s275
    %s292 = sphi 0, %s276
  $region4: #{region_reconstruction.6} parent=0 // loop_header_branch
    %20 = sbr.rel (%p18) target = $region8
  $region5: #{region_reconstruction.6} parent=0 // loop_body
    %s22 = ssub.s32 %s17, 1
    %s23 = ssub.s32 %s17, 2
    %s30 = sadd.s32 1, %s25
    %p31 = scmp.ge.s32.totalorder %s30, 2
    %s32 = scalar_select %p31, 0, %s30
    %s33 = sadd.s32 1, %s24
    %s34 = scalar_select %p31, %s33, %s24
    %p35 = scmp.ge.s32.totalorder %s34, 2
    %s36 = scalar_select %p35, 0, %s34
    %s37 = smul.u32 %s24, 2
    %s38 = sadd.s32 %s37, %s25
    %s39 = smul.u32 %s36, 2
    %s40 = sadd.s32 %s39, %s32
    %s41 = ssub.s32 %s38, %s40
    %p42 = scmp.eq.s32.totalorder %s41, 0
    %s44 = sadd.s32 %s43, 1
    %s45 = scalar_select %p42, %s43, %s44
    %p48 = pneg %p42
    %p49 = scmp.eq.s32.totalorder %s17, 3
    %p50 = por %p48, %p49
    %p51 = scmp.ne.s32.totalorder %s43, %s46
    %p52 = scmp.eq.s32.totalorder %s17, 0
    %p53 = por %p51, %p52
    %p54 = scmp.ne.s32.totalorder %s43, %s46
    %p55 = scmp.eq.s32.totalorder %s22, 3
    %p56 = por %p54, %p55
    %p57 = scmp.ne.s32.totalorder %s46, %s47
    %p58 = scmp.eq.s32.totalorder %s22, 0
    %p59 = por %p57, %p58
    %p60 = scmp.ne.s32.totalorder %s46, %s47
    %p61 = scmp.eq.s32.totalorder %s23, 3
    %p62 = por %p60, %p61
    %p64 = scmp.ne.s32.totalorder %s47, %s63
    %p65 = scmp.eq.s32.totalorder %s23, 0
    %p66 = por %p64, %p65
    %s68 = sadd.s32 %s67, 1
    %p71 = scmp.eq.s32.totalorder %s17, 3
    %p72 = scmp.ne.s32.totalorder %s67, %s69
    %p73 = scmp.eq.s32.totalorder %s17, 0
    %p74 = por %p72, %p73
    %p75 = scmp.ne.s32.totalorder %s67, %s69
    %p76 = scmp.eq.s32.totalorder %s22, 3
    %p77 = por %p75, %p76
    %p78 = scmp.ne.s32.totalorder %s69, %s70
    %p79 = scmp.eq.s32.totalorder %s22, 0
    %p80 = por %p78, %p79
    %p81 = scmp.ne.s32.totalorder %s69, %s70
    %p82 = scmp.eq.s32.totalorder %s23, 3
    %p83 = por %p81, %p82
    %p85 = scmp.ne.s32.totalorder %s70, %s84
    %p86 = scmp.eq.s32.totalorder %s23, 0
    %p87 = por %p85, %p86
    %s89 = sadd.s32 %s88, 1
    %p92 = scmp.eq.s32.totalorder %s17, 3
    %p93 = scmp.ne.s32.totalorder %s88, %s90
    %p94 = scmp.eq.s32.totalorder %s17, 0
    %p95 = por %p93, %p94
    %p96 = scmp.ne.s32.totalorder %s88, %s90
    %p97 = scmp.eq.s32.totalorder %s22, 3
    %p98 = por %p96, %p97
    %p99 = scmp.ne.s32.totalorder %s90, %s91
    %p100 = scmp.eq.s32.totalorder %s22, 0
    %p101 = por %p99, %p100
    %p102 = scmp.ne.s32.totalorder %s90, %s91
    %p103 = scmp.eq.s32.totalorder %s23, 3
    %p104 = por %p102, %p103
    %p106 = scmp.ne.s32.totalorder %s91, %s105
    %p107 = scmp.eq.s32.totalorder %s23, 0
    %p108 = por %p106, %p107
    %s110 = sadd.s32 %s109, 1
    %p113 = scmp.eq.s32.totalorder %s17, 3
    %p114 = scmp.ne.s32.totalorder %s109, %s111
    %p115 = scmp.eq.s32.totalorder %s17, 0
    %p116 = por %p114, %p115
    %p117 = scmp.ne.s32.totalorder %s109, %s111
    %p118 = scmp.eq.s32.totalorder %s22, 3
    %p119 = por %p117, %p118
    %p120 = scmp.ne.s32.totalorder %s111, %s112
    %p121 = scmp.eq.s32.totalorder %s22, 0
    %p122 = por %p120, %p121
    %p123 = scmp.ne.s32.totalorder %s111, %s112
    %p124 = scmp.eq.s32.totalorder %s23, 3
    %p125 = por %p123, %p124
    %p127 = scmp.ne.s32.totalorder %s112, %s126
    %p128 = scmp.eq.s32.totalorder %s23, 0
    %p129 = por %p127, %p128
    %s131 = sadd.s32 %s130, 1
    %p134 = scmp.eq.s32.totalorder %s17, 3
    %p135 = scmp.ne.s32.totalorder %s130, %s132
    %p136 = scmp.eq.s32.totalorder %s17, 0
    %p137 = por %p135, %p136
    %p138 = scmp.ne.s32.totalorder %s130, %s132
    %p139 = scmp.eq.s32.totalorder %s22, 3
    %p140 = por %p138, %p139
    %p141 = scmp.ne.s32.totalorder %s132, %s133
    %p142 = scmp.eq.s32.totalorder %s22, 0
    %p143 = por %p141, %p142
    %p144 = scmp.ne.s32.totalorder %s132, %s133
    %p145 = scmp.eq.s32.totalorder %s23, 3
    %p146 = por %p144, %p145
    %p148 = scmp.ne.s32.totalorder %s133, %s147
    %p149 = scmp.eq.s32.totalorder %s23, 0
    %p150 = por %p148, %p149
    %s152 = sadd.s32 %s151, 1
    %p155 = scmp.eq.s32.totalorder %s17, 3
    %p156 = scmp.ne.s32.totalorder %s151, %s153
    %p157 = scmp.eq.s32.totalorder %s17, 0
    %p158 = por %p156, %p157
    %p159 = scmp.ne.s32.totalorder %s151, %s153
    %p160 = scmp.eq.s32.totalorder %s22, 3
    %p161 = por %p159, %p160
    %p162 = scmp.ne.s32.totalorder %s153, %s154
    %p163 = scmp.eq.s32.totalorder %s22, 0
    %p164 = por %p162, %p163
    %p165 = scmp.ne.s32.totalorder %s153, %s154
    %p166 = scmp.eq.s32.totalorder %s23, 3
    %p167 = por %p165, %p166
    %p169 = scmp.ne.s32.totalorder %s154, %s168
    %p170 = scmp.eq.s32.totalorder %s23, 0
    %p171 = por %p169, %p170
    %s173 = sadd.s32 %s172, 1
    %p176 = scmp.eq.s32.totalorder %s17, 3
    %p177 = scmp.ne.s32.totalorder %s172, %s174
    %p178 = scmp.eq.s32.totalorder %s17, 0
    %p179 = por %p177, %p178
    %p180 = scmp.ne.s32.totalorder %s172, %s174
    %p181 = scmp.eq.s32.totalorder %s22, 3
    %p182 = por %p180, %p181
    %p183 = scmp.ne.s32.totalorder %s174, %s175
    %p184 = scmp.eq.s32.totalorder %s22, 0
    %p185 = por %p183, %p184
    %p186 = scmp.ne.s32.totalorder %s174, %s175
    %p187 = scmp.eq.s32.totalorder %s23, 3
    %p188 = por %p186, %p187
    %p190 = scmp.ne.s32.totalorder %s175, %s189
    %p191 = scmp.eq.s32.totalorder %s23, 0
    %p192 = por %p190, %p191
    %s194 = sadd.s32 %s193, 1
    %p197 = scmp.eq.s32.totalorder %s17, 3
    %p198 = scmp.ne.s32.totalorder %s193, %s195
    %p199 = scmp.eq.s32.totalorder %s17, 0
    %p200 = por %p198, %p199
    %p201 = scmp.ne.s32.totalorder %s193, %s195
    %p202 = scmp.eq.s32.totalorder %s22, 3
    %p203 = por %p201, %p202
    %p204 = scmp.ne.s32.totalorder %s195, %s196
    %p205 = scmp.eq.s32.totalorder %s22, 0
    %p206 = por %p204, %p205
    %p207 = scmp.ne.s32.totalorder %s195, %s196
    %p208 = scmp.eq.s32.totalorder %s23, 3
    %p209 = por %p207, %p208
    %p211 = scmp.ne.s32.totalorder %s196, %s210
    %p212 = scmp.eq.s32.totalorder %s23, 0
    %p213 = por %p211, %p212
    %s214 = smul.u32 %s24, 2
    %s215 = sadd.s32 %s214, %s25
    %s216 = smul.u32 %s36, 2
    %s217 = sadd.s32 %s216, %s32
    %s218 = ssub.s32 %s215, %s217
    %p219 = scmp.eq.s32.totalorder %s218, 0
    %s221 = sadd.s32 %s220, 1
    %s222 = scalar_select %p219, %s220, %s221
    %p225 = pneg %p219
    %p226 = scmp.eq.s32.totalorder %s17, 3
    %p227 = por %p225, %p226
    %p228 = scmp.ne.s32.totalorder %s220, %s223
    %p229 = scmp.eq.s32.totalorder %s17, 0
    %p230 = por %p228, %p229
    %p231 = scmp.ne.s32.totalorder %s220, %s223
    %p232 = scmp.eq.s32.totalorder %s22, 3
    %p233 = por %p231, %p232
    %p234 = scmp.ne.s32.totalorder %s223, %s224
    %p235 = scmp.eq.s32.totalorder %s22, 0
    %p236 = por %p234, %p235
    %p237 = scmp.ne.s32.totalorder %s223, %s224
    %p238 = scmp.eq.s32.totalorder %s23, 3
    %p239 = por %p237, %p238
    %p241 = scmp.ne.s32.totalorder %s224, %s240
    %p242 = scmp.eq.s32.totalorder %s23, 0
    %p243 = por %p241, %p242
    %s244 = ssub.s32 %s24, %s36
    %p245 = scmp.eq.s32.totalorder %s244, 0
    %s247 = sadd.s32 %s246, 1
    %s248 = scalar_select %p245, %s246, %s247
    %p251 = pneg %p245
    %p252 = scmp.eq.s32.totalorder %s17, 3
    %p253 = por %p251, %p252
    %p254 = scmp.ne.s32.totalorder %s246, %s249
    %p255 = scmp.eq.s32.totalorder %s17, 0
    %p256 = por %p254, %p255
    %p257 = scmp.ne.s32.totalorder %s246, %s249
    %p258 = scmp.eq.s32.totalorder %s22, 3
    %p259 = por %p257, %p258
    %p260 = scmp.ne.s32.totalorder %s249, %s250
    %p261 = scmp.eq.s32.totalorder %s22, 0
    %p262 = por %p260, %p261
    %p263 = scmp.ne.s32.totalorder %s249, %s250
    %p264 = scmp.eq.s32.totalorder %s23, 3
    %p265 = por %p263, %p264
    %p267 = scmp.ne.s32.totalorder %s250, %s266
    %p268 = scmp.eq.s32.totalorder %s23, 0
    %p269 = por %p267, %p268
    %s270 = ssub.s32 %s24, %s36
    %p271 = scmp.eq.s32.totalorder %s270, 0
    %s273 = sadd.s32 %s272, 1
    %s274 = scalar_select %p271, %s272, %s273
    %p277 = pneg %p271
    %p278 = scmp.eq.s32.totalorder %s17, 3
    %p279 = por %p277, %p278
    %p280 = scmp.ne.s32.totalorder %s272, %s275
    %p281 = scmp.eq.s32.totalorder %s17, 0
    %p282 = por %p280, %p281
    %p283 = scmp.ne.s32.totalorder %s272, %s275
    %p284 = scmp.eq.s32.totalorder %s22, 3
    %p285 = por %p283, %p284
    %p286 = scmp.ne.s32.totalorder %s275, %s276
    %p287 = scmp.eq.s32.totalorder %s22, 0
    %p288 = por %p286, %p287
    %p289 = scmp.ne.s32.totalorder %s275, %s276
    %p290 = scmp.eq.s32.totalorder %s23, 3
    %p291 = por %p289, %p290
    %p293 = scmp.ne.s32.totalorder %s276, %s292
    %p294 = scmp.eq.s32.totalorder %s23, 0
    %p295 = por %p293, %p294
    %p296 = scmp.le.s32.totalorder 1, %s17
    %p297 = scmp.lt.s32.totalorder %s17, 5
    %p298 = pnand %p296, %p297
    %p299 = pneg %p298
    // Predicated region
    $region9: #{region_reconstruction.6} parent=5 // pred_check
      _
    $region10: #{region_reconstruction.6} parent=5 // pred_check_branch
      %301 = sbr.rel (%p298) target = $region12
    $region11: #{region_reconstruction.6} parent=5 // pred_region
      %s302 = ssub.s32 %s17, 1
      // Predicated region
      $region13: #{region_reconstruction.6} parent=11 // pred_check
        %p303 = pneg %p80
      $region14: #{region_reconstruction.6} parent=11 // pred_check_branch
        %305 = sbr.rel (%p303) target = $region16
      $region15: #{region_reconstruction.6} parent=11 // pred_region
        _
      $region16: #{region_reconstruction.6} parent=11 // pred_fallthru
        _
      // Predicated region
      $region17: #{region_reconstruction.6} parent=11 // pred_check
        %p306 = pneg %p101
      $region18: #{region_reconstruction.6} parent=11 // pred_check_branch
        %308 = sbr.rel (%p306) target = $region20
      $region19: #{region_reconstruction.6} parent=11 // pred_region
        _
      $region20: #{region_reconstruction.6} parent=11 // pred_fallthru
        _
      // Predicated region
      $region21: #{region_reconstruction.6} parent=11 // pred_check
        %p309 = pneg %p122
      $region22: #{region_reconstruction.6} parent=11 // pred_check_branch
        %311 = sbr.rel (%p309) target = $region24
      $region23: #{region_reconstruction.6} parent=11 // pred_region
        _
      $region24: #{region_reconstruction.6} parent=11 // pred_fallthru
        _
      // Predicated region
      $region25: #{region_reconstruction.6} parent=11 // pred_check
        %p312 = pneg %p143
      $region26: #{region_reconstruction.6} parent=11 // pred_check_branch
        %314 = sbr.rel (%p312) target = $region28
      $region27: #{region_reconstruction.6} parent=11 // pred_region
        _
      $region28: #{region_reconstruction.6} parent=11 // pred_fallthru
        _
      // Predicated region
      $region29: #{region_reconstruction.6} parent=11 // pred_check
        %p315 = pneg %p164
      $region30: #{region_reconstruction.6} parent=11 // pred_check_branch
        %317 = sbr.rel (%p315) target = $region32
      $region31: #{region_reconstruction.6} parent=11 // pred_region
        _
      $region32: #{region_reconstruction.6} parent=11 // pred_fallthru
        _
      // Predicated region
      $region33: #{region_reconstruction.6} parent=11 // pred_check
        %p318 = pneg %p185
      $region34: #{region_reconstruction.6} parent=11 // pred_check_branch
        %320 = sbr.rel (%p318) target = $region36
      $region35: #{region_reconstruction.6} parent=11 // pred_region
        _
      $region36: #{region_reconstruction.6} parent=11 // pred_fallthru
        _
      // Predicated region
      $region37: #{region_reconstruction.6} parent=11 // pred_check
        %p321 = pneg %p206
      $region38: #{region_reconstruction.6} parent=11 // pred_check_branch
        %323 = sbr.rel (%p321) target = $region40
      $region39: #{region_reconstruction.6} parent=11 // pred_region
        _
      $region40: #{region_reconstruction.6} parent=11 // pred_fallthru
        _
    $region12: #{region_reconstruction.6} parent=5 // pred_fallthru
      _
    %p324 = scmp.lt.s32.totalorder %s17, 4
    // Predicated region
    $region41: #{region_reconstruction.6} parent=5 // pred_check
      %p325 = pneg %p324
    $region42: #{region_reconstruction.6} parent=5 // pred_check_branch
      %327 = sbr.rel (%p325) target = $region44
    $region43: #{region_reconstruction.6} parent=5 // pred_region
      // Predicated region
      $region45: #{region_reconstruction.6} parent=43 // pred_check
        %p328 = pneg %p53
      $region46: #{region_reconstruction.6} parent=43 // pred_check_branch
        %330 = sbr.rel (%p328) target = $region48
      $region47: #{region_reconstruction.6} parent=43 // pred_region
        %s331 = smul.u32 %s24, 2
        %s332 = sadd.s32 %s331, %s25
        %s333 = smul.u32 16, %s332
        %p334 = scmp.lt.s32.totalorder %s333, 63
        %s335 = scalar_select %p334, %s333, 63
        %s336 = smul.addr %s335, 4
        %s337 = scalar_lea.vmem %s0, %s336
        %s338 = smul.u32 %s24, 2
        %s339 = sadd.s32 %s338, %s25
        %s340 = smul.u32 16, %s339
      $region48: #{region_reconstruction.6} parent=43 // pred_fallthru
        _
    $region44: #{region_reconstruction.6} parent=5 // pred_fallthru
      _
    %p341 = scmp.le.s32.totalorder 1, %s17
    %p342 = scmp.lt.s32.totalorder %s17, 5
    %p343 = pnand %p341, %p342
    %p344 = pneg %p343
    // Predicated region
    $region49: #{region_reconstruction.6} parent=5 // pred_check
      _
    $region50: #{region_reconstruction.6} parent=5 // pred_check_branch
      %346 = sbr.rel (%p343) target = $region52
    $region51: #{region_reconstruction.6} parent=5 // pred_region
      %s347 = ssub.s32 %s17, 1
      %s348 = smul.u32 %s26, 2
      %s349 = sadd.s32 %s348, %s27
      %s350 = smul.u32 16, %s349
      %p351 = scmp.lt.s32.totalorder %s350, 63
      %s352 = scalar_select %p351, %s350, 63
      %s353 = smul.addr %s352, 4
      %s354 = scalar_lea.vmem %s0, %s353
      %p355 = pneg %p59
      %p356 = pneg %p56
      %p357 = pneg %p80
      %p358 = pneg %p77
      %p359 = pneg %p101
      %p360 = pneg %p98
      %p361 = pneg %p122
      %p362 = pneg %p119
      %p363 = pneg %p143
      %p364 = pneg %p140
      %p365 = pneg %p164
      %p366 = pneg %p161
      %p367 = pneg %p185
      %p368 = pneg %p182
      %p369 = pneg %p206
      %p370 = pneg %p203
      %p371 = pneg %p236
      %p372 = pneg %p233
      %s373 = smul.u32 %s26, 2
      %s374 = sadd.s32 %s373, %s27
      %s375 = smul.u32 16, %s374
      %p376 = scmp.lt.s32.totalorder %s375, 63
      %s377 = scalar_select %p376, %s375, 63
      %s378 = smul.addr %s377, 4
      %s379 = scalar_lea.vmem %s8, %s378
      %p380 = pneg %p262
      %p381 = pneg %p259
      %p382 = scmp.lt.s32.totalorder %s26, 1
      %s383 = scalar_select %p382, %s26, 1
      %s384 = scalar_lea.vmem %s9, %s383
      %p385 = pneg %p288
      %p386 = pneg %p285
      %p387 = scmp.lt.s32.totalorder %s26, 1
      %s388 = scalar_select %p387, %s26, 1
      %s389 = scalar_lea.vmem %s10, %s388
      %s390 = smul.u32 %s26, 2
      %s391 = sadd.s32 %s390, %s27
      %s392 = smul.u32 16, %s391
      %p393 = scmp.lt.s32.totalorder %s392, 63
      %s394 = scalar_select %p393, %s392, 63
      %s395 = smul.addr %s394, 4
      %s396 = scalar_lea.vmem %s0, %s395
      %s397 = smul.u32 %s26, 2
      %s398 = sadd.s32 %s397, %s27
      %s399 = smul.u32 16, %s398
      %s400 = smul.u32 %s26, 2
      %s401 = sadd.s32 %s400, %s27
      %s402 = smul.u32 16, %s401
      %p403 = scmp.lt.s32.totalorder %s402, 63
      %s404 = scalar_select %p403, %s402, 63
      %s405 = smul.addr %s404, 4
      %s406 = scalar_lea.vmem %s8, %s405
      %s407 = smul.u32 %s26, 2
      %s408 = sadd.s32 %s407, %s27
      %s409 = smul.u32 16, %s408
      %p410 = scmp.lt.s32.totalorder %s26, 1
      %s411 = scalar_select %p410, %s26, 1
      %s412 = scalar_lea.vmem %s9, %s411
      %p413 = scmp.lt.s32.totalorder %s26, 1
      %s414 = scalar_select %p413, %s26, 1
      %s415 = scalar_lea.vmem %s10, %s414
      %p417 = scmp.eq.s32.totalorder %s27, 0
      // Predicated region
      $region53: #{region_reconstruction.6} parent=51 // pred_check
        %p418 = pneg %p417
      $region54: #{region_reconstruction.6} parent=51 // pred_check_branch
        %420 = sbr.rel (%p418) target = $region56
      $region55: #{region_reconstruction.6} parent=51 // pred_region
        %421 = vst [vmem:[%s412] sm:$0x1] 0.0
        %422 = vst [vmem:[%s415] sm:$0x1] 0.0
      $region56: #{region_reconstruction.6} parent=51 // pred_fallthru
        _
      %v423 = vld [vmem:[%s396] sm:$0xf]
      %v424 = vld [vmem:[%s396 + $0x4] sm:$0xf]
      %v425 = vld [vmem:[%s396 + $0x8] sm:$0xf]
      %v426 = vld [vmem:[%s396 + $0xc] sm:$0xf]
      %v427 = vld [vmem:[%s396 + $0x10] sm:$0xf]
      %v428 = vld [vmem:[%s396 + $0x14] sm:$0xf]
      %v429 = vld [vmem:[%s396 + $0x18] sm:$0xf]
      %v430 = vld [vmem:[%s396 + $0x1c] sm:$0xf]
      %v431 = vld [vmem:[%s396 + $0x20] sm:$0xf]
      %v432 = vld [vmem:[%s396 + $0x24] sm:$0xf]
      %v433 = vld [vmem:[%s396 + $0x28] sm:$0xf]
      %v434 = vld [vmem:[%s396 + $0x2c] sm:$0xf]
      %v435 = vld [vmem:[%s396 + $0x30] sm:$0xf]
      %v436 = vld [vmem:[%s396 + $0x34] sm:$0xf]
      %v437 = vld [vmem:[%s396 + $0x38] sm:$0xf]
      %v438 = vld [vmem:[%s396 + $0x3c] sm:$0xf]
      %v439 = vld [vmem:[%s1] sm:$0xff]
      %v440 = vld [vmem:[%s1 + $0x8] sm:$0xff]
      %v457 = vunpack.c.l.b16 %v423
      %v458 = vunpack.c.l.b16 %v424
      %v459 = vunpack.c.l.b16 %v425
      %v460 = vunpack.c.l.b16 %v426
      %v461 = vunpack.c.l.b16 %v427
      %v462 = vunpack.c.l.b16 %v428
      %v463 = vunpack.c.l.b16 %v429
      %v464 = vunpack.c.l.b16 %v430
      %v465 = vunpack.c.l.b16 %v431
      %v466 = vunpack.c.l.b16 %v432
      %v467 = vunpack.c.l.b16 %v433
      %v468 = vunpack.c.l.b16 %v434
      %v469 = vunpack.c.l.b16 %v435
      %v470 = vunpack.c.l.b16 %v436
      %v471 = vunpack.c.l.b16 %v437
      %v472 = vunpack.c.l.b16 %v438
      %v473 = vpack.c.b16 %v458, %v457
      %v474 = vpack.c.b16 %v460, %v459
      %v475 = vpack.c.b16 %v462, %v461
      %v476 = vpack.c.b16 %v464, %v463
      %v477 = vpack.c.b16 %v466, %v465
      %v478 = vpack.c.b16 %v468, %v467
      %v479 = vpack.c.b16 %v470, %v469
      %v480 = vpack.c.b16 %v472, %v471
      %v483 = vunpack.c.l.b16 %v439
      %v484 = vunpack.c.h.b16 %v439
      %v485 = vunpack.c.l.b16 %v440
      %v486 = vunpack.c.h.b16 %v440
      %v487 = vpack.c.b16 %v485, %v483
      %v488 = vpack.c.b16 %v486, %v484
      %vm491 = vcmask 130048
      %v493 = vsel %vm491, %v473, 0
      %v496 = vsel %vm491, %v474, 0
      %v499 = vsel %vm491, %v475, 0
      %v502 = vsel %vm491, %v476, 0
      %v505 = vsel %vm491, %v477, 0
      %v508 = vsel %vm491, %v478, 0
      %v511 = vsel %vm491, %v479, 0
      %v514 = vsel %vm491, %v480, 0
      %516 = vmatprep.subr.bf16.mxu0 %v488
      %517 = vmatpush1.bf16.msra.mxu0 %v487
      %518 = vmatprep.subr.bf16.mxu0 0
      %519 = vmatpush1.bf16.msra.mxu0 0
      %520 = vmatprep.subr.bf16.mxu0 0
      %521 = vmatpush1.bf16.msra.mxu0 0
      %522 = vmatprep.subr.bf16.mxu0 0
      %523 = vmatpush1.bf16.msra.mxu0 0
      %524 = vmatprep.subr.bf16.mxu0 0
      %525 = vmatpush1.bf16.msra.mxu0 0
      %526 = vmatprep.subr.bf16.mxu0 0
      %527 = vmatpush1.bf16.msra.mxu0 0
      %528 = vmatprep.subr.bf16.mxu0 0
      %529 = vmatpush1.bf16.msra.mxu0 0
      %530 = vmatprep.subr.bf16.mxu0 0
      %531 = vmatpush1.bf16.msra.mxu0 0
      %532 = vmatprep.subr.bf16.mxu0 0
      %533 = vmatpush1.bf16.msra.mxu0 0
      %534 = vmatprep.subr.bf16.mxu0 0
      %535 = vmatpush1.bf16.msra.mxu0 0
      %536 = vmatprep.subr.bf16.mxu0 0
      %537 = vmatpush1.bf16.msra.mxu0 0
      %538 = vmatprep.subr.bf16.mxu0 0
      %539 = vmatpush1.bf16.msra.mxu0 0
      %540 = vmatprep.subr.bf16.mxu0 0
      %541 = vmatpush1.bf16.msra.mxu0 0
      %542 = vmatprep.subr.bf16.mxu0 0
      %543 = vmatpush1.bf16.msra.mxu0 0
      %544 = vmatprep.subr.bf16.mxu0 0
      %545 = vmatpush1.bf16.msra.mxu0 0
      %546 = vmatprep.subr.bf16.mxu0 0
      %547 = vmatpush1.bf16.msra.mxu0 0
      %548 = vmatprep.mubr.bf16.mxu0 0
      %549 = vmatmul.mubr.bf16.gmra.mrb[0].mxu0 %v493
      %v550 = vpop.f32.mrb[0].mxu0
      %v551 = vadd.f32 0.0, %v550
      %v552 = vpop.f32.mrb[0].mxu0
      %v553 = vadd.f32 0.0, %v552
      %v554 = vpop.f32.mrb[0].mxu0
      %v555 = vadd.f32 0.0, %v554
      %v556 = vpop.f32.mrb[0].mxu0
      %v557 = vadd.f32 0.0, %v556
      %558 = vmatprep.mubr.bf16.mxu0 0
      %559 = vmatmul.mubr.bf16.gmra.mrb[0].mxu0 %v496
      %v560 = vpop.f32.mrb[0].mxu0
      %v561 = vadd.f32 0.0, %v560
      %v562 = vpop.f32.mrb[0].mxu0
      %v563 = vadd.f32 0.0, %v562
      %v564 = vpop.f32.mrb[0].mxu0
      %v565 = vadd.f32 0.0, %v564
      %v566 = vpop.f32.mrb[0].mxu0
      %v567 = vadd.f32 0.0, %v566
      %568 = vmatprep.mubr.bf16.mxu0 0
      %569 = vmatmul.mubr.bf16.gmra.mrb[0].mxu0 %v499
      %v570 = vpop.f32.mrb[0].mxu0
      %v571 = vadd.f32 0.0, %v570
      %v572 = vpop.f32.mrb[0].mxu0
      %v573 = vadd.f32 0.0, %v572
      %v574 = vpop.f32.mrb[0].mxu0
      %v575 = vadd.f32 0.0, %v574
      %v576 = vpop.f32.mrb[0].mxu0
      %v577 = vadd.f32 0.0, %v576
      %578 = vmatprep.mubr.bf16.mxu0 0
      %579 = vmatmul.mubr.bf16.gmra.mrb[0].mxu0 %v502
      %v580 = vpop.f32.mrb[0].mxu0
      %v581 = vadd.f32 0.0, %v580
      %v582 = vpop.f32.mrb[0].mxu0
      %v583 = vadd.f32 0.0, %v582
      %v584 = vpop.f32.mrb[0].mxu0
      %v585 = vadd.f32 0.0, %v584
      %v586 = vpop.f32.mrb[0].mxu0
      %v587 = vadd.f32 0.0, %v586
      %588 = vmatprep.mubr.bf16.mxu0 0
      %589 = vmatmul.mubr.bf16.gmra.mrb[0].mxu0 %v505
      %v590 = vpop.f32.mrb[0].mxu0
      %v591 = vadd.f32 0.0, %v590
      %v592 = vpop.f32.mrb[0].mxu0
      %v593 = vadd.f32 0.0, %v592
      %v594 = vpop.f32.mrb[0].mxu0
      %v595 = vadd.f32 0.0, %v594
      %v596 = vpop.f32.mrb[0].mxu0
      %v597 = vadd.f32 0.0, %v596
      %598 = vmatprep.mubr.bf16.mxu0 0
      %599 = vmatmul.mubr.bf16.gmra.mrb[0].mxu0 %v508
      %v600 = vpop.f32.mrb[0].mxu0
      %v601 = vadd.f32 0.0, %v600
      %v602 = vpop.f32.mrb[0].mxu0
      %v603 = vadd.f32 0.0, %v602
      %v604 = vpop.f32.mrb[0].mxu0
      %v605 = vadd.f32 0.0, %v604
      %v606 = vpop.f32.mrb[0].mxu0
      %v607 = vadd.f32 0.0, %v606
      %608 = vmatprep.mubr.bf16.mxu0 0
      %609 = vmatmul.mubr.bf16.gmra.mrb[0].mxu0 %v511
      %v610 = vpop.f32.mrb[0].mxu0
      %v611 = vadd.f32 0.0, %v610
      %v612 = vpop.f32.mrb[0].mxu0
      %v613 = vadd.f32 0.0, %v612
      %v614 = vpop.f32.mrb[0].mxu0
      %v615 = vadd.f32 0.0, %v614
      %v616 = vpop.f32.mrb[0].mxu0
      %v617 = vadd.f32 0.0, %v616
      %618 = vmatprep.mubr.bf16.mxu0 0
      %619 = vmatmul.mubr.bf16.gmra.mrb[0].mxu0 %v514
      %v620 = vpop.f32.mrb[0].mxu0
      %v621 = vadd.f32 0.0, %v620
      %v622 = vpop.f32.mrb[0].mxu0
      %v623 = vadd.f32 0.0, %v622
      %v624 = vpop.f32.mrb[0].mxu0
      %v625 = vadd.f32 0.0, %v624
      %v626 = vpop.f32.mrb[0].mxu0
      %v627 = vadd.f32 0.0, %v626
      %628 = vdwg.mxu0
      %v629 = vld [vmem:[%s2] sm:$0x3]
      %v631 = vlaneseq
      %v632 = vshrl.u32 %v631, 7
      %v633 = vsub.s32 0, %v632
      %v634 = vrot.slane %v629, %v633
      %v635 = vlaneseq
      %v636 = vshrl.u32 %v635, 7
      %v637 = vsub.s32 1, %v636
      %v638 = vrot.slane %v629, %v637
      %v641 = vmul.f32 %v551, %v634
      %v642 = vmul.f32 %v553, %v638
      %v643 = vmul.f32 %v555, %v634
      %v644 = vmul.f32 %v557, %v638
      %v645 = vmul.f32 %v561, %v634
      %v646 = vmul.f32 %v563, %v638
      %v647 = vmul.f32 %v565, %v634
      %v648 = vmul.f32 %v567, %v638
      %v649 = vmul.f32 %v571, %v634
      %v650 = vmul.f32 %v573, %v638
      %v651 = vmul.f32 %v575, %v634
      %v652 = vmul.f32 %v577, %v638
      %v653 = vmul.f32 %v581, %v634
      %v654 = vmul.f32 %v583, %v638
      %v655 = vmul.f32 %v585, %v634
      %v656 = vmul.f32 %v587, %v638
      %v657 = vmul.f32 %v591, %v634
      %v658 = vmul.f32 %v593, %v638
      %v659 = vmul.f32 %v595, %v634
      %v660 = vmul.f32 %v597, %v638
      %v661 = vmul.f32 %v601, %v634
      %v662 = vmul.f32 %v603, %v638
      %v663 = vmul.f32 %v605, %v634
      %v664 = vmul.f32 %v607, %v638
      %v665 = vmul.f32 %v611, %v634
      %v666 = vmul.f32 %v613, %v638
      %v667 = vmul.f32 %v615, %v634
      %v668 = vmul.f32 %v617, %v638
      %v669 = vmul.f32 %v621, %v634
      %v670 = vmul.f32 %v623, %v638
      %v671 = vmul.f32 %v625, %v634
      %v672 = vmul.f32 %v627, %v638
      %v673 = vld [vmem:[%s3] sm:$0x3]
      %v675 = vlaneseq
      %v676 = vshrl.u32 %v675, 7
      %v677 = vsub.s32 0, %v676
      %v678 = vrot.slane %v673, %v677
      %v679 = vlaneseq
      %v680 = vshrl.u32 %v679, 7
      %v681 = vsub.s32 1, %v680
      %v682 = vrot.slane %v673, %v681
      %v685 = vadd.f32 %v641, %v678
      %v686 = vadd.f32 %v642, %v682
      %v687 = vadd.f32 %v643, %v678
      %v688 = vadd.f32 %v644, %v682
      %v689 = vadd.f32 %v645, %v678
      %v690 = vadd.f32 %v646, %v682
      %v691 = vadd.f32 %v647, %v678
      %v692 = vadd.f32 %v648, %v682
      %v693 = vadd.f32 %v649, %v678
      %v694 = vadd.f32 %v650, %v682
      %v695 = vadd.f32 %v651, %v678
      %v696 = vadd.f32 %v652, %v682
      %v697 = vadd.f32 %v653, %v678
      %v698 = vadd.f32 %v654, %v682
      %v699 = vadd.f32 %v655, %v678
      %v700 = vadd.f32 %v656, %v682
      %v701 = vadd.f32 %v657, %v678
      %v702 = vadd.f32 %v658, %v682
      %v703 = vadd.f32 %v659, %v678
      %v704 = vadd.f32 %v660, %v682
      %v705 = vadd.f32 %v661, %v678
      %v706 = vadd.f32 %v662, %v682
      %v707 = vadd.f32 %v663, %v678
      %v708 = vadd.f32 %v664, %v682
      %v709 = vadd.f32 %v665, %v678
      %v710 = vadd.f32 %v666, %v682
      %v711 = vadd.f32 %v667, %v678
      %v712 = vadd.f32 %v668, %v682
      %v713 = vadd.f32 %v669, %v678
      %v714 = vadd.f32 %v670, %v682
      %v715 = vadd.f32 %v671, %v678
      %v716 = vadd.f32 %v672, %v682
      %v717 = vmul.f32 %v685, 0.2
      %v718 = vmul.f32 %v686, 0.2
      %v719 = vmul.f32 %v687, 0.2
      %v720 = vmul.f32 %v688, 0.2
      %v721 = vmul.f32 %v689, 0.2
      %v722 = vmul.f32 %v690, 0.2
      %v723 = vmul.f32 %v691, 0.2
      %v724 = vmul.f32 %v692, 0.2
      %v725 = vmul.f32 %v693, 0.2
      %v726 = vmul.f32 %v694, 0.2
      %v727 = vmul.f32 %v695, 0.2
      %v728 = vmul.f32 %v696, 0.2
      %v729 = vmul.f32 %v697, 0.2
      %v730 = vmul.f32 %v698, 0.2
      %v731 = vmul.f32 %v699, 0.2
      %v732 = vmul.f32 %v700, 0.2
      %v733 = vmul.f32 %v701, 0.2
      %v734 = vmul.f32 %v702, 0.2
      %v735 = vmul.f32 %v703, 0.2
      %v736 = vmul.f32 %v704, 0.2
      %v737 = vmul.f32 %v705, 0.2
      %v738 = vmul.f32 %v706, 0.2
      %v739 = vmul.f32 %v707, 0.2
      %v740 = vmul.f32 %v708, 0.2
      %v741 = vmul.f32 %v709, 0.2
      %v742 = vmul.f32 %v710, 0.2
      %v743 = vmul.f32 %v711, 0.2
      %v744 = vmul.f32 %v712, 0.2
      %v745 = vmul.f32 %v713, 0.2
      %v746 = vmul.f32 %v714, 0.2
      %v747 = vmul.f32 %v715, 0.2
      %v748 = vmul.f32 %v716, 0.2
      %v749 = vmax.f32 %v685, %v717
      %v750 = vmax.f32 %v686, %v718
      %v751 = vmax.f32 %v687, %v719
      %v752 = vmax.f32 %v688, %v720
      %v753 = vmax.f32 %v689, %v721
      %v754 = vmax.f32 %v690, %v722
      %v755 = vmax.f32 %v691, %v723
      %v756 = vmax.f32 %v692, %v724
      %v757 = vmax.f32 %v693, %v725
      %v758 = vmax.f32 %v694, %v726
      %v759 = vmax.f32 %v695, %v727
      %v760 = vmax.f32 %v696, %v728
      %v761 = vmax.f32 %v697, %v729
      %v762 = vmax.f32 %v698, %v730
      %v763 = vmax.f32 %v699, %v731
      %v764 = vmax.f32 %v700, %v732
      %v765 = vmax.f32 %v701, %v733
      %v766 = vmax.f32 %v702, %v734
      %v767 = vmax.f32 %v703, %v735
      %v768 = vmax.f32 %v704, %v736
      %v769 = vmax.f32 %v705, %v737
      %v770 = vmax.f32 %v706, %v738
      %v771 = vmax.f32 %v707, %v739
      %v772 = vmax.f32 %v708, %v740
      %v773 = vmax.f32 %v709, %v741
      %v774 = vmax.f32 %v710, %v742
      %v775 = vmax.f32 %v711, %v743
      %v776 = vmax.f32 %v712, %v744
      %v777 = vmax.f32 %v713, %v745
      %v778 = vmax.f32 %v714, %v746
      %v779 = vmax.f32 %v715, %v747
      %v780 = vmax.f32 %v716, %v748
      %v781 = vpack.c.bf16 %v751, %v749
      %v782 = vpack.c.bf16 %v752, %v750
      %v783 = vpack.c.bf16 %v755, %v753
      %v784 = vpack.c.bf16 %v756, %v754
      %v785 = vpack.c.bf16 %v759, %v757
      %v786 = vpack.c.bf16 %v760, %v758
      %v787 = vpack.c.bf16 %v763, %v761
      %v788 = vpack.c.bf16 %v764, %v762
      %v789 = vpack.c.bf16 %v767, %v765
      %v790 = vpack.c.bf16 %v768, %v766
      %v791 = vpack.c.bf16 %v771, %v769
      %v792 = vpack.c.bf16 %v772, %v770
      %v793 = vpack.c.bf16 %v775, %v773
      %v794 = vpack.c.bf16 %v776, %v774
      %v795 = vpack.c.bf16 %v779, %v777
      %v796 = vpack.c.bf16 %v780, %v778
      %v797 = vld [vmem:[%s4] sm:$0xff]
      %v798 = vld [vmem:[%s4 + $0x8] sm:$0xff]
      %v799 = vld [vmem:[%s4 + $0x10] sm:$0xff]
      %v800 = vld [vmem:[%s4 + $0x18] sm:$0xff]
      %v801 = vld [vmem:[%s4 + $0x20] sm:$0xff]
      %v802 = vld [vmem:[%s4 + $0x28] sm:$0xff]
      %v803 = vld [vmem:[%s4 + $0x30] sm:$0xff]
      %v804 = vld [vmem:[%s4 + $0x38] sm:$0xff]
      %v805 = vld [vmem:[%s4 + $0x40] sm:$0xff]
      %v806 = vld [vmem:[%s4 + $0x48] sm:$0xff]
      %v807 = vld [vmem:[%s4 + $0x50] sm:$0xff]
      %v808 = vld [vmem:[%s4 + $0x58] sm:$0xff]
      %v809 = vld [vmem:[%s4 + $0x60] sm:$0xff]
      %v810 = vld [vmem:[%s4 + $0x68] sm:$0xff]
      %v811 = vld [vmem:[%s4 + $0x70] sm:$0xff]
      %v812 = vld [vmem:[%s4 + $0x78] sm:$0xff]
      %v813 = vld [vmem:[%s4 + $0x80] sm:$0xff]
      %v814 = vld [vmem:[%s4 + $0x88] sm:$0xff]
      %v815 = vld [vmem:[%s4 + $0x90] sm:$0xff]
      %v816 = vld [vmem:[%s4 + $0x98] sm:$0xff]
      %v817 = vld [vmem:[%s4 + $0xa0] sm:$0xff]
      %v818 = vld [vmem:[%s4 + $0xa8] sm:$0xff]
      %v819 = vld [vmem:[%s4 + $0xb0] sm:$0xff]
      %v820 = vld [vmem:[%s4 + $0xb8] sm:$0xff]
      %v821 = vld [vmem:[%s4 + $0xc0] sm:$0xff]
      %v822 = vld [vmem:[%s4 + $0xc8] sm:$0xff]
      %v823 = vld [vmem:[%s4 + $0xd0] sm:$0xff]
      %v824 = vld [vmem:[%s4 + $0xd8] sm:$0xff]
      %v825 = vld [vmem:[%s4 + $0xe0] sm:$0xff]
      %v826 = vld [vmem:[%s4 + $0xe8] sm:$0xff]
      %v827 = vld [vmem:[%s4 + $0xf0] sm:$0xff]
      %v828 = vld [vmem:[%s4 + $0xf8] sm:$0xff]
      %v861 = vunpack.c.l.b16 %v797
      %v862 = vunpack.c.h.b16 %v797
      %v863 = vunpack.c.l.b16 %v798
      %v864 = vunpack.c.h.b16 %v798
      %v865 = vunpack.c.l.b16 %v799
      %v866 = vunpack.c.h.b16 %v799
      %v867 = vunpack.c.l.b16 %v800
      %v868 = vunpack.c.h.b16 %v800
      %v869 = vunpack.c.l.b16 %v801
      %v870 = vunpack.c.h.b16 %v801
      %v871 = vunpack.c.l.b16 %v802
      %v872 = vunpack.c.h.b16 %v802
      %v873 = vunpack.c.l.b16 %v803
      %v874 = vunpack.c.h.b16 %v803
      %v875 = vunpack.c.l.b16 %v804
      %v876 = vunpack.c.h.b16 %v804
      %v877 = vunpack.c.l.b16 %v805
      %v878 = vunpack.c.h.b16 %v805
      %v879 = vunpack.c.l.b16 %v806
      %v880 = vunpack.c.h.b16 %v806
      %v881 = vunpack.c.l.b16 %v807
      %v882 = vunpack.c.h.b16 %v807
      %v883 = vunpack.c.l.b16 %v808
      %v884 = vunpack.c.h.b16 %v808
      %v885 = vunpack.c.l.b16 %v809
      %v886 = vunpack.c.h.b16 %v809
      %v887 = vunpack.c.l.b16 %v810
      %v888 = vunpack.c.h.b16 %v810
      %v889 = vunpack.c.l.b16 %v811
      %v890 = vunpack.c.h.b16 %v811
      %v891 = vunpack.c.l.b16 %v812
      %v892 = vunpack.c.h.b16 %v812
      %v893 = vunpack.c.l.b16 %v813
      %v894 = vunpack.c.h.b16 %v813
      %v895 = vunpack.c.l.b16 %v814
      %v896 = vunpack.c.h.b16 %v814
      %v897 = vunpack.c.l.b16 %v815
      %v898 = vunpack.c.h.b16 %v815
      %v899 = vunpack.c.l.b16 %v816
      %v900 = vunpack.c.h.b16 %v816
      %v901 = vunpack.c.l.b16 %v817
      %v902 = vunpack.c.h.b16 %v817
      %v903 = vunpack.c.l.b16 %v818
      %v904 = vunpack.c.h.b16 %v818
      %v905 = vunpack.c.l.b16 %v819
      %v906 = vunpack.c.h.b16 %v819
      %v907 = vunpack.c.l.b16 %v820
      %v908 = vunpack.c.h.b16 %v820
      %v909 = vunpack.c.l.b16 %v821
      %v910 = vunpack.c.h.b16 %v821
      %v911 = vunpack.c.l.b16 %v822
      %v912 = vunpack.c.h.b16 %v822
      %v913 = vunpack.c.l.b16 %v823
      %v914 = vunpack.c.h.b16 %v823
      %v915 = vunpack.c.l.b16 %v824
      %v916 = vunpack.c.h.b16 %v824
      %v917 = vunpack.c.l.b16 %v825
      %v918 = vunpack.c.h.b16 %v825
      %v919 = vunpack.c.l.b16 %v826
      %v920 = vunpack.c.h.b16 %v826
      %v921 = vunpack.c.l.b16 %v827
      %v922 = vunpack.c.h.b16 %v827
      %v923 = vunpack.c.l.b16 %v828
      %v924 = vunpack.c.h.b16 %v828
      %v925 = vpack.c.b16 %v863, %v861
      %v926 = vpack.c.b16 %v864, %v862
      %v927 = vpack.c.b16 %v867, %v865
      %v928 = vpack.c.b16 %v868, %v866
      %v929 = vpack.c.b16 %v871, %v869
      %v930 = vpack.c.b16 %v872, %v870
      %v931 = vpack.c.b16 %v875, %v873
      %v932 = vpack.c.b16 %v876, %v874
      %v933 = vpack.c.b16 %v879, %v877
      %v934 = vpack.c.b16 %v880, %v878
      %v935 = vpack.c.b16 %v883, %v881
      %v936 = vpack.c.b16 %v884, %v882
      %v937 = vpack.c.b16 %v887, %v885
      %v938 = vpack.c.b16 %v888, %v886
      %v939 = vpack.c.b16 %v891, %v889
      %v940 = vpack.c.b16 %v892, %v890
      %v941 = vpack.c.b16 %v895, %v893
      %v942 = vpack.c.b16 %v896, %v894
      %v943 = vpack.c.b16 %v899, %v897
      %v944 = vpack.c.b16 %v900, %v898
      %v945 = vpack.c.b16 %v903, %v901
      %v946 = vpack.c.b16 %v904, %v902
      %v947 = vpack.c.b16 %v907, %v905
      %v948 = vpack.c.b16 %v908, %v906
      %v949 = vpack.c.b16 %v911, %v909
      %v950 = vpack.c.b16 %v912, %v910
      %v951 = vpack.c.b16 %v915, %v913
      %v952 = vpack.c.b16 %v916, %v914
      %v953 = vpack.c.b16 %v919, %v917
      %v954 = vpack.c.b16 %v920, %v918
      %v955 = vpack.c.b16 %v923, %v921
      %v956 = vpack.c.b16 %v924, %v922
      %989 = vmatprep.subr.bf16.mxu0 %v926
      %990 = vmatpush1.bf16.msra.mxu0 %v925
      %991 = vmatprep.subr.bf16.mxu0 %v928
      %992 = vmatpush1.bf16.msra.mxu0 %v927
      %993 = vmatprep.subr.bf16.mxu0 %v930
      %994 = vmatpush1.bf16.msra.mxu0 %v929
      %995 = vmatprep.subr.bf16.mxu0 %v932
      %996 = vmatpush1.bf16.msra.mxu0 %v931
      %997 = vmatprep.subr.bf16.mxu0 %v934
      %998 = vmatpush1.bf16.msra.mxu0 %v933
      %999 = vmatprep.subr.bf16.mxu0 %v936
      %1000 = vmatpush1.bf16.msra.mxu0 %v935
      %1001 = vmatprep.subr.bf16.mxu0 %v938
      %1002 = vmatpush1.bf16.msra.mxu0 %v937
      %1003 = vmatprep.subr.bf16.mxu0 %v940
      %1004 = vmatpush1.bf16.msra.mxu0 %v939
      %1005 = vmatprep.subr.bf16.mxu0 %v942
      %1006 = vmatpush1.bf16.msra.mxu0 %v941
      %1007 = vmatprep.subr.bf16.mxu0 %v944
      %1008 = vmatpush1.bf16.msra.mxu0 %v943
      %1009 = vmatprep.subr.bf16.mxu0 %v946
      %1010 = vmatpush1.bf16.msra.mxu0 %v945
      %1011 = vmatprep.subr.bf16.mxu0 %v948
      %1012 = vmatpush1.bf16.msra.mxu0 %v947
      %1013 = vmatprep.subr.bf16.mxu0 %v950
      %1014 = vmatpush1.bf16.msra.mxu0 %v949
      %1015 = vmatprep.subr.bf16.mxu0 %v952
      %1016 = vmatpush1.bf16.msra.mxu0 %v951
      %1017 = vmatprep.subr.bf16.mxu0 %v954
      %1018 = vmatpush1.bf16.msra.mxu0 %v953
      %1019 = vmatprep.subr.bf16.mxu0 %v956
      %1020 = vmatpush1.bf16.msra.mxu0 %v955
      %1021 = vmatprep.mubr.bf16.mxu0 %v782
      %1022 = vmatmul.mubr.bf16.gmra.mrb[0].mxu0 %v781
      %v1023 = vpop.f32.mrb[0].mxu0
      %v1024 = vadd.f32 0.0, %v1023
      %v1025 = vpop.f32.mrb[0].mxu0
      %v1026 = vadd.f32 0.0, %v1025
      %v1027 = vpop.f32.mrb[0].mxu0
      %v1028 = vadd.f32 0.0, %v1027
      %v1029 = vpop.f32.mrb[0].mxu0
      %v1030 = vadd.f32 0.0, %v1029
      %1031 = vmatprep.mubr.bf16.mxu0 %v784
      %1032 = vmatmul.mubr.bf16.gmra.mrb[0].mxu0 %v783
      %v1033 = vpop.f32.mrb[0].mxu0
      %v1034 = vadd.f32 0.0, %v1033
      %v1035 = vpop.f32.mrb[0].mxu0
      %v1036 = vadd.f32 0.0, %v1035
      %v1037 = vpop.f32.mrb[0].mxu0
      %v1038 = vadd.f32 0.0, %v1037
      %v1039 = vpop.f32.mrb[0].mxu0
      %v1040 = vadd.f32 0.0, %v1039
      %1041 = vmatprep.mubr.bf16.mxu0 %v786
      %1042 = vmatmul.mubr.bf16.gmra.mrb[0].mxu0 %v785
      %v1043 = vpop.f32.mrb[0].mxu0
      %v1044 = vadd.f32 0.0, %v1043
      %v1045 = vpop.f32.mrb[0].mxu0
      %v1046 = vadd.f32 0.0, %v1045
      %v1047 = vpop.f32.mrb[0].mxu0
      %v1048 = vadd.f32 0.0, %v1047
      %v1049 = vpop.f32.mrb[0].mxu0
      %v1050 = vadd.f32 0.0, %v1049
      %1051 = vmatprep.mubr.bf16.mxu0 %v788
      %1052 = vmatmul.mubr.bf16.gmra.mrb[0].mxu0 %v787
      %v1053 = vpop.f32.mrb[0].mxu0
      %v1054 = vadd.f32 0.0, %v1053
      %v1055 = vpop.f32.mrb[0].mxu0
      %v1056 = vadd.f32 0.0, %v1055
      %v1057 = vpop.f32.mrb[0].mxu0
      %v1058 = vadd.f32 0.0, %v1057
      %v1059 = vpop.f32.mrb[0].mxu0
      %v1060 = vadd.f32 0.0, %v1059
      %1061 = vmatprep.mubr.bf16.mxu0 %v790
      %1062 = vmatmul.mubr.bf16.gmra.mrb[0].mxu0 %v789
      %v1063 = vpop.f32.mrb[0].mxu0
      %v1064 = vadd.f32 0.0, %v1063
      %v1065 = vpop.f32.mrb[0].mxu0
      %v1066 = vadd.f32 0.0, %v1065
      %v1067 = vpop.f32.mrb[0].mxu0
      %v1068 = vadd.f32 0.0, %v1067
      %v1069 = vpop.f32.mrb[0].mxu0
      %v1070 = vadd.f32 0.0, %v1069
      %1071 = vmatprep.mubr.bf16.mxu0 %v792
      %1072 = vmatmul.mubr.bf16.gmra.mrb[0].mxu0 %v791
      %v1073 = vpop.f32.mrb[0].mxu0
      %v1074 = vadd.f32 0.0, %v1073
      %v1075 = vpop.f32.mrb[0].mxu0
      %v1076 = vadd.f32 0.0, %v1075
      %v1077 = vpop.f32.mrb[0].mxu0
      %v1078 = vadd.f32 0.0, %v1077
      %v1079 = vpop.f32.mrb[0].mxu0
      %v1080 = vadd.f32 0.0, %v1079
      %1081 = vmatprep.mubr.bf16.mxu0 %v794
      %1082 = vmatmul.mubr.bf16.gmra.mrb[0].mxu0 %v793
      %v1083 = vpop.f32.mrb[0].mxu0
      %v1084 = vadd.f32 0.0, %v1083
      %v1085 = vpop.f32.mrb[0].mxu0
      %v1086 = vadd.f32 0.0, %v1085
      %v1087 = vpop.f32.mrb[0].mxu0
      %v1088 = vadd.f32 0.0, %v1087
      %v1089 = vpop.f32.mrb[0].mxu0
      %v1090 = vadd.f32 0.0, %v1089
      %1091 = vmatprep.mubr.bf16.mxu0 %v796
      %1092 = vmatmul.mubr.bf16.gmra.mrb[0].mxu0 %v795
      %v1093 = vpop.f32.mrb[0].mxu0
      %v1094 = vadd.f32 0.0, %v1093
      %v1095 = vpop.f32.mrb[0].mxu0
      %v1096 = vadd.f32 0.0, %v1095
      %v1097 = vpop.f32.mrb[0].mxu0
      %v1098 = vadd.f32 0.0, %v1097
      %v1099 = vpop.f32.mrb[0].mxu0
      %v1100 = vadd.f32 0.0, %v1099
      %1101 = vdwg.mxu0
      %v1102 = vld [vmem:[%s5] sm:$0x3]
      %v1104 = vlaneseq
      %v1105 = vshrl.u32 %v1104, 7
      %v1106 = vsub.s32 0, %v1105
      %v1107 = vrot.slane %v1102, %v1106
      %v1108 = vlaneseq
      %v1109 = vshrl.u32 %v1108, 7
      %v1110 = vsub.s32 1, %v1109
      %v1111 = vrot.slane %v1102, %v1110
      %v1114 = vmul.f32 %v1024, %v1107
      %v1115 = vmul.f32 %v1026, %v1111
      %v1116 = vmul.f32 %v1028, %v1107
      %v1117 = vmul.f32 %v1030, %v1111
      %v1118 = vmul.f32 %v1034, %v1107
      %v1119 = vmul.f32 %v1036, %v1111
      %v1120 = vmul.f32 %v1038, %v1107
      %v1121 = vmul.f32 %v1040, %v1111
      %v1122 = vmul.f32 %v1044, %v1107
      %v1123 = vmul.f32 %v1046, %v1111
      %v1124 = vmul.f32 %v1048, %v1107
      %v1125 = vmul.f32 %v1050, %v1111
      %v1126 = vmul.f32 %v1054, %v1107
      %v1127 = vmul.f32 %v1056, %v1111
      %v1128 = vmul.f32 %v1058, %v1107
      %v1129 = vmul.f32 %v1060, %v1111
      %v1130 = vmul.f32 %v1064, %v1107
      %v1131 = vmul.f32 %v1066, %v1111
      %v1132 = vmul.f32 %v1068, %v1107
      %v1133 = vmul.f32 %v1070, %v1111
      %v1134 = vmul.f32 %v1074, %v1107
      %v1135 = vmul.f32 %v1076, %v1111
      %v1136 = vmul.f32 %v1078, %v1107
      %v1137 = vmul.f32 %v1080, %v1111
      %v1138 = vmul.f32 %v1084, %v1107
      %v1139 = vmul.f32 %v1086, %v1111
      %v1140 = vmul.f32 %v1088, %v1107
      %v1141 = vmul.f32 %v1090, %v1111
      %v1142 = vmul.f32 %v1094, %v1107
      %v1143 = vmul.f32 %v1096, %v1111
      %v1144 = vmul.f32 %v1098, %v1107
      %v1145 = vmul.f32 %v1100, %v1111
      %v1146 = vld [vmem:[%s6] sm:$0x3]
      %v1148 = vlaneseq
      %v1149 = vshrl.u32 %v1148, 7
      %v1150 = vsub.s32 0, %v1149
      %v1151 = vrot.slane %v1146, %v1150
      %v1152 = vlaneseq
      %v1153 = vshrl.u32 %v1152, 7
      %v1154 = vsub.s32 1, %v1153
      %v1155 = vrot.slane %v1146, %v1154
      %v1158 = vadd.f32 %v1114, %v1151
      %v1159 = vadd.f32 %v1115, %v1155
      %v1160 = vadd.f32 %v1116, %v1151
      %v1161 = vadd.f32 %v1117, %v1155
      %v1162 = vadd.f32 %v1118, %v1151
      %v1163 = vadd.f32 %v1119, %v1155
      %v1164 = vadd.f32 %v1120, %v1151
      %v1165 = vadd.f32 %v1121, %v1155
      %v1166 = vadd.f32 %v1122, %v1151
      %v1167 = vadd.f32 %v1123, %v1155
      %v1168 = vadd.f32 %v1124, %v1151
      %v1169 = vadd.f32 %v1125, %v1155
      %v1170 = vadd.f32 %v1126, %v1151
      %v1171 = vadd.f32 %v1127, %v1155
      %v1172 = vadd.f32 %v1128, %v1151
      %v1173 = vadd.f32 %v1129, %v1155
      %v1174 = vadd.f32 %v1130, %v1151
      %v1175 = vadd.f32 %v1131, %v1155
      %v1176 = vadd.f32 %v1132, %v1151
      %v1177 = vadd.f32 %v1133, %v1155
      %v1178 = vadd.f32 %v1134, %v1151
      %v1179 = vadd.f32 %v1135, %v1155
      %v1180 = vadd.f32 %v1136, %v1151
      %v1181 = vadd.f32 %v1137, %v1155
      %v1182 = vadd.f32 %v1138, %v1151
      %v1183 = vadd.f32 %v1139, %v1155
      %v1184 = vadd.f32 %v1140, %v1151
      %v1185 = vadd.f32 %v1141, %v1155
      %v1186 = vadd.f32 %v1142, %v1151
      %v1187 = vadd.f32 %v1143, %v1155
      %v1188 = vadd.f32 %v1144, %v1151
      %v1189 = vadd.f32 %v1145, %v1155
      %v1190 = vmul.f32 %v1158, 0.2
      %v1191 = vmul.f32 %v1159, 0.2
      %v1192 = vmul.f32 %v1160, 0.2
      %v1193 = vmul.f32 %v1161, 0.2
      %v1194 = vmul.f32 %v1162, 0.2
      %v1195 = vmul.f32 %v1163, 0.2
      %v1196 = vmul.f32 %v1164, 0.2
      %v1197 = vmul.f32 %v1165, 0.2
      %v1198 = vmul.f32 %v1166, 0.2
      %v1199 = vmul.f32 %v1167, 0.2
      %v1200 = vmul.f32 %v1168, 0.2
      %v1201 = vmul.f32 %v1169, 0.2
      %v1202 = vmul.f32 %v1170, 0.2
      %v1203 = vmul.f32 %v1171, 0.2
      %v1204 = vmul.f32 %v1172, 0.2
      %v1205 = vmul.f32 %v1173, 0.2
      %v1206 = vmul.f32 %v1174, 0.2
      %v1207 = vmul.f32 %v1175, 0.2
      %v1208 = vmul.f32 %v1176, 0.2
      %v1209 = vmul.f32 %v1177, 0.2
      %v1210 = vmul.f32 %v1178, 0.2
      %v1211 = vmul.f32 %v1179, 0.2
      %v1212 = vmul.f32 %v1180, 0.2
      %v1213 = vmul.f32 %v1181, 0.2
      %v1214 = vmul.f32 %v1182, 0.2
      %v1215 = vmul.f32 %v1183, 0.2
      %v1216 = vmul.f32 %v1184, 0.2
      %v1217 = vmul.f32 %v1185, 0.2
      %v1218 = vmul.f32 %v1186, 0.2
      %v1219 = vmul.f32 %v1187, 0.2
      %v1220 = vmul.f32 %v1188, 0.2
      %v1221 = vmul.f32 %v1189, 0.2
      %v1222 = vmax.f32 %v1158, %v1190
      %v1223 = vmax.f32 %v1159, %v1191
      %v1224 = vmax.f32 %v1160, %v1192
      %v1225 = vmax.f32 %v1161, %v1193
      %v1226 = vmax.f32 %v1162, %v1194
      %v1227 = vmax.f32 %v1163, %v1195
      %v1228 = vmax.f32 %v1164, %v1196
      %v1229 = vmax.f32 %v1165, %v1197
      %v1230 = vmax.f32 %v1166, %v1198
      %v1231 = vmax.f32 %v1167, %v1199
      %v1232 = vmax.f32 %v1168, %v1200
      %v1233 = vmax.f32 %v1169, %v1201
      %v1234 = vmax.f32 %v1170, %v1202
      %v1235 = vmax.f32 %v1171, %v1203
      %v1236 = vmax.f32 %v1172, %v1204
      %v1237 = vmax.f32 %v1173, %v1205
      %v1238 = vmax.f32 %v1174, %v1206
      %v1239 = vmax.f32 %v1175, %v1207
      %v1240 = vmax.f32 %v1176, %v1208
      %v1241 = vmax.f32 %v1177, %v1209
      %v1242 = vmax.f32 %v1178, %v1210
      %v1243 = vmax.f32 %v1179, %v1211
      %v1244 = vmax.f32 %v1180, %v1212
      %v1245 = vmax.f32 %v1181, %v1213
      %v1246 = vmax.f32 %v1182, %v1214
      %v1247 = vmax.f32 %v1183, %v1215
      %v1248 = vmax.f32 %v1184, %v1216
      %v1249 = vmax.f32 %v1185, %v1217
      %v1250 = vmax.f32 %v1186, %v1218
      %v1251 = vmax.f32 %v1187, %v1219
      %v1252 = vmax.f32 %v1188, %v1220
      %v1253 = vmax.f32 %v1189, %v1221
      %v1254 = vpack.c.bf16 %v1224, %v1222
      %v1255 = vpack.c.bf16 %v1225, %v1223
      %v1256 = vpack.c.bf16 %v1228, %v1226
      %v1257 = vpack.c.bf16 %v1229, %v1227
      %v1258 = vpack.c.bf16 %v1232, %v1230
      %v1259 = vpack.c.bf16 %v1233, %v1231
      %v1260 = vpack.c.bf16 %v1236, %v1234
      %v1261 = vpack.c.bf16 %v1237, %v1235
      %v1262 = vpack.c.bf16 %v1240, %v1238
      %v1263 = vpack.c.bf16 %v1241, %v1239
      %v1264 = vpack.c.bf16 %v1244, %v1242
      %v1265 = vpack.c.bf16 %v1245, %v1243
      %v1266 = vpack.c.bf16 %v1248, %v1246
      %v1267 = vpack.c.bf16 %v1249, %v1247
      %v1268 = vpack.c.bf16 %v1252, %v1250
      %v1269 = vpack.c.bf16 %v1253, %v1251
      %v1270 = vld [vmem:[%s7] sm:$0xf]
      %v1271 = vld [vmem:[%s7 + $0x4] sm:$0xf]
      %v1272 = vld [vmem:[%s7 + $0x8] sm:$0xf]
      %v1273 = vld [vmem:[%s7 + $0xc] sm:$0xf]
      %v1274 = vld [vmem:[%s7 + $0x10] sm:$0xf]
      %v1275 = vld [vmem:[%s7 + $0x14] sm:$0xf]
      %v1276 = vld [vmem:[%s7 + $0x18] sm:$0xf]
      %v1277 = vld [vmem:[%s7 + $0x1c] sm:$0xf]
      %v1278 = vld [vmem:[%s7 + $0x20] sm:$0xf]
      %v1279 = vld [vmem:[%s7 + $0x24] sm:$0xf]
      %v1280 = vld [vmem:[%s7 + $0x28] sm:$0xf]
      %v1281 = vld [vmem:[%s7 + $0x2c] sm:$0xf]
      %v1282 = vld [vmem:[%s7 + $0x30] sm:$0xf]
      %v1283 = vld [vmem:[%s7 + $0x34] sm:$0xf]
      %v1284 = vld [vmem:[%s7 + $0x38] sm:$0xf]
      %v1285 = vld [vmem:[%s7 + $0x3c] sm:$0xf]
      %v1286 = vld [vmem:[%s7 + $0x40] sm:$0xf]
      %v1287 = vld [vmem:[%s7 + $0x44] sm:$0xf]
      %v1288 = vld [vmem:[%s7 + $0x48] sm:$0xf]
      %v1289 = vld [vmem:[%s7 + $0x4c] sm:$0xf]
      %v1290 = vld [vmem:[%s7 + $0x50] sm:$0xf]
      %v1291 = vld [vmem:[%s7 + $0x54] sm:$0xf]
      %v1292 = vld [vmem:[%s7 + $0x58] sm:$0xf]
      %v1293 = vld [vmem:[%s7 + $0x5c] sm:$0xf]
      %v1294 = vld [vmem:[%s7 + $0x60] sm:$0xf]
      %v1295 = vld [vmem:[%s7 + $0x64] sm:$0xf]
      %v1296 = vld [vmem:[%s7 + $0x68] sm:$0xf]
      %v1297 = vld [vmem:[%s7 + $0x6c] sm:$0xf]
      %v1298 = vld [vmem:[%s7 + $0x70] sm:$0xf]
      %v1299 = vld [vmem:[%s7 + $0x74] sm:$0xf]
      %v1300 = vld [vmem:[%s7 + $0x78] sm:$0xf]
      %v1301 = vld [vmem:[%s7 + $0x7c] sm:$0xf]
      %v1334 = vunpack.c.l.b16 %v1270
      %v1335 = vunpack.c.l.b16 %v1271
      %v1336 = vunpack.c.l.b16 %v1272
      %v1337 = vunpack.c.l.b16 %v1273
      %v1338 = vunpack.c.l.b16 %v1274
      %v1339 = vunpack.c.l.b16 %v1275
      %v1340 = vunpack.c.l.b16 %v1276
      %v1341 = vunpack.c.l.b16 %v1277
      %v1342 = vunpack.c.l.b16 %v1278
      %v1343 = vunpack.c.l.b16 %v1279
      %v1344 = vunpack.c.l.b16 %v1280
      %v1345 = vunpack.c.l.b16 %v1281
      %v1346 = vunpack.c.l.b16 %v1282
      %v1347 = vunpack.c.l.b16 %v1283
      %v1348 = vunpack.c.l.b16 %v1284
      %v1349 = vunpack.c.l.b16 %v1285
      %v1350 = vunpack.c.l.b16 %v1286
      %v1351 = vunpack.c.l.b16 %v1287
      %v1352 = vunpack.c.l.b16 %v1288
      %v1353 = vunpack.c.l.b16 %v1289
      %v1354 = vunpack.c.l.b16 %v1290
      %v1355 = vunpack.c.l.b16 %v1291
      %v1356 = vunpack.c.l.b16 %v1292
      %v1357 = vunpack.c.l.b16 %v1293
      %v1358 = vunpack.c.l.b16 %v1294
      %v1359 = vunpack.c.l.b16 %v1295
      %v1360 = vunpack.c.l.b16 %v1296
      %v1361 = vunpack.c.l.b16 %v1297
      %v1362 = vunpack.c.l.b16 %v1298
      %v1363 = vunpack.c.l.b16 %v1299
      %v1364 = vunpack.c.l.b16 %v1300
      %v1365 = vunpack.c.l.b16 %v1301
      %v1366 = vpack.c.b16 %v1335, %v1334
      %v1367 = vpack.c.b16 %v1337, %v1336
      %v1368 = vpack.c.b16 %v1339, %v1338
      %v1369 = vpack.c.b16 %v1341, %v1340
      %v1370 = vpack.c.b16 %v1343, %v1342
      %v1371 = vpack.c.b16 %v1345, %v1344
      %v1372 = vpack.c.b16 %v1347, %v1346
      %v1373 = vpack.c.b16 %v1349, %v1348
      %v1374 = vpack.c.b16 %v1351, %v1350
      %v1375 = vpack.c.b16 %v1353, %v1352
      %v1376 = vpack.c.b16 %v1355, %v1354
      %v1377 = vpack.c.b16 %v1357, %v1356
      %v1378 = vpack.c.b16 %v1359, %v1358
      %v1379 = vpack.c.b16 %v1361, %v1360
      %v1380 = vpack.c.b16 %v1363, %v1362
      %v1381 = vpack.c.b16 %v1365, %v1364
      %1398 = vmatprep.subr.bf16.mxu0 0
      %1399 = vmatpush1.bf16.msra.mxu0 %v1366
      %1400 = vmatprep.subr.bf16.mxu0 0
      %1401 = vmatpush1.bf16.msra.mxu0 %v1367
      %1402 = vmatprep.subr.bf16.mxu0 0
      %1403 = vmatpush1.bf16.msra.mxu0 %v1368
      %1404 = vmatprep.subr.bf16.mxu0 0
      %1405 = vmatpush1.bf16.msra.mxu0 %v1369
      %1406 = vmatprep.subr.bf16.mxu0 0
      %1407 = vmatpush1.bf16.msra.mxu0 %v1370
      %1408 = vmatprep.subr.bf16.mxu0 0
      %1409 = vmatpush1.bf16.msra.mxu0 %v1371
      %1410 = vmatprep.subr.bf16.mxu0 0
      %1411 = vmatpush1.bf16.msra.mxu0 %v1372
      %1412 = vmatprep.subr.bf16.mxu0 0
      %1413 = vmatpush1.bf16.msra.mxu0 %v1373
      %1414 = vmatprep.subr.bf16.mxu0 0
      %1415 = vmatpush1.bf16.msra.mxu0 %v1374
      %1416 = vmatprep.subr.bf16.mxu0 0
      %1417 = vmatpush1.bf16.msra.mxu0 %v1375
      %1418 = vmatprep.subr.bf16.mxu0 0
      %1419 = vmatpush1.bf16.msra.mxu0 %v1376
      %1420 = vmatprep.subr.bf16.mxu0 0
      %1421 = vmatpush1.bf16.msra.mxu0 %v1377
      %1422 = vmatprep.subr.bf16.mxu0 0
      %1423 = vmatpush1.bf16.msra.mxu0 %v1378
      %1424 = vmatprep.subr.bf16.mxu0 0
      %1425 = vmatpush1.bf16.msra.mxu0 %v1379
      %1426 = vmatprep.subr.bf16.mxu0 0
      %1427 = vmatpush1.bf16.msra.mxu0 %v1380
      %1428 = vmatprep.subr.bf16.mxu0 0
      %1429 = vmatpush1.bf16.msra.mxu0 %v1381
      %1430 = vmatprep.mubr.bf16.mxu0 %v1255
      %1431 = vmatmul.mubr.bf16.gmra.mrb[0].mxu0 %v1254
      %v1432 = vpop.f32.mrb[0].mxu0
      %v1433 = vadd.f32 0.0, %v1432
      %v1434 = vpop.f32.mrb[0].mxu0
      %v1435 = vpop.f32.mrb[0].mxu0
      %v1436 = vadd.f32 0.0, %v1435
      %v1437 = vpop.f32.mrb[0].mxu0
      %1438 = vmatprep.mubr.bf16.mxu0 %v1257
      %1439 = vmatmul.mubr.bf16.gmra.mrb[0].mxu0 %v1256
      %v1440 = vpop.f32.mrb[0].mxu0
      %v1441 = vadd.f32 0.0, %v1440
      %v1442 = vpop.f32.mrb[0].mxu0
      %v1443 = vpop.f32.mrb[0].mxu0
      %v1444 = vadd.f32 0.0, %v1443
      %v1445 = vpop.f32.mrb[0].mxu0
      %1446 = vmatprep.mubr.bf16.mxu0 %v1259
      %1447 = vmatmul.mubr.bf16.gmra.mrb[0].mxu0 %v1258
      %v1448 = vpop.f32.mrb[0].mxu0
      %v1449 = vadd.f32 0.0, %v1448
      %v1450 = vpop.f32.mrb[0].mxu0
      %v1451 = vpop.f32.mrb[0].mxu0
      %v1452 = vadd.f32 0.0, %v1451
      %v1453 = vpop.f32.mrb[0].mxu0
      %1454 = vmatprep.mubr.bf16.mxu0 %v1261
      %1455 = vmatmul.mubr.bf16.gmra.mrb[0].mxu0 %v1260
      %v1456 = vpop.f32.mrb[0].mxu0
      %v1457 = vadd.f32 0.0, %v1456
      %v1458 = vpop.f32.mrb[0].mxu0
      %v1459 = vpop.f32.mrb[0].mxu0
      %v1460 = vadd.f32 0.0, %v1459
      %v1461 = vpop.f32.mrb[0].mxu0
      %1462 = vmatprep.mubr.bf16.mxu0 %v1263
      %1463 = vmatmul.mubr.bf16.gmra.mrb[0].mxu0 %v1262
      %v1464 = vpop.f32.mrb[0].mxu0
      %v1465 = vadd.f32 0.0, %v1464
      %v1466 = vpop.f32.mrb[0].mxu0
      %v1467 = vpop.f32.mrb[0].mxu0
      %v1468 = vadd.f32 0.0, %v1467
      %v1469 = vpop.f32.mrb[0].mxu0
      %1470 = vmatprep.mubr.bf16.mxu0 %v1265
      %1471 = vmatmul.mubr.bf16.gmra.mrb[0].mxu0 %v1264
      %v1472 = vpop.f32.mrb[0].mxu0
      %v1473 = vadd.f32 0.0, %v1472
      %v1474 = vpop.f32.mrb[0].mxu0
      %v1475 = vpop.f32.mrb[0].mxu0
      %v1476 = vadd.f32 0.0, %v1475
      %v1477 = vpop.f32.mrb[0].mxu0
      %1478 = vmatprep.mubr.bf16.mxu0 %v1267
      %1479 = vmatmul.mubr.bf16.gmra.mrb[0].mxu0 %v1266
      %v1480 = vpop.f32.mrb[0].mxu0
      %v1481 = vadd.f32 0.0, %v1480
      %v1482 = vpop.f32.mrb[0].mxu0
      %v1483 = vpop.f32.mrb[0].mxu0
      %v1484 = vadd.f32 0.0, %v1483
      %v1485 = vpop.f32.mrb[0].mxu0
      %1486 = vmatprep.mubr.bf16.mxu0 %v1269
      %1487 = vmatmul.mubr.bf16.gmra.mrb[0].mxu0 %v1268
      %v1488 = vpop.f32.mrb[0].mxu0
      %v1489 = vadd.f32 0.0, %v1488
      %v1490 = vpop.f32.mrb[0].mxu0
      %v1491 = vpop.f32.mrb[0].mxu0
      %v1492 = vadd.f32 0.0, %v1491
      %v1493 = vpop.f32.mrb[0].mxu0
      %1494 = vdwg.mxu0
      %v1495 = vld [vmem:[%s412] sm:$0x1]
      %v1496 = vadd.f32 %v1433, %v1436
      %v1497 = vadd.f32 %v1496, %v1441
      %v1498 = vadd.f32 %v1497, %v1444
      %v1499 = vadd.f32 %v1498, %v1449
      %v1500 = vadd.f32 %v1499, %v1452
      %v1501 = vadd.f32 %v1500, %v1457
      %v1502 = vadd.f32 %v1501, %v1460
      %v1503 = vadd.f32 %v1502, %v1465
      %v1504 = vadd.f32 %v1503, %v1468
      %v1505 = vadd.f32 %v1504, %v1473
      %v1506 = vadd.f32 %v1505, %v1476
      %v1507 = vadd.f32 %v1506, %v1481
      %v1508 = vadd.f32 %v1507, %v1484
      %v1509 = vadd.f32 %v1508, %v1489
      %v1510 = vadd.f32 %v1509, %v1492
      %v1511 = vrot.slane %v1510, 4
      %v1512 = vadd.f32 %v1510, %v1511
      %v1513 = vrot.slane %v1512, 2
      %v1514 = vadd.f32 %v1512, %v1513
      %v1515 = vrot.slane %v1514, 1
      %v1516 = vadd.f32 %v1514, %v1515
      %v1517 = vadd.f32 %v1495, %v1516
      %1518 = vst [vmem:[%s412] sm:$0x1] %v1517
      %v1519 = vld [vmem:[%s415] sm:$0x1]
      %v1520 = vmul.f32 %v1433, %v1433
      %v1521 = vmul.f32 %v1436, %v1436
      %v1522 = vmul.f32 %v1441, %v1441
      %v1523 = vmul.f32 %v1444, %v1444
      %v1524 = vmul.f32 %v1449, %v1449
      %v1525 = vmul.f32 %v1452, %v1452
      %v1526 = vmul.f32 %v1457, %v1457
      %v1527 = vmul.f32 %v1460, %v1460
      %v1528 = vmul.f32 %v1465, %v1465
      %v1529 = vmul.f32 %v1468, %v1468
      %v1530 = vmul.f32 %v1473, %v1473
      %v1531 = vmul.f32 %v1476, %v1476
      %v1532 = vmul.f32 %v1481, %v1481
      %v1533 = vmul.f32 %v1484, %v1484
      %v1534 = vmul.f32 %v1489, %v1489
      %v1535 = vmul.f32 %v1492, %v1492
      %v1536 = vadd.f32 %v1520, %v1521
      %v1537 = vadd.f32 %v1536, %v1522
      %v1538 = vadd.f32 %v1537, %v1523
      %v1539 = vadd.f32 %v1538, %v1524
      %v1540 = vadd.f32 %v1539, %v1525
      %v1541 = vadd.f32 %v1540, %v1526
      %v1542 = vadd.f32 %v1541, %v1527
      %v1543 = vadd.f32 %v1542, %v1528
      %v1544 = vadd.f32 %v1543, %v1529
      %v1545 = vadd.f32 %v1544, %v1530
      %v1546 = vadd.f32 %v1545, %v1531
      %v1547 = vadd.f32 %v1546, %v1532
      %v1548 = vadd.f32 %v1547, %v1533
      %v1549 = vadd.f32 %v1548, %v1534
      %v1550 = vadd.f32 %v1549, %v1535
      %v1551 = vrot.slane %v1550, 4
      %v1552 = vadd.f32 %v1550, %v1551
      %v1553 = vrot.slane %v1552, 2
      %v1554 = vadd.f32 %v1552, %v1553
      %v1555 = vrot.slane %v1554, 1
      %v1556 = vadd.f32 %v1554, %v1555
      %v1557 = vadd.f32 %v1519, %v1556
      %1558 = vst [vmem:[%s415] sm:$0x1] %v1557
      %v1559 = vpack.c.bf16 %v1436, %v1433
      %v1560 = vpack.c.bf16 %v1444, %v1441
      %v1561 = vpack.c.bf16 %v1452, %v1449
      %v1562 = vpack.c.bf16 %v1460, %v1457
      %v1563 = vpack.c.bf16 %v1468, %v1465
      %v1564 = vpack.c.bf16 %v1476, %v1473
      %v1565 = vpack.c.bf16 %v1484, %v1481
      %v1566 = vpack.c.bf16 %v1492, %v1489
      %v1575 = vunpack.c.l.b16 %v1559
      %v1576 = vunpack.c.h.b16 %v1559
      %v1577 = vunpack.c.l.b16 %v1560
      %v1578 = vunpack.c.h.b16 %v1560
      %v1579 = vunpack.c.l.b16 %v1561
      %v1580 = vunpack.c.h.b16 %v1561
      %v1581 = vunpack.c.l.b16 %v1562
      %v1582 = vunpack.c.h.b16 %v1562
      %v1583 = vunpack.c.l.b16 %v1563
      %v1584 = vunpack.c.h.b16 %v1563
      %v1585 = vunpack.c.l.b16 %v1564
      %v1586 = vunpack.c.h.b16 %v1564
      %v1587 = vunpack.c.l.b16 %v1565
      %v1588 = vunpack.c.h.b16 %v1565
      %v1589 = vunpack.c.l.b16 %v1566
      %v1590 = vunpack.c.h.b16 %v1566
      %v1591 = vpack.c.b16 %v1575, %v1575
      %v1592 = vpack.c.b16 %v1576, %v1576
      %v1593 = vpack.c.b16 %v1577, %v1577
      %v1594 = vpack.c.b16 %v1578, %v1578
      %v1595 = vpack.c.b16 %v1579, %v1579
      %v1596 = vpack.c.b16 %v1580, %v1580
      %v1597 = vpack.c.b16 %v1581, %v1581
      %v1598 = vpack.c.b16 %v1582, %v1582
      %v1599 = vpack.c.b16 %v1583, %v1583
      %v1600 = vpack.c.b16 %v1584, %v1584
      %v1601 = vpack.c.b16 %v1585, %v1585
      %v1602 = vpack.c.b16 %v1586, %v1586
      %v1603 = vpack.c.b16 %v1587, %v1587
      %v1604 = vpack.c.b16 %v1588, %v1588
      %v1605 = vpack.c.b16 %v1589, %v1589
      %v1606 = vpack.c.b16 %v1590, %v1590
      %1623 = vst [vmem:[%s406] sm:$0xf] %v1591
      %1624 = vst [vmem:[%s406 + $0x4] sm:$0xf] %v1592
      %1625 = vst [vmem:[%s406 + $0x8] sm:$0xf] %v1593
      %1626 = vst [vmem:[%s406 + $0xc] sm:$0xf] %v1594
      %1627 = vst [vmem:[%s406 + $0x10] sm:$0xf] %v1595
      %1628 = vst [vmem:[%s406 + $0x14] sm:$0xf] %v1596
      %1629 = vst [vmem:[%s406 + $0x18] sm:$0xf] %v1597
      %1630 = vst [vmem:[%s406 + $0x1c] sm:$0xf] %v1598
      %1631 = vst [vmem:[%s406 + $0x20] sm:$0xf] %v1599
      %1632 = vst [vmem:[%s406 + $0x24] sm:$0xf] %v1600
      %1633 = vst [vmem:[%s406 + $0x28] sm:$0xf] %v1601
      %1634 = vst [vmem:[%s406 + $0x2c] sm:$0xf] %v1602
      %1635 = vst [vmem:[%s406 + $0x30] sm:$0xf] %v1603
      %1636 = vst [vmem:[%s406 + $0x34] sm:$0xf] %v1604
      %1637 = vst [vmem:[%s406 + $0x38] sm:$0xf] %v1605
      %1638 = vst [vmem:[%s406 + $0x3c] sm:$0xf] %v1606
      %s1639 = smul.u32 %s26, 2
      %s1640 = sadd.s32 %s1639, %s27
      %s1641 = smul.u32 16, %s1640
      %p1642 = scmp.lt.s32.totalorder %s1641, 63
      %s1643 = scalar_select %p1642, %s1641, 63
      %s1644 = smul.addr %s1643, 4
      %s1645 = scalar_lea.vmem %s8, %s1644
      %p1646 = scmp.lt.s32.totalorder %s26, 1
      %s1647 = scalar_select %p1646, %s26, 1
      %s1648 = scalar_lea.vmem %s9, %s1647
      %p1649 = scmp.lt.s32.totalorder %s26, 1
      %s1650 = scalar_select %p1649, %s26, 1
      %s1651 = scalar_lea.vmem %s10, %s1650
      // Predicated region
      $region57: #{region_reconstruction.6} parent=51 // pred_check
        %p1652 = pneg %p233
      $region58: #{region_reconstruction.6} parent=51 // pred_check_branch
        %1654 = sbr.rel (%p1652) target = $region60
      $region59: #{region_reconstruction.6} parent=51 // pred_region
        %s1655 = smul.u32 %s26, 2
        %s1656 = sadd.s32 %s1655, %s27
        %s1657 = smul.u32 16, %s1656
      $region60: #{region_reconstruction.6} parent=51 // pred_fallthru
        _
      // Predicated region
      $region61: #{region_reconstruction.6} parent=51 // pred_check
        %p1658 = pneg %p259
      $region62: #{region_reconstruction.6} parent=51 // pred_check_branch
        %1660 = sbr.rel (%p1658) target = $region64
      $region63: #{region_reconstruction.6} parent=51 // pred_region
        _
      $region64: #{region_reconstruction.6} parent=51 // pred_fallthru
        _
      // Predicated region
      $region65: #{region_reconstruction.6} parent=51 // pred_check
        %p1661 = pneg %p285
      $region66: #{region_reconstruction.6} parent=51 // pred_check_branch
        %1663 = sbr.rel (%p1661) target = $region68
      $region67: #{region_reconstruction.6} parent=51 // pred_region
        _
      $region68: #{region_reconstruction.6} parent=51 // pred_fallthru
        _
    $region52: #{region_reconstruction.6} parent=5 // pred_fallthru
      _
    %p1664 = scmp.le.s32.totalorder 2, %s17
    // Predicated region
    $region69: #{region_reconstruction.6} parent=5 // pred_check
      %p1665 = pneg %p1664
    $region70: #{region_reconstruction.6} parent=5 // pred_check_branch
      %1667 = sbr.rel (%p1665) target = $region72
    $region71: #{region_reconstruction.6} parent=5 // pred_region
      %s1668 = ssub.s32 %s17, 2
      // Predicated region
      $region73: #{region_reconstruction.6} parent=71 // pred_check
        %p1669 = pneg %p239
      $region74: #{region_reconstruction.6} parent=71 // pred_check_branch
        %1671 = sbr.rel (%p1669) target = $region76
      $region75: #{region_reconstruction.6} parent=71 // pred_region
        %s1672 = smul.u32 %s28, 2
        %s1673 = sadd.s32 %s1672, %s29
        %s1674 = smul.u32 16, %s1673
        %p1675 = scmp.lt.s32.totalorder %s1674, 63
        %s1676 = scalar_select %p1675, %s1674, 63
        %s1677 = smul.addr %s1676, 4
        %s1678 = scalar_lea.vmem %s8, %s1677
      $region76: #{region_reconstruction.6} parent=71 // pred_fallthru
        _
      // Predicated region
      $region77: #{region_reconstruction.6} parent=71 // pred_check
        %p1679 = pneg %p265
      $region78: #{region_reconstruction.6} parent=71 // pred_check_branch
        %1681 = sbr.rel (%p1679) target = $region80
      $region79: #{region_reconstruction.6} parent=71 // pred_region
        %p1682 = scmp.lt.s32.totalorder %s28, 1
        %s1683 = scalar_select %p1682, %s28, 1
        %s1684 = scalar_lea.vmem %s9, %s1683
      $region80: #{region_reconstruction.6} parent=71 // pred_fallthru
        _
      // Predicated region
      $region81: #{region_reconstruction.6} parent=71 // pred_check
        %p1685 = pneg %p291
      $region82: #{region_reconstruction.6} parent=71 // pred_check_branch
        %1687 = sbr.rel (%p1685) target = $region84
      $region83: #{region_reconstruction.6} parent=71 // pred_region
        %p1688 = scmp.lt.s32.totalorder %s28, 1
        %s1689 = scalar_select %p1688, %s28, 1
        %s1690 = scalar_lea.vmem %s10, %s1689
      $region84: #{region_reconstruction.6} parent=71 // pred_fallthru
        _
    $region72: #{region_reconstruction.6} parent=5 // pred_fallthru
      _
  $region6: #{region_reconstruction.6} parent=0 // loop_footer
    %s21 = sadd.s32 1, %s17
  $region7: #{region_reconstruction.6} parent=0 // loop_footer_branch
    %16 = sbr.rel target = $region3
  $region8: #{region_reconstruction.6} parent=0 // loop_exit
    _

</llo_original>
